<compile_context>
chip_gen: v5e
topology: v5e:2x2
jax: 0.10.0
libtpu: 0.0.40
codegen_flags: <defaults>
</compile_context>

<pallas_src>
import functools

import jax
import jax.numpy as jnp
from jax import lax
from jax.experimental import pallas as pl
from jax.experimental.pallas import tpu as pltpu

NEG_BIG = -1000000000.0        # same constant the PyTorch module uses
GATE_PERM = (0, 1, 3, 2)       # torch (i, f, g, o) -> packed (i, f, o, g)


def _round_up(x, m):
    return ((x + m - 1) // m) * m


# ----------------------------------------------------------------------------
# Weight packing: torch gate order (i, f, g, o) -> packed (i, f, o, g) so the
# three sigmoids hit one contiguous lane-aligned slice and tanh the last one.
# ----------------------------------------------------------------------------
def _pack_w_ih(w_ih, H, H_pad):
    """(4H, E) torch layout -> (E, 4*H_pad), per-gate columns zero-padded."""
    E = w_ih.shape[1]
    w = w_ih.reshape(4, H, E)[jnp.array(GATE_PERM)]       # (4, H, E) reordered
    w = jnp.transpose(w, (2, 0, 1))                       # (E, 4, H)
    w = jnp.pad(w, ((0, 0), (0, 0), (0, H_pad - H)))
    return w.reshape(E, 4 * H_pad)


def _pack_w_hh(w_hh, H, H_pad):
    """(4H, H) torch layout -> (H_pad, 4*H_pad), zero-padded rows/cols."""
    w = w_hh.reshape(4, H, H)[jnp.array(GATE_PERM)]       # (4, out_h, in_h)
    w = jnp.transpose(w, (2, 0, 1))                       # (in_h, 4, out_h)
    w = jnp.pad(w, ((0, H_pad - H), (0, 0), (0, H_pad - H)))
    return w.reshape(H_pad, 4 * H_pad)


def _pack_bias(b, H, H_pad):
    b = b.reshape(4, H)[jnp.array(GATE_PERM)]
    b = jnp.pad(b, ((0, 0), (0, H_pad - H)))
    return b.reshape(4 * H_pad)


# ----------------------------------------------------------------------------
# Recurrent Pallas kernel: grid = (time_chunks,); fwd/bwd chains interleaved
# inside the per-timestep loop.
# ----------------------------------------------------------------------------
def _lstm_kernel(*refs, H_pad, chunk, n_chunks, num_dirs, unroll):
    lens_ref = refs[0]
    xp_refs = refs[1:1 + num_dirs]           # bf16 (chunk, B_pad, 4*H_pad) each
    whh_hbm = refs[1 + num_dirs]             # HBM (D, H_pad, 4*H_pad) bf16
    h_out_ref = refs[2 + num_dirs]
    pool_out_ref = refs[3 + num_dirs]
    whh_vmem, dma_sem, h_scr, c_scr, pool_scr = refs[4 + num_dirs:]

    c = pl.program_id(0)
    T_pad = n_chunks * chunk
    H = H_pad

    @pl.when(c == 0)
    def _init():
        # One single-buffered copy of BOTH directions' W_hh into VMEM,
        # overlapped with the carry-scratch initialization.
        cp = pltpu.make_async_copy(whh_hbm, whh_vmem, dma_sem)
        cp.start()
        h_scr[...] = jnp.zeros_like(h_scr)
        c_scr[...] = jnp.zeros_like(c_scr)
        pool_scr[...] = jnp.full_like(pool_scr, NEG_BIG)
        cp.wait()

    lens = lens_ref[...]                                   # (B_pad, 1) int32
    whh = [whh_vmem[d] for d in range(num_dirs)]           # (H_pad, 4H_pad) bf16
    base = c * chunk

    def cell(xp_bf16, h, cc, w):
        # single fused gate matmul: (B_pad, H_pad) x (H_pad, 4*H_pad), f32 acc
        gates = jnp.dot(h.astype(jnp.bfloat16), w,
                        preferred_element_type=jnp.float32)
        gates = gates + xp_bf16.astype(jnp.float32)
        sig = jax.nn.sigmoid(gates[:, :3 * H])             # i | f | o together
        i_g = sig[:, 0 * H:1 * H]
        f_g = sig[:, 1 * H:2 * H]
        o_g = sig[:, 2 * H:3 * H]
        g_g = jnp.tanh(gates[:, 3 * H:4 * H])
        c_new = f_g * cc + i_g * g_g
        h_new = o_g * jnp.tanh(c_new)
        return h_new, c_new

    def step(j, carry):
        hs, cs, pools = carry
        t = base + j                                       # processing-order idx
        new_hs, new_cs, new_pools = [], [], []
        for d in range(num_dirs):
            if d == 0:
                xp = xp_refs[0][j]
                t_act = t
            else:
                # backward chain: block is chunk n_chunks-1-c, read reversed
                xp = xp_refs[1][chunk - 1 - j]
                t_act = (T_pad - 1) - t
            h_new, c_new = cell(xp, hs[d], cs[d], whh[d])

            # pack_padded_sequence: freeze state for t >= lens[b]
            valid = t_act < lens                           # (B_pad, 1)
            h = jnp.where(valid, h_new, hs[d])
            cc = jnp.where(valid, c_new, cs[d])

            # pad_packed_sequence pads with zeros; pooled branch mirrors the
            # reference's exact `out[out == 0] = -1e9` (latent hazard kept).
            out_t = jnp.where(valid, h, 0.0)
            pool = jnp.maximum(pools[d],
                               jnp.where(out_t == 0.0, NEG_BIG, out_t))
            new_hs.append(h)
            new_cs.append(cc)
            new_pools.append(pool)
        return tuple(new_hs), tuple(new_cs), tuple(new_pools)

    carry0 = (tuple(h_scr[d] for d in range(num_dirs)),
              tuple(c_scr[d] for d in range(num_dirs)),
              tuple(pool_scr[d] for d in range(num_dirs)))
    hs, cs, pools = lax.fori_loop(0, chunk, step, carry0, unroll=unroll)

    for d in range(num_dirs):
        h_scr[d] = hs[d]
        c_scr[d] = cs[d]
        pool_scr[d] = pools[d]

    # outputs written only once, on the last time chunk
    @pl.when(c == n_chunks - 1)
    def _finalize():
        for d in range(num_dirs):
            h_out_ref[d] = hs[d]
            pool_out_ref[d] = pools[d]


def _run_recurrence(lens_pad, xp_list, whh_all, *, chunk, unroll, vmem_limit):
    D, H_pad, G = whh_all.shape
    T_pad, B_pad, _ = xp_list[0].shape
    n_chunks = T_pad // chunk

    kernel = functools.partial(_lstm_kernel, H_pad=H_pad, chunk=chunk,
                               n_chunks=n_chunks, num_dirs=D, unroll=unroll)

    # xp streamed one time-chunk at a time; backward direction reads its
    # chunks in reverse order (no flip pass in HBM).
    xp_specs = [pl.BlockSpec((chunk, B_pad, G), lambda c: (c, 0, 0))]
    if D == 2:
        xp_specs.append(pl.BlockSpec((chunk, B_pad, G),
                                     lambda c: (n_chunks - 1 - c, 0, 0)))

    flops = 2 * D * T_pad * B_pad * H_pad * G
    transcendentals = 5 * D * T_pad * B_pad * H_pad
    bytes_accessed = (sum(int(xp.size) for xp in xp_list) * 2   # bf16 xp
                      + int(whh_all.size) * 2                   # bf16 W_hh
                      + int(lens_pad.size) * 4
                      + 2 * D * B_pad * H_pad * 4)              # two f32 outs

    h_last, pooled = pl.pallas_call(
        kernel,
        out_shape=(
            jax.ShapeDtypeStruct((D, B_pad, H_pad), jnp.float32),   # final h
            jax.ShapeDtypeStruct((D, B_pad, H_pad), jnp.float32),   # max pool
        ),
        grid_spec=pltpu.PrefetchScalarGridSpec(
            num_scalar_prefetch=0,
            grid=(n_chunks,),
            in_specs=([pl.BlockSpec((B_pad, 1), lambda c: (0, 0))]   # lens
                      + xp_specs
                      + [pl.BlockSpec(memory_space=pl.ANY)]),        # W_hh (HBM)
            out_specs=(
                pl.BlockSpec((D, B_pad, H_pad), lambda c: (0, 0, 0)),
                pl.BlockSpec((D, B_pad, H_pad), lambda c: (0, 0, 0)),
            ),
            scratch_shapes=[
                pltpu.VMEM((D, H_pad, G), jnp.bfloat16),     # resident W_hh
                pltpu.SemaphoreType.DMA(()),                 # weight-copy sem
                pltpu.VMEM((D, B_pad, H_pad), jnp.float32),  # h carry
                pltpu.VMEM((D, B_pad, H_pad), jnp.float32),  # c carry
                pltpu.VMEM((D, B_pad, H_pad), jnp.float32),  # running max
            ],
        ),
        compiler_params=pltpu.CompilerParams(
            dimension_semantics=("arbitrary",),              # recurrence axis
            vmem_limit_bytes=int(vmem_limit)),
        cost_estimate=pl.CostEstimate(flops=int(flops),
                                      transcendentals=int(transcendentals),
                                      bytes_accessed=int(bytes_accessed)),
    )(lens_pad, *xp_list, whh_all)
    return h_last, pooled


# ----------------------------------------------------------------------------
# Generation-aware tiling plan (VMEM-budgeted chunk + unroll heuristic).
# ----------------------------------------------------------------------------
def _vmem_capacity_bytes():
    try:
        return int(pltpu.get_tpu_info().vmem_capacity_bytes)
    except Exception:
        return 64 * 1024 * 1024        # conservative default (v7x per-TC)


def _plan_tiling(T, B_pad, H_pad, D):
    G = 4 * H_pad
    cap = _vmem_capacity_bytes()
    budget = int(cap * 0.70)
    vmem_limit = int(cap * 0.90)

    per_step = 2 * D * B_pad * G * 2          # double-buffered bf16 xp slices
    fixed = (D * H_pad * G * 2                # resident W_hh (single-buffered)
             + 3 * D * B_pad * H_pad * 4      # h / c / pool carries
             + 2 * 2 * D * B_pad * H_pad * 4  # two f32 outputs (2x buffered)
             + 2 * B_pad * 128 * 4)           # lens tile (lane-padded)
    avail = max(budget - fixed, per_step)
    chunk_cap = int(max(1, min(avail // per_step, 128, T)))
    n_chunks = -(-T // chunk_cap)
    chunk = -(-T // n_chunks)                 # padded timesteps < n_chunks
    T_pad = n_chunks * chunk

    gate_vregs = D * B_pad * G * 4 // 4096    # f32 gate intermediates per step
    if gate_vregs <= 16:
        unroll = min(chunk, 16)               # full-ish unroll at small B*H
    elif gate_vregs <= 32:
        unroll = min(chunk, 4)
    else:
        unroll = min(chunk, 2)                # avoid vreg spills at large H
    return chunk, T_pad, max(1, unroll), vmem_limit


# ----------------------------------------------------------------------------
# Public wrapper, mirroring BaseLSTMEncoder.forward.
# ----------------------------------------------------------------------------
@functools.partial(jax.jit, static_argnames=("bidirectional", "pooling"))
def base_lstm_encoder(x, lens, params, *, bidirectional, pooling):
    """x: (B, T, E) batch-first, lens: (B,) int -> (B, H) or (B, 2H)."""
    B, T, E = x.shape
    H = params["w_hh_l0"].shape[1]
    H_pad = _round_up(H, 128)
    B_pad = _round_up(B, 8)
    G = 4 * H_pad
    D = 2 if bidirectional else 1

    chunk, T_pad, unroll, vmem_limit = _plan_tiling(T, B_pad, H_pad, D)

    lens = lens.astype(jnp.int32)
    lens_pad = jnp.zeros((B_pad, 1), jnp.int32).at[:B, 0].set(lens)

    # time-major, padded input (padding is masked out via lens)
    x_tm = jnp.transpose(x.astype(jnp.float32), (1, 0, 2))
    x_tm = jnp.pad(x_tm, ((0, T_pad - T), (0, B_pad - B), (0, 0)))
    x2d = x_tm.reshape(T_pad * B_pad, E).astype(jnp.bfloat16)

    dirs = [("w_ih_l0", "w_hh_l0", "b_ih_l0", "b_hh_l0")]
    if bidirectional:
        dirs.append(("w_ih_l0_rev", "w_hh_l0_rev", "b_ih_l0_rev", "b_hh_l0_rev"))

    xp_list, whh_list = [], []
    for (wi, wh, bi, bh) in dirs:
        wih_p = _pack_w_ih(params[wi], H, H_pad).astype(jnp.bfloat16)  # (E, G)
        bias_p = _pack_bias(params[bi] + params[bh], H, H_pad)         # (G,)
        # hoisted input projection: one big MXU matmul with f32 accumulation,
        # stored in bf16 to halve HBM traffic into the recurrent kernel.
        xp = jnp.dot(x2d, wih_p, preferred_element_type=jnp.float32) + bias_p
        xp_list.append(xp.astype(jnp.bfloat16).reshape(T_pad, B_pad, G))
        whh_list.append(_pack_w_hh(params[wh], H, H_pad).astype(jnp.bfloat16))
    whh_all = jnp.stack(whh_list, axis=0)     # (D, H_pad, G) bf16

    h_last, pooled = _run_recurrence(lens_pad, xp_list, whh_all,
                                     chunk=chunk, unroll=unroll,
                                     vmem_limit=vmem_limit)
    h_last = h_last[:, :B, :H]                # drop batch / lane padding
    pooled = pooled[:, :B, :H]

    if not bidirectional:
        return h_last[0]                                         # h_t[0]
    if pooling:
        # max over time of concat(fwd, bwd) == concat of per-direction maxes
        return jnp.concatenate([pooled[0], pooled[1]], axis=-1)   # (B, 2H)
    return jnp.concatenate([h_last[0], h_last[1]], axis=-1)       # hstack(h_t)


# ----------------------------------------------------------------------------
# Pure-JAX f32 reference (masked-update model of the packed LSTM) for checking.
# ----------------------------------------------------------------------------
def _reference_direction(x, lens, w_ih, w_hh, b_ih, b_hh, reverse):
    B, T, E = x.shape
    H = w_hh.shape[1]
    bias = b_ih + b_hh

    def step(carry, t):
        h, c = carry
        g = x[:, t, :] @ w_ih.T + h @ w_hh.T + bias
        i = jax.nn.sigmoid(g[:, 0:H])
        f = jax.nn.sigmoid(g[:, H:2 * H])
        gg = jnp.tanh(g[:, 2 * H:3 * H])
        o = jax.nn.sigmoid(g[:, 3 * H:4 * H])
        c_new = f * c + i * gg
        h_new = o * jnp.tanh(c_new)
        valid = (t < lens)[:, None]
        h = jnp.where(valid, h_new, h)
        c = jnp.where(valid, c_new, c)
        out_t = jnp.where(valid, h, 0.0)
        return (h, c), out_t

    ts = jnp.arange(T)
    if reverse:
        ts = ts[::-1]
    (h, _), outs = lax.scan(step, (jnp.zeros((B, H)), jnp.zeros((B, H))), ts)
    return h, outs


def lstm_encoder_reference(x, lens, params, *, bidirectional, pooling):
    x = x.astype(jnp.float32)
    lens = lens.astype(jnp.int32)
    h_f, out_f = _reference_direction(x, lens, params["w_ih_l0"],
                                      params["w_hh_l0"], params["b_ih_l0"],
                                      params["b_hh_l0"], False)
    if not bidirectional:
        return h_f
    h_b, out_b = _reference_direction(x, lens, params["w_ih_l0_rev"],
                                      params["w_hh_l0_rev"], params["b_ih_l0_rev"],
                                      params["b_hh_l0_rev"], True)
    if pooling:
        pf = jnp.max(jnp.where(out_f == 0.0, NEG_BIG, out_f), axis=0)
        pb = jnp.max(jnp.where(out_b == 0.0, NEG_BIG, out_b), axis=0)
        return jnp.concatenate([pf, pb], axis=-1)
    return jnp.concatenate([h_f, h_b], axis=-1)


def init_params(key, embedding_dim, state_dim, bidirectional):
    """Deterministic uniform(-1/sqrt(H), 1/sqrt(H)) init, like torch.nn.LSTM."""
    H, E = state_dim, embedding_dim
    bound = 1.0 / (H ** 0.5)
    names = ["w_ih_l0", "w_hh_l0", "b_ih_l0", "b_hh_l0"]
    shapes = [(4 * H, E), (4 * H, H), (4 * H,), (4 * H,)]
    if bidirectional:
        names = names + [n + "_rev" for n in names]
        shapes = shapes + shapes[:4]
    keys = jax.random.split(key, len(names))
    return {n: jax.random.uniform(k, s, jnp.float32, -bound, bound)
            for n, k, s in zip(names, keys, shapes)}


if __name__ == "__main__":
    B, T, E, H = 2, 8, 16, 32
    key = jax.random.PRNGKey(0)
    kx, kp = jax.random.split(key)

    x = jax.random.normal(kx, (B, T, E), jnp.float32)
    lens = jnp.array([8, 5], jnp.int32)     # variable lengths (packed-seq semantics)
    params = init_params(kp, E, H, bidirectional=True)

    configs = [(True, True), (True, False), (False, False)]
    for bidir, pool in configs:
        out = base_lstm_encoder(x, lens, params, bidirectional=bidir, pooling=pool)
        out = jax.block_until_ready(out)
        ref = lstm_encoder_reference(x, lens, params, bidirectional=bidir, pooling=pool)
        assert out.shape == ref.shape, (out.shape, ref.shape)
        err = float(jnp.max(jnp.abs(out - ref)))
        # bf16 matmul operands + bf16 xp storage (f32 accumulation) drift over T steps
        assert err < 6e-2, f"max abs error {err} (bidir={bidir}, pool={pool})"

    print("KERNEL_OK")
</pallas_src>

<mosaic_0001>
module attributes {stable_mosaic.version = 11 : i64} {
  func.func @_lstm_kernel(%arg0: i32, %arg1: memref<8x1xi32, #tpu.memory_space<vmem>>, %arg2: memref<8x8x512xbf16, #tpu.memory_space<vmem>>, %arg3: memref<8x8x512xbf16, #tpu.memory_space<vmem>>, %arg4: memref<2x128x512xbf16, #tpu.memory_space<any>>, %arg5: memref<2x8x128xf32, #tpu.memory_space<vmem>>, %arg6: memref<2x8x128xf32, #tpu.memory_space<vmem>>, %arg7: memref<2x128x512xbf16, #tpu.memory_space<vmem>>, %arg8: memref<!tpu.dma_semaphore, #tpu.memory_space<semaphore_mem>>, %arg9: memref<2x8x128xf32, #tpu.memory_space<vmem>>, %arg10: memref<2x8x128xf32, #tpu.memory_space<vmem>>, %arg11: memref<2x8x128xf32, #tpu.memory_space<vmem>>) attributes {dimension_semantics = [#tpu.dimension_semantics<arbitrary>], iteration_bounds = array<i64: 1>, scalar_prefetch = 0 : i64, scratch_operands = 5 : i64, tpu.core_type = #tpu.core_type<tc>, window_params = [{pipeline_mode = #tpu.pipeline_mode<synchronous>, transform_indices = @transform_0, window_bounds = array<i64: 8, 1>}, {transform_indices = @transform_1, window_bounds = array<i64: 8, 8, 512>}, {transform_indices = @transform_2, window_bounds = array<i64: 8, 8, 512>}, {}, {pipeline_mode = #tpu.pipeline_mode<synchronous>, transform_indices = @transform_4, window_bounds = array<i64: 2, 8, 128>}, {pipeline_mode = #tpu.pipeline_mode<synchronous>, transform_indices = @transform_5, window_bounds = array<i64: 2, 8, 128>}]} {
    %c0_i32 = arith.constant 0 : i32
    %0 = arith.cmpi eq, %arg0, %c0_i32 : i32
    %1 = arith.extui %0 : i1 to i32
    %c0_i32_0 = arith.constant 0 : i32
    %2 = arith.cmpi ne, %1, %c0_i32_0 : i32
    scf.if %2 {
      tpu.enqueue_dma source(%arg4 : memref<2x128x512xbf16, #tpu.memory_space<any>>) target(%arg7 : memref<2x128x512xbf16, #tpu.memory_space<vmem>>) target_semaphore(%arg8 : memref<!tpu.dma_semaphore, #tpu.memory_space<semaphore_mem>>)
      %cst_174 = arith.constant 0.000000e+00 : f32
      %706 = vector.broadcast %cst_174 : f32 to vector<2x8x128xf32>
      %c0_175 = arith.constant 0 : index
      %c0_176 = arith.constant 0 : index
      %c0_177 = arith.constant 0 : index
      %707 = vector.load %arg9[%c0_175, %c0_176, %c0_177] : memref<2x8x128xf32, #tpu.memory_space<vmem>>, vector<2x8x128xf32>
      tpu.vector_store %arg9[%c0_175, %c0_176, %c0_177], %706 {strides = array<i32>} : memref<2x8x128xf32, #tpu.memory_space<vmem>>, vector<2x8x128xf32>,
      %cst_178 = arith.constant 0.000000e+00 : f32
      %708 = vector.broadcast %cst_178 : f32 to vector<2x8x128xf32>
      %c0_179 = arith.constant 0 : index
      %c0_180 = arith.constant 0 : index
      %c0_181 = arith.constant 0 : index
      %709 = vector.load %arg10[%c0_179, %c0_180, %c0_181] : memref<2x8x128xf32, #tpu.memory_space<vmem>>, vector<2x8x128xf32>
      tpu.vector_store %arg10[%c0_179, %c0_180, %c0_181], %708 {strides = array<i32>} : memref<2x8x128xf32, #tpu.memory_space<vmem>>, vector<2x8x128xf32>,
      %cst_182 = arith.constant -1.000000e+09 : f32
      %710 = vector.broadcast %cst_182 : f32 to vector<2x8x128xf32>
      %c0_183 = arith.constant 0 : index
      %c0_184 = arith.constant 0 : index
      %c0_185 = arith.constant 0 : index
      %711 = vector.load %arg11[%c0_183, %c0_184, %c0_185] : memref<2x8x128xf32, #tpu.memory_space<vmem>>, vector<2x8x128xf32>
      tpu.vector_store %arg11[%c0_183, %c0_184, %c0_185], %710 {strides = array<i32>} : memref<2x8x128xf32, #tpu.memory_space<vmem>>, vector<2x8x128xf32>,
      tpu.wait_dma2 semaphore(%arg8 : memref<!tpu.dma_semaphore, #tpu.memory_space<semaphore_mem>>) src(%arg4 : memref<2x128x512xbf16, #tpu.memory_space<any>>) dst(%arg7 : memref<2x128x512xbf16, #tpu.memory_space<vmem>>)
    } else {
    }
    %c0 = arith.constant 0 : index
    %c0_1 = arith.constant 0 : index
    %3 = vector.load %arg1[%c0, %c0_1] : memref<8x1xi32, #tpu.memory_space<vmem>>, vector<8x1xi32>
    %c0_2 = arith.constant 0 : index
    %c0_3 = arith.constant 0 : index
    %c0_4 = arith.constant 0 : index
    %4 = vector.load %arg7[%c0_2, %c0_3, %c0_4] : memref<2x128x512xbf16, #tpu.memory_space<vmem>>, vector<1x128x512xbf16>
    %5 = vector.shape_cast %4 : vector<1x128x512xbf16> to vector<128x512xbf16>
    %c1 = arith.constant 1 : index
    %c0_5 = arith.constant 0 : index
    %c0_6 = arith.constant 0 : index
    %6 = vector.load %arg7[%c1, %c0_5, %c0_6] : memref<2x128x512xbf16, #tpu.memory_space<vmem>>, vector<1x128x512xbf16>
    %7 = vector.shape_cast %6 : vector<1x128x512xbf16> to vector<128x512xbf16>
    %c8_i32 = arith.constant 8 : i32
    %8 = arith.muli %arg0, %c8_i32 : i32
    %c0_7 = arith.constant 0 : index
    %c0_8 = arith.constant 0 : index
    %c0_9 = arith.constant 0 : index
    %9 = vector.load %arg9[%c0_7, %c0_8, %c0_9] : memref<2x8x128xf32, #tpu.memory_space<vmem>>, vector<1x8x128xf32>
    %10 = vector.shape_cast %9 : vector<1x8x128xf32> to vector<8x128xf32>
    %c1_10 = arith.constant 1 : index
    %c0_11 = arith.constant 0 : index
    %c0_12 = arith.constant 0 : index
    %11 = vector.load %arg9[%c1_10, %c0_11, %c0_12] : memref<2x8x128xf32, #tpu.memory_space<vmem>>, vector<1x8x128xf32>
    %12 = vector.shape_cast %11 : vector<1x8x128xf32> to vector<8x128xf32>
    %c0_13 = arith.constant 0 : index
    %c0_14 = arith.constant 0 : index
    %c0_15 = arith.constant 0 : index
    %13 = vector.load %arg10[%c0_13, %c0_14, %c0_15] : memref<2x8x128xf32, #tpu.memory_space<vmem>>, vector<1x8x128xf32>
    %14 = vector.shape_cast %13 : vector<1x8x128xf32> to vector<8x128xf32>
    %c1_16 = arith.constant 1 : index
    %c0_17 = arith.constant 0 : index
    %c0_18 = arith.constant 0 : index
    %15 = vector.load %arg10[%c1_16, %c0_17, %c0_18] : memref<2x8x128xf32, #tpu.memory_space<vmem>>, vector<1x8x128xf32>
    %16 = vector.shape_cast %15 : vector<1x8x128xf32> to vector<8x128xf32>
    %c0_19 = arith.constant 0 : index
    %c0_20 = arith.constant 0 : index
    %c0_21 = arith.constant 0 : index
    %17 = vector.load %arg11[%c0_19, %c0_20, %c0_21] : memref<2x8x128xf32, #tpu.memory_space<vmem>>, vector<1x8x128xf32>
    %18 = vector.shape_cast %17 : vector<1x8x128xf32> to vector<8x128xf32>
    %c1_22 = arith.constant 1 : index
    %c0_23 = arith.constant 0 : index
    %c0_24 = arith.constant 0 : index
    %19 = vector.load %arg11[%c1_22, %c0_23, %c0_24] : memref<2x8x128xf32, #tpu.memory_space<vmem>>, vector<1x8x128xf32>
    %20 = vector.shape_cast %19 : vector<1x8x128xf32> to vector<8x128xf32>
    %c0_i32_25 = arith.constant 0 : i32
    %21 = arith.addi %8, %c0_i32_25 : i32
    %22 = arith.index_cast %c0_i32_25 : i32 to index
    %c0_26 = arith.constant 0 : index
    %c0_27 = arith.constant 0 : index
    %23 = vector.load %arg2[%22, %c0_26, %c0_27] : memref<8x8x512xbf16, #tpu.memory_space<vmem>>, vector<1x8x512xbf16>
    %24 = vector.shape_cast %23 : vector<1x8x512xbf16> to vector<8x512xbf16>
    %25 = arith.truncf %10 : vector<8x128xf32> to vector<8x128xbf16>
    %cst = arith.constant dense<0.000000e+00> : vector<8x512xf32>
    %26 = tpu.matmul %25, %5, %cst {dimension_numbers = #tpu.dot_dimension_numbers<[1], [0], [0], [1], [0, 0, 1, 1], [], []>} : vector<8x128xbf16>, vector<128x512xbf16>, vector<8x512xf32> -> vector<8x512xf32>
    %27 = arith.extf %24 : vector<8x512xbf16> to vector<8x512xf32>
    %28 = arith.addf %26, %27 : vector<8x512xf32>
    %29 = vector.extract_strided_slice %28 {offsets = [0, 0], sizes = [8, 384], strides = [1, 1]} : vector<8x512xf32> to vector<8x384xf32>
    %30 = arith.negf %29 : vector<8x384xf32>
    %31 = math.exp %30 : vector<8x384xf32>
    %cst_28 = arith.constant 1.000000e+00 : f32
    %32 = vector.broadcast %cst_28 : f32 to vector<8x384xf32>
    %33 = arith.addf %32, %31 : vector<8x384xf32>
    %34 = arith.divf %32, %33 : vector<8x384xf32>
    %35 = vector.extract_strided_slice %34 {offsets = [0, 0], sizes = [8, 128], strides = [1, 1]} : vector<8x384xf32> to vector<8x128xf32>
    %36 = vector.extract_strided_slice %34 {offsets = [0, 128], sizes = [8, 128], strides = [1, 1]} : vector<8x384xf32> to vector<8x128xf32>
    %37 = vector.extract_strided_slice %34 {offsets = [0, 256], sizes = [8, 128], strides = [1, 1]} : vector<8x384xf32> to vector<8x128xf32>
    %38 = vector.extract_strided_slice %28 {offsets = [0, 384], sizes = [8, 128], strides = [1, 1]} : vector<8x512xf32> to vector<8x128xf32>
    %39 = math.tanh %38 : vector<8x128xf32>
    %40 = arith.mulf %36, %14 : vector<8x128xf32>
    %41 = arith.mulf %35, %39 : vector<8x128xf32>
    %42 = arith.addf %40, %41 : vector<8x128xf32>
    %43 = math.tanh %42 : vector<8x128xf32>
    %44 = arith.mulf %37, %43 : vector<8x128xf32>
    %45 = vector.broadcast %21 : i32 to vector<8x1xi32>
    %46 = arith.cmpi slt, %45, %3 : vector<8x1xi32>
    %47 = vector.shape_cast %46 : vector<8x1xi1> to vector<8x1xi1>
    %48 = vector.broadcast %47 : vector<8x1xi1> to vector<8x128xi1>
    %49 = arith.select %48, %44, %10 : vector<8x128xi1>, vector<8x128xf32>
    %50 = vector.shape_cast %46 : vector<8x1xi1> to vector<8x1xi1>
    %51 = vector.broadcast %50 : vector<8x1xi1> to vector<8x128xi1>
    %52 = arith.select %51, %42, %14 : vector<8x128xi1>, vector<8x128xf32>
    %cst_29 = arith.constant 0.000000e+00 : f32
    %53 = vector.shape_cast %46 : vector<8x1xi1> to vector<8x1xi1>
    %54 = vector.broadcast %53 : vector<8x1xi1> to vector<8x128xi1>
    %55 = vector.broadcast %cst_29 : f32 to vector<8x128xf32>
    %56 = arith.select %54, %49, %55 : vector<8x128xi1>, vector<8x128xf32>
    %cst_30 = arith.constant 0.000000e+00 : f32
    %57 = vector.broadcast %cst_30 : f32 to vector<8x128xf32>
    %58 = arith.cmpf oeq, %56, %57 : vector<8x128xf32>
    %cst_31 = arith.constant -1.000000e+09 : f32
    %59 = vector.broadcast %cst_31 : f32 to vector<8x128xf32>
    %60 = arith.select %58, %59, %56 : vector<8x128xi1>, vector<8x128xf32>
    %61 = arith.maximumf %18, %60 : vector<8x128xf32>
    %c7_i32 = arith.constant 7 : i32
    %62 = arith.subi %c7_i32, %c0_i32_25 : i32
    %63 = arith.index_cast %62 : i32 to index
    %c0_32 = arith.constant 0 : index
    %c0_33 = arith.constant 0 : index
    %64 = vector.load %arg3[%63, %c0_32, %c0_33] : memref<8x8x512xbf16, #tpu.memory_space<vmem>>, vector<1x8x512xbf16>
    %65 = vector.shape_cast %64 : vector<1x8x512xbf16> to vector<8x512xbf16>
    %c7_i32_34 = arith.constant 7 : i32
    %66 = arith.subi %c7_i32_34, %21 : i32
    %67 = arith.truncf %12 : vector<8x128xf32> to vector<8x128xbf16>
    %cst_35 = arith.constant dense<0.000000e+00> : vector<8x512xf32>
    %68 = tpu.matmul %67, %7, %cst_35 {dimension_numbers = #tpu.dot_dimension_numbers<[1], [0], [0], [1], [0, 0, 1, 1], [], []>} : vector<8x128xbf16>, vector<128x512xbf16>, vector<8x512xf32> -> vector<8x512xf32>
    %69 = arith.extf %65 : vector<8x512xbf16> to vector<8x512xf32>
    %70 = arith.addf %68, %69 : vector<8x512xf32>
    %71 = vector.extract_strided_slice %70 {offsets = [0, 0], sizes = [8, 384], strides = [1, 1]} : vector<8x512xf32> to vector<8x384xf32>
    %72 = arith.negf %71 : vector<8x384xf32>
    %73 = math.exp %72 : vector<8x384xf32>
    %cst_36 = arith.constant 1.000000e+00 : f32
    %74 = vector.broadcast %cst_36 : f32 to vector<8x384xf32>
    %75 = arith.addf %74, %73 : vector<8x384xf32>
    %76 = arith.divf %74, %75 : vector<8x384xf32>
    %77 = vector.extract_strided_slice %76 {offsets = [0, 0], sizes = [8, 128], strides = [1, 1]} : vector<8x384xf32> to vector<8x128xf32>
    %78 = vector.extract_strided_slice %76 {offsets = [0, 128], sizes = [8, 128], strides = [1, 1]} : vector<8x384xf32> to vector<8x128xf32>
    %79 = vector.extract_strided_slice %76 {offsets = [0, 256], sizes = [8, 128], strides = [1, 1]} : vector<8x384xf32> to vector<8x128xf32>
    %80 = vector.extract_strided_slice %70 {offsets = [0, 384], sizes = [8, 128], strides = [1, 1]} : vector<8x512xf32> to vector<8x128xf32>
    %81 = math.tanh %80 : vector<8x128xf32>
    %82 = arith.mulf %78, %16 : vector<8x128xf32>
    %83 = arith.mulf %77, %81 : vector<8x128xf32>
    %84 = arith.addf %82, %83 : vector<8x128xf32>
    %85 = math.tanh %84 : vector<8x128xf32>
    %86 = arith.mulf %79, %85 : vector<8x128xf32>
    %87 = vector.broadcast %66 : i32 to vector<8x1xi32>
    %88 = arith.cmpi slt, %87, %3 : vector<8x1xi32>
    %89 = vector.shape_cast %88 : vector<8x1xi1> to vector<8x1xi1>
    %90 = vector.broadcast %89 : vector<8x1xi1> to vector<8x128xi1>
    %91 = arith.select %90, %86, %12 : vector<8x128xi1>, vector<8x128xf32>
    %92 = vector.shape_cast %88 : vector<8x1xi1> to vector<8x1xi1>
    %93 = vector.broadcast %92 : vector<8x1xi1> to vector<8x128xi1>
    %94 = arith.select %93, %84, %16 : vector<8x128xi1>, vector<8x128xf32>
    %cst_37 = arith.constant 0.000000e+00 : f32
    %95 = vector.shape_cast %88 : vector<8x1xi1> to vector<8x1xi1>
    %96 = vector.broadcast %95 : vector<8x1xi1> to vector<8x128xi1>
    %97 = vector.broadcast %cst_37 : f32 to vector<8x128xf32>
    %98 = arith.select %96, %91, %97 : vector<8x128xi1>, vector<8x128xf32>
    %cst_38 = arith.constant 0.000000e+00 : f32
    %99 = vector.broadcast %cst_38 : f32 to vector<8x128xf32>
    %100 = arith.cmpf oeq, %98, %99 : vector<8x128xf32>
    %cst_39 = arith.constant -1.000000e+09 : f32
    %101 = vector.broadcast %cst_39 : f32 to vector<8x128xf32>
    %102 = arith.select %100, %101, %98 : vector<8x128xi1>, vector<8x128xf32>
    %103 = arith.maximumf %20, %102 : vector<8x128xf32>
    %c1_i32 = arith.constant 1 : i32
    %104 = arith.addi %8, %c1_i32 : i32
    %105 = arith.index_cast %c1_i32 : i32 to index
    %c0_40 = arith.constant 0 : index
    %c0_41 = arith.constant 0 : index
    %106 = vector.load %arg2[%105, %c0_40, %c0_41] : memref<8x8x512xbf16, #tpu.memory_space<vmem>>, vector<1x8x512xbf16>
    %107 = vector.shape_cast %106 : vector<1x8x512xbf16> to vector<8x512xbf16>
    %108 = arith.truncf %49 : vector<8x128xf32> to vector<8x128xbf16>
    %cst_42 = arith.constant dense<0.000000e+00> : vector<8x512xf32>
    %109 = tpu.matmul %108, %5, %cst_42 {dimension_numbers = #tpu.dot_dimension_numbers<[1], [0], [0], [1], [0, 0, 1, 1], [], []>} : vector<8x128xbf16>, vector<128x512xbf16>, vector<8x512xf32> -> vector<8x512xf32>
    %110 = arith.extf %107 : vector<8x512xbf16> to vector<8x512xf32>
    %111 = arith.addf %109, %110 : vector<8x512xf32>
    %112 = vector.extract_strided_slice %111 {offsets = [0, 0], sizes = [8, 384], strides = [1, 1]} : vector<8x512xf32> to vector<8x384xf32>
    %113 = arith.negf %112 : vector<8x384xf32>
    %114 = math.exp %113 : vector<8x384xf32>
    %cst_43 = arith.constant 1.000000e+00 : f32
    %115 = vector.broadcast %cst_43 : f32 to vector<8x384xf32>
    %116 = arith.addf %115, %114 : vector<8x384xf32>
    %117 = arith.divf %115, %116 : vector<8x384xf32>
    %118 = vector.extract_strided_slice %117 {offsets = [0, 0], sizes = [8, 128], strides = [1, 1]} : vector<8x384xf32> to vector<8x128xf32>
    %119 = vector.extract_strided_slice %117 {offsets = [0, 128], sizes = [8, 128], strides = [1, 1]} : vector<8x384xf32> to vector<8x128xf32>
    %120 = vector.extract_strided_slice %117 {offsets = [0, 256], sizes = [8, 128], strides = [1, 1]} : vector<8x384xf32> to vector<8x128xf32>
    %121 = vector.extract_strided_slice %111 {offsets = [0, 384], sizes = [8, 128], strides = [1, 1]} : vector<8x512xf32> to vector<8x128xf32>
    %122 = math.tanh %121 : vector<8x128xf32>
    %123 = arith.mulf %119, %52 : vector<8x128xf32>
    %124 = arith.mulf %118, %122 : vector<8x128xf32>
    %125 = arith.addf %123, %124 : vector<8x128xf32>
    %126 = math.tanh %125 : vector<8x128xf32>
    %127 = arith.mulf %120, %126 : vector<8x128xf32>
    %128 = vector.broadcast %104 : i32 to vector<8x1xi32>
    %129 = arith.cmpi slt, %128, %3 : vector<8x1xi32>
    %130 = vector.shape_cast %129 : vector<8x1xi1> to vector<8x1xi1>
    %131 = vector.broadcast %130 : vector<8x1xi1> to vector<8x128xi1>
    %132 = arith.select %131, %127, %49 : vector<8x128xi1>, vector<8x128xf32>
    %133 = vector.shape_cast %129 : vector<8x1xi1> to vector<8x1xi1>
    %134 = vector.broadcast %133 : vector<8x1xi1> to vector<8x128xi1>
    %135 = arith.select %134, %125, %52 : vector<8x128xi1>, vector<8x128xf32>
    %cst_44 = arith.constant 0.000000e+00 : f32
    %136 = vector.shape_cast %129 : vector<8x1xi1> to vector<8x1xi1>
    %137 = vector.broadcast %136 : vector<8x1xi1> to vector<8x128xi1>
    %138 = vector.broadcast %cst_44 : f32 to vector<8x128xf32>
    %139 = arith.select %137, %132, %138 : vector<8x128xi1>, vector<8x128xf32>
    %cst_45 = arith.constant 0.000000e+00 : f32
    %140 = vector.broadcast %cst_45 : f32 to vector<8x128xf32>
    %141 = arith.cmpf oeq, %139, %140 : vector<8x128xf32>
    %cst_46 = arith.constant -1.000000e+09 : f32
    %142 = vector.broadcast %cst_46 : f32 to vector<8x128xf32>
    %143 = arith.select %141, %142, %139 : vector<8x128xi1>, vector<8x128xf32>
    %144 = arith.maximumf %61, %143 : vector<8x128xf32>
    %c7_i32_47 = arith.constant 7 : i32
    %145 = arith.subi %c7_i32_47, %c1_i32 : i32
    %146 = arith.index_cast %145 : i32 to index
    %c0_48 = arith.constant 0 : index
    %c0_49 = arith.constant 0 : index
    %147 = vector.load %arg3[%146, %c0_48, %c0_49] : memref<8x8x512xbf16, #tpu.memory_space<vmem>>, vector<1x8x512xbf16>
    %148 = vector.shape_cast %147 : vector<1x8x512xbf16> to vector<8x512xbf16>
    %c7_i32_50 = arith.constant 7 : i32
    %149 = arith.subi %c7_i32_50, %104 : i32
    %150 = arith.truncf %91 : vector<8x128xf32> to vector<8x128xbf16>
    %cst_51 = arith.constant dense<0.000000e+00> : vector<8x512xf32>
    %151 = tpu.matmul %150, %7, %cst_51 {dimension_numbers = #tpu.dot_dimension_numbers<[1], [0], [0], [1], [0, 0, 1, 1], [], []>} : vector<8x128xbf16>, vector<128x512xbf16>, vector<8x512xf32> -> vector<8x512xf32>
    %152 = arith.extf %148 : vector<8x512xbf16> to vector<8x512xf32>
    %153 = arith.addf %151, %152 : vector<8x512xf32>
    %154 = vector.extract_strided_slice %153 {offsets = [0, 0], sizes = [8, 384], strides = [1, 1]} : vector<8x512xf32> to vector<8x384xf32>
    %155 = arith.negf %154 : vector<8x384xf32>
    %156 = math.exp %155 : vector<8x384xf32>
    %cst_52 = arith.constant 1.000000e+00 : f32
    %157 = vector.broadcast %cst_52 : f32 to vector<8x384xf32>
    %158 = arith.addf %157, %156 : vector<8x384xf32>
    %159 = arith.divf %157, %158 : vector<8x384xf32>
    %160 = vector.extract_strided_slice %159 {offsets = [0, 0], sizes = [8, 128], strides = [1, 1]} : vector<8x384xf32> to vector<8x128xf32>
    %161 = vector.extract_strided_slice %159 {offsets = [0, 128], sizes = [8, 128], strides = [1, 1]} : vector<8x384xf32> to vector<8x128xf32>
    %162 = vector.extract_strided_slice %159 {offsets = [0, 256], sizes = [8, 128], strides = [1, 1]} : vector<8x384xf32> to vector<8x128xf32>
    %163 = vector.extract_strided_slice %153 {offsets = [0, 384], sizes = [8, 128], strides = [1, 1]} : vector<8x512xf32> to vector<8x128xf32>
    %164 = math.tanh %163 : vector<8x128xf32>
    %165 = arith.mulf %161, %94 : vector<8x128xf32>
    %166 = arith.mulf %160, %164 : vector<8x128xf32>
    %167 = arith.addf %165, %166 : vector<8x128xf32>
    %168 = math.tanh %167 : vector<8x128xf32>
    %169 = arith.mulf %162, %168 : vector<8x128xf32>
    %170 = vector.broadcast %149 : i32 to vector<8x1xi32>
    %171 = arith.cmpi slt, %170, %3 : vector<8x1xi32>
    %172 = vector.shape_cast %171 : vector<8x1xi1> to vector<8x1xi1>
    %173 = vector.broadcast %172 : vector<8x1xi1> to vector<8x128xi1>
    %174 = arith.select %173, %169, %91 : vector<8x128xi1>, vector<8x128xf32>
    %175 = vector.shape_cast %171 : vector<8x1xi1> to vector<8x1xi1>
    %176 = vector.broadcast %175 : vector<8x1xi1> to vector<8x128xi1>
    %177 = arith.select %176, %167, %94 : vector<8x128xi1>, vector<8x128xf32>
    %cst_53 = arith.constant 0.000000e+00 : f32
    %178 = vector.shape_cast %171 : vector<8x1xi1> to vector<8x1xi1>
    %179 = vector.broadcast %178 : vector<8x1xi1> to vector<8x128xi1>
    %180 = vector.broadcast %cst_53 : f32 to vector<8x128xf32>
    %181 = arith.select %179, %174, %180 : vector<8x128xi1>, vector<8x128xf32>
    %cst_54 = arith.constant 0.000000e+00 : f32
    %182 = vector.broadcast %cst_54 : f32 to vector<8x128xf32>
    %183 = arith.cmpf oeq, %181, %182 : vector<8x128xf32>
    %cst_55 = arith.constant -1.000000e+09 : f32
    %184 = vector.broadcast %cst_55 : f32 to vector<8x128xf32>
    %185 = arith.select %183, %184, %181 : vector<8x128xi1>, vector<8x128xf32>
    %186 = arith.maximumf %103, %185 : vector<8x128xf32>
    %c2_i32 = arith.constant 2 : i32
    %187 = arith.addi %8, %c2_i32 : i32
    %188 = arith.index_cast %c2_i32 : i32 to index
    %c0_56 = arith.constant 0 : index
    %c0_57 = arith.constant 0 : index
    %189 = vector.load %arg2[%188, %c0_56, %c0_57] : memref<8x8x512xbf16, #tpu.memory_space<vmem>>, vector<1x8x512xbf16>
    %190 = vector.shape_cast %189 : vector<1x8x512xbf16> to vector<8x512xbf16>
    %191 = arith.truncf %132 : vector<8x128xf32> to vector<8x128xbf16>
    %cst_58 = arith.constant dense<0.000000e+00> : vector<8x512xf32>
    %192 = tpu.matmul %191, %5, %cst_58 {dimension_numbers = #tpu.dot_dimension_numbers<[1], [0], [0], [1], [0, 0, 1, 1], [], []>} : vector<8x128xbf16>, vector<128x512xbf16>, vector<8x512xf32> -> vector<8x512xf32>
    %193 = arith.extf %190 : vector<8x512xbf16> to vector<8x512xf32>
    %194 = arith.addf %192, %193 : vector<8x512xf32>
    %195 = vector.extract_strided_slice %194 {offsets = [0, 0], sizes = [8, 384], strides = [1, 1]} : vector<8x512xf32> to vector<8x384xf32>
    %196 = arith.negf %195 : vector<8x384xf32>
    %197 = math.exp %196 : vector<8x384xf32>
    %cst_59 = arith.constant 1.000000e+00 : f32
    %198 = vector.broadcast %cst_59 : f32 to vector<8x384xf32>
    %199 = arith.addf %198, %197 : vector<8x384xf32>
    %200 = arith.divf %198, %199 : vector<8x384xf32>
    %201 = vector.extract_strided_slice %200 {offsets = [0, 0], sizes = [8, 128], strides = [1, 1]} : vector<8x384xf32> to vector<8x128xf32>
    %202 = vector.extract_strided_slice %200 {offsets = [0, 128], sizes = [8, 128], strides = [1, 1]} : vector<8x384xf32> to vector<8x128xf32>
    %203 = vector.extract_strided_slice %200 {offsets = [0, 256], sizes = [8, 128], strides = [1, 1]} : vector<8x384xf32> to vector<8x128xf32>
    %204 = vector.extract_strided_slice %194 {offsets = [0, 384], sizes = [8, 128], strides = [1, 1]} : vector<8x512xf32> to vector<8x128xf32>
    %205 = math.tanh %204 : vector<8x128xf32>
    %206 = arith.mulf %202, %135 : vector<8x128xf32>
    %207 = arith.mulf %201, %205 : vector<8x128xf32>
    %208 = arith.addf %206, %207 : vector<8x128xf32>
    %209 = math.tanh %208 : vector<8x128xf32>
    %210 = arith.mulf %203, %209 : vector<8x128xf32>
    %211 = vector.broadcast %187 : i32 to vector<8x1xi32>
    %212 = arith.cmpi slt, %211, %3 : vector<8x1xi32>
    %213 = vector.shape_cast %212 : vector<8x1xi1> to vector<8x1xi1>
    %214 = vector.broadcast %213 : vector<8x1xi1> to vector<8x128xi1>
    %215 = arith.select %214, %210, %132 : vector<8x128xi1>, vector<8x128xf32>
    %216 = vector.shape_cast %212 : vector<8x1xi1> to vector<8x1xi1>
    %217 = vector.broadcast %216 : vector<8x1xi1> to vector<8x128xi1>
    %218 = arith.select %217, %208, %135 : vector<8x128xi1>, vector<8x128xf32>
    %cst_60 = arith.constant 0.000000e+00 : f32
    %219 = vector.shape_cast %212 : vector<8x1xi1> to vector<8x1xi1>
    %220 = vector.broadcast %219 : vector<8x1xi1> to vector<8x128xi1>
    %221 = vector.broadcast %cst_60 : f32 to vector<8x128xf32>
    %222 = arith.select %220, %215, %221 : vector<8x128xi1>, vector<8x128xf32>
    %cst_61 = arith.constant 0.000000e+00 : f32
    %223 = vector.broadcast %cst_61 : f32 to vector<8x128xf32>
    %224 = arith.cmpf oeq, %222, %223 : vector<8x128xf32>
    %cst_62 = arith.constant -1.000000e+09 : f32
    %225 = vector.broadcast %cst_62 : f32 to vector<8x128xf32>
    %226 = arith.select %224, %225, %222 : vector<8x128xi1>, vector<8x128xf32>
    %227 = arith.maximumf %144, %226 : vector<8x128xf32>
    %c7_i32_63 = arith.constant 7 : i32
    %228 = arith.subi %c7_i32_63, %c2_i32 : i32
    %229 = arith.index_cast %228 : i32 to index
    %c0_64 = arith.constant 0 : index
    %c0_65 = arith.constant 0 : index
    %230 = vector.load %arg3[%229, %c0_64, %c0_65] : memref<8x8x512xbf16, #tpu.memory_space<vmem>>, vector<1x8x512xbf16>
    %231 = vector.shape_cast %230 : vector<1x8x512xbf16> to vector<8x512xbf16>
    %c7_i32_66 = arith.constant 7 : i32
    %232 = arith.subi %c7_i32_66, %187 : i32
    %233 = arith.truncf %174 : vector<8x128xf32> to vector<8x128xbf16>
    %cst_67 = arith.constant dense<0.000000e+00> : vector<8x512xf32>
    %234 = tpu.matmul %233, %7, %cst_67 {dimension_numbers = #tpu.dot_dimension_numbers<[1], [0], [0], [1], [0, 0, 1, 1], [], []>} : vector<8x128xbf16>, vector<128x512xbf16>, vector<8x512xf32> -> vector<8x512xf32>
    %235 = arith.extf %231 : vector<8x512xbf16> to vector<8x512xf32>
    %236 = arith.addf %234, %235 : vector<8x512xf32>
    %237 = vector.extract_strided_slice %236 {offsets = [0, 0], sizes = [8, 384], strides = [1, 1]} : vector<8x512xf32> to vector<8x384xf32>
    %238 = arith.negf %237 : vector<8x384xf32>
    %239 = math.exp %238 : vector<8x384xf32>
    %cst_68 = arith.constant 1.000000e+00 : f32
    %240 = vector.broadcast %cst_68 : f32 to vector<8x384xf32>
    %241 = arith.addf %240, %239 : vector<8x384xf32>
    %242 = arith.divf %240, %241 : vector<8x384xf32>
    %243 = vector.extract_strided_slice %242 {offsets = [0, 0], sizes = [8, 128], strides = [1, 1]} : vector<8x384xf32> to vector<8x128xf32>
    %244 = vector.extract_strided_slice %242 {offsets = [0, 128], sizes = [8, 128], strides = [1, 1]} : vector<8x384xf32> to vector<8x128xf32>
    %245 = vector.extract_strided_slice %242 {offsets = [0, 256], sizes = [8, 128], strides = [1, 1]} : vector<8x384xf32> to vector<8x128xf32>
    %246 = vector.extract_strided_slice %236 {offsets = [0, 384], sizes = [8, 128], strides = [1, 1]} : vector<8x512xf32> to vector<8x128xf32>
    %247 = math.tanh %246 : vector<8x128xf32>
    %248 = arith.mulf %244, %177 : vector<8x128xf32>
    %249 = arith.mulf %243, %247 : vector<8x128xf32>
    %250 = arith.addf %248, %249 : vector<8x128xf32>
    %251 = math.tanh %250 : vector<8x128xf32>
    %252 = arith.mulf %245, %251 : vector<8x128xf32>
    %253 = vector.broadcast %232 : i32 to vector<8x1xi32>
    %254 = arith.cmpi slt, %253, %3 : vector<8x1xi32>
    %255 = vector.shape_cast %254 : vector<8x1xi1> to vector<8x1xi1>
    %256 = vector.broadcast %255 : vector<8x1xi1> to vector<8x128xi1>
    %257 = arith.select %256, %252, %174 : vector<8x128xi1>, vector<8x128xf32>
    %258 = vector.shape_cast %254 : vector<8x1xi1> to vector<8x1xi1>
    %259 = vector.broadcast %258 : vector<8x1xi1> to vector<8x128xi1>
    %260 = arith.select %259, %250, %177 : vector<8x128xi1>, vector<8x128xf32>
    %cst_69 = arith.constant 0.000000e+00 : f32
    %261 = vector.shape_cast %254 : vector<8x1xi1> to vector<8x1xi1>
    %262 = vector.broadcast %261 : vector<8x1xi1> to vector<8x128xi1>
    %263 = vector.broadcast %cst_69 : f32 to vector<8x128xf32>
    %264 = arith.select %262, %257, %263 : vector<8x128xi1>, vector<8x128xf32>
    %cst_70 = arith.constant 0.000000e+00 : f32
    %265 = vector.broadcast %cst_70 : f32 to vector<8x128xf32>
    %266 = arith.cmpf oeq, %264, %265 : vector<8x128xf32>
    %cst_71 = arith.constant -1.000000e+09 : f32
    %267 = vector.broadcast %cst_71 : f32 to vector<8x128xf32>
    %268 = arith.select %266, %267, %264 : vector<8x128xi1>, vector<8x128xf32>
    %269 = arith.maximumf %186, %268 : vector<8x128xf32>
    %c3_i32 = arith.constant 3 : i32
    %270 = arith.addi %8, %c3_i32 : i32
    %271 = arith.index_cast %c3_i32 : i32 to index
    %c0_72 = arith.constant 0 : index
    %c0_73 = arith.constant 0 : index
    %272 = vector.load %arg2[%271, %c0_72, %c0_73] : memref<8x8x512xbf16, #tpu.memory_space<vmem>>, vector<1x8x512xbf16>
    %273 = vector.shape_cast %272 : vector<1x8x512xbf16> to vector<8x512xbf16>
    %274 = arith.truncf %215 : vector<8x128xf32> to vector<8x128xbf16>
    %cst_74 = arith.constant dense<0.000000e+00> : vector<8x512xf32>
    %275 = tpu.matmul %274, %5, %cst_74 {dimension_numbers = #tpu.dot_dimension_numbers<[1], [0], [0], [1], [0, 0, 1, 1], [], []>} : vector<8x128xbf16>, vector<128x512xbf16>, vector<8x512xf32> -> vector<8x512xf32>
    %276 = arith.extf %273 : vector<8x512xbf16> to vector<8x512xf32>
    %277 = arith.addf %275, %276 : vector<8x512xf32>
    %278 = vector.extract_strided_slice %277 {offsets = [0, 0], sizes = [8, 384], strides = [1, 1]} : vector<8x512xf32> to vector<8x384xf32>
    %279 = arith.negf %278 : vector<8x384xf32>
    %280 = math.exp %279 : vector<8x384xf32>
    %cst_75 = arith.constant 1.000000e+00 : f32
    %281 = vector.broadcast %cst_75 : f32 to vector<8x384xf32>
    %282 = arith.addf %281, %280 : vector<8x384xf32>
    %283 = arith.divf %281, %282 : vector<8x384xf32>
    %284 = vector.extract_strided_slice %283 {offsets = [0, 0], sizes = [8, 128], strides = [1, 1]} : vector<8x384xf32> to vector<8x128xf32>
    %285 = vector.extract_strided_slice %283 {offsets = [0, 128], sizes = [8, 128], strides = [1, 1]} : vector<8x384xf32> to vector<8x128xf32>
    %286 = vector.extract_strided_slice %283 {offsets = [0, 256], sizes = [8, 128], strides = [1, 1]} : vector<8x384xf32> to vector<8x128xf32>
    %287 = vector.extract_strided_slice %277 {offsets = [0, 384], sizes = [8, 128], strides = [1, 1]} : vector<8x512xf32> to vector<8x128xf32>
    %288 = math.tanh %287 : vector<8x128xf32>
    %289 = arith.mulf %285, %218 : vector<8x128xf32>
    %290 = arith.mulf %284, %288 : vector<8x128xf32>
    %291 = arith.addf %289, %290 : vector<8x128xf32>
    %292 = math.tanh %291 : vector<8x128xf32>
    %293 = arith.mulf %286, %292 : vector<8x128xf32>
    %294 = vector.broadcast %270 : i32 to vector<8x1xi32>
    %295 = arith.cmpi slt, %294, %3 : vector<8x1xi32>
    %296 = vector.shape_cast %295 : vector<8x1xi1> to vector<8x1xi1>
    %297 = vector.broadcast %296 : vector<8x1xi1> to vector<8x128xi1>
    %298 = arith.select %297, %293, %215 : vector<8x128xi1>, vector<8x128xf32>
    %299 = vector.shape_cast %295 : vector<8x1xi1> to vector<8x1xi1>
    %300 = vector.broadcast %299 : vector<8x1xi1> to vector<8x128xi1>
    %301 = arith.select %300, %291, %218 : vector<8x128xi1>, vector<8x128xf32>
    %cst_76 = arith.constant 0.000000e+00 : f32
    %302 = vector.shape_cast %295 : vector<8x1xi1> to vector<8x1xi1>
    %303 = vector.broadcast %302 : vector<8x1xi1> to vector<8x128xi1>
    %304 = vector.broadcast %cst_76 : f32 to vector<8x128xf32>
    %305 = arith.select %303, %298, %304 : vector<8x128xi1>, vector<8x128xf32>
    %cst_77 = arith.constant 0.000000e+00 : f32
    %306 = vector.broadcast %cst_77 : f32 to vector<8x128xf32>
    %307 = arith.cmpf oeq, %305, %306 : vector<8x128xf32>
    %cst_78 = arith.constant -1.000000e+09 : f32
    %308 = vector.broadcast %cst_78 : f32 to vector<8x128xf32>
    %309 = arith.select %307, %308, %305 : vector<8x128xi1>, vector<8x128xf32>
    %310 = arith.maximumf %227, %309 : vector<8x128xf32>
    %c7_i32_79 = arith.constant 7 : i32
    %311 = arith.subi %c7_i32_79, %c3_i32 : i32
    %312 = arith.index_cast %311 : i32 to index
    %c0_80 = arith.constant 0 : index
    %c0_81 = arith.constant 0 : index
    %313 = vector.load %arg3[%312, %c0_80, %c0_81] : memref<8x8x512xbf16, #tpu.memory_space<vmem>>, vector<1x8x512xbf16>
    %314 = vector.shape_cast %313 : vector<1x8x512xbf16> to vector<8x512xbf16>
    %c7_i32_82 = arith.constant 7 : i32
    %315 = arith.subi %c7_i32_82, %270 : i32
    %316 = arith.truncf %257 : vector<8x128xf32> to vector<8x128xbf16>
    %cst_83 = arith.constant dense<0.000000e+00> : vector<8x512xf32>
    %317 = tpu.matmul %316, %7, %cst_83 {dimension_numbers = #tpu.dot_dimension_numbers<[1], [0], [0], [1], [0, 0, 1, 1], [], []>} : vector<8x128xbf16>, vector<128x512xbf16>, vector<8x512xf32> -> vector<8x512xf32>
    %318 = arith.extf %314 : vector<8x512xbf16> to vector<8x512xf32>
    %319 = arith.addf %317, %318 : vector<8x512xf32>
    %320 = vector.extract_strided_slice %319 {offsets = [0, 0], sizes = [8, 384], strides = [1, 1]} : vector<8x512xf32> to vector<8x384xf32>
    %321 = arith.negf %320 : vector<8x384xf32>
    %322 = math.exp %321 : vector<8x384xf32>
    %cst_84 = arith.constant 1.000000e+00 : f32
    %323 = vector.broadcast %cst_84 : f32 to vector<8x384xf32>
    %324 = arith.addf %323, %322 : vector<8x384xf32>
    %325 = arith.divf %323, %324 : vector<8x384xf32>
    %326 = vector.extract_strided_slice %325 {offsets = [0, 0], sizes = [8, 128], strides = [1, 1]} : vector<8x384xf32> to vector<8x128xf32>
    %327 = vector.extract_strided_slice %325 {offsets = [0, 128], sizes = [8, 128], strides = [1, 1]} : vector<8x384xf32> to vector<8x128xf32>
    %328 = vector.extract_strided_slice %325 {offsets = [0, 256], sizes = [8, 128], strides = [1, 1]} : vector<8x384xf32> to vector<8x128xf32>
    %329 = vector.extract_strided_slice %319 {offsets = [0, 384], sizes = [8, 128], strides = [1, 1]} : vector<8x512xf32> to vector<8x128xf32>
    %330 = math.tanh %329 : vector<8x128xf32>
    %331 = arith.mulf %327, %260 : vector<8x128xf32>
    %332 = arith.mulf %326, %330 : vector<8x128xf32>
    %333 = arith.addf %331, %332 : vector<8x128xf32>
    %334 = math.tanh %333 : vector<8x128xf32>
    %335 = arith.mulf %328, %334 : vector<8x128xf32>
    %336 = vector.broadcast %315 : i32 to vector<8x1xi32>
    %337 = arith.cmpi slt, %336, %3 : vector<8x1xi32>
    %338 = vector.shape_cast %337 : vector<8x1xi1> to vector<8x1xi1>
    %339 = vector.broadcast %338 : vector<8x1xi1> to vector<8x128xi1>
    %340 = arith.select %339, %335, %257 : vector<8x128xi1>, vector<8x128xf32>
    %341 = vector.shape_cast %337 : vector<8x1xi1> to vector<8x1xi1>
    %342 = vector.broadcast %341 : vector<8x1xi1> to vector<8x128xi1>
    %343 = arith.select %342, %333, %260 : vector<8x128xi1>, vector<8x128xf32>
    %cst_85 = arith.constant 0.000000e+00 : f32
    %344 = vector.shape_cast %337 : vector<8x1xi1> to vector<8x1xi1>
    %345 = vector.broadcast %344 : vector<8x1xi1> to vector<8x128xi1>
    %346 = vector.broadcast %cst_85 : f32 to vector<8x128xf32>
    %347 = arith.select %345, %340, %346 : vector<8x128xi1>, vector<8x128xf32>
    %cst_86 = arith.constant 0.000000e+00 : f32
    %348 = vector.broadcast %cst_86 : f32 to vector<8x128xf32>
    %349 = arith.cmpf oeq, %347, %348 : vector<8x128xf32>
    %cst_87 = arith.constant -1.000000e+09 : f32
    %350 = vector.broadcast %cst_87 : f32 to vector<8x128xf32>
    %351 = arith.select %349, %350, %347 : vector<8x128xi1>, vector<8x128xf32>
    %352 = arith.maximumf %269, %351 : vector<8x128xf32>
    %c4_i32 = arith.constant 4 : i32
    %353 = arith.addi %8, %c4_i32 : i32
    %354 = arith.index_cast %c4_i32 : i32 to index
    %c0_88 = arith.constant 0 : index
    %c0_89 = arith.constant 0 : index
    %355 = vector.load %arg2[%354, %c0_88, %c0_89] : memref<8x8x512xbf16, #tpu.memory_space<vmem>>, vector<1x8x512xbf16>
    %356 = vector.shape_cast %355 : vector<1x8x512xbf16> to vector<8x512xbf16>
    %357 = arith.truncf %298 : vector<8x128xf32> to vector<8x128xbf16>
    %cst_90 = arith.constant dense<0.000000e+00> : vector<8x512xf32>
    %358 = tpu.matmul %357, %5, %cst_90 {dimension_numbers = #tpu.dot_dimension_numbers<[1], [0], [0], [1], [0, 0, 1, 1], [], []>} : vector<8x128xbf16>, vector<128x512xbf16>, vector<8x512xf32> -> vector<8x512xf32>
    %359 = arith.extf %356 : vector<8x512xbf16> to vector<8x512xf32>
    %360 = arith.addf %358, %359 : vector<8x512xf32>
    %361 = vector.extract_strided_slice %360 {offsets = [0, 0], sizes = [8, 384], strides = [1, 1]} : vector<8x512xf32> to vector<8x384xf32>
    %362 = arith.negf %361 : vector<8x384xf32>
    %363 = math.exp %362 : vector<8x384xf32>
    %cst_91 = arith.constant 1.000000e+00 : f32
    %364 = vector.broadcast %cst_91 : f32 to vector<8x384xf32>
    %365 = arith.addf %364, %363 : vector<8x384xf32>
    %366 = arith.divf %364, %365 : vector<8x384xf32>
    %367 = vector.extract_strided_slice %366 {offsets = [0, 0], sizes = [8, 128], strides = [1, 1]} : vector<8x384xf32> to vector<8x128xf32>
    %368 = vector.extract_strided_slice %366 {offsets = [0, 128], sizes = [8, 128], strides = [1, 1]} : vector<8x384xf32> to vector<8x128xf32>
    %369 = vector.extract_strided_slice %366 {offsets = [0, 256], sizes = [8, 128], strides = [1, 1]} : vector<8x384xf32> to vector<8x128xf32>
    %370 = vector.extract_strided_slice %360 {offsets = [0, 384], sizes = [8, 128], strides = [1, 1]} : vector<8x512xf32> to vector<8x128xf32>
    %371 = math.tanh %370 : vector<8x128xf32>
    %372 = arith.mulf %368, %301 : vector<8x128xf32>
    %373 = arith.mulf %367, %371 : vector<8x128xf32>
    %374 = arith.addf %372, %373 : vector<8x128xf32>
    %375 = math.tanh %374 : vector<8x128xf32>
    %376 = arith.mulf %369, %375 : vector<8x128xf32>
    %377 = vector.broadcast %353 : i32 to vector<8x1xi32>
    %378 = arith.cmpi slt, %377, %3 : vector<8x1xi32>
    %379 = vector.shape_cast %378 : vector<8x1xi1> to vector<8x1xi1>
    %380 = vector.broadcast %379 : vector<8x1xi1> to vector<8x128xi1>
    %381 = arith.select %380, %376, %298 : vector<8x128xi1>, vector<8x128xf32>
    %382 = vector.shape_cast %378 : vector<8x1xi1> to vector<8x1xi1>
    %383 = vector.broadcast %382 : vector<8x1xi1> to vector<8x128xi1>
    %384 = arith.select %383, %374, %301 : vector<8x128xi1>, vector<8x128xf32>
    %cst_92 = arith.constant 0.000000e+00 : f32
    %385 = vector.shape_cast %378 : vector<8x1xi1> to vector<8x1xi1>
    %386 = vector.broadcast %385 : vector<8x1xi1> to vector<8x128xi1>
    %387 = vector.broadcast %cst_92 : f32 to vector<8x128xf32>
    %388 = arith.select %386, %381, %387 : vector<8x128xi1>, vector<8x128xf32>
    %cst_93 = arith.constant 0.000000e+00 : f32
    %389 = vector.broadcast %cst_93 : f32 to vector<8x128xf32>
    %390 = arith.cmpf oeq, %388, %389 : vector<8x128xf32>
    %cst_94 = arith.constant -1.000000e+09 : f32
    %391 = vector.broadcast %cst_94 : f32 to vector<8x128xf32>
    %392 = arith.select %390, %391, %388 : vector<8x128xi1>, vector<8x128xf32>
    %393 = arith.maximumf %310, %392 : vector<8x128xf32>
    %c7_i32_95 = arith.constant 7 : i32
    %394 = arith.subi %c7_i32_95, %c4_i32 : i32
    %395 = arith.index_cast %394 : i32 to index
    %c0_96 = arith.constant 0 : index
    %c0_97 = arith.constant 0 : index
    %396 = vector.load %arg3[%395, %c0_96, %c0_97] : memref<8x8x512xbf16, #tpu.memory_space<vmem>>, vector<1x8x512xbf16>
    %397 = vector.shape_cast %396 : vector<1x8x512xbf16> to vector<8x512xbf16>
    %c7_i32_98 = arith.constant 7 : i32
    %398 = arith.subi %c7_i32_98, %353 : i32
    %399 = arith.truncf %340 : vector<8x128xf32> to vector<8x128xbf16>
    %cst_99 = arith.constant dense<0.000000e+00> : vector<8x512xf32>
    %400 = tpu.matmul %399, %7, %cst_99 {dimension_numbers = #tpu.dot_dimension_numbers<[1], [0], [0], [1], [0, 0, 1, 1], [], []>} : vector<8x128xbf16>, vector<128x512xbf16>, vector<8x512xf32> -> vector<8x512xf32>
    %401 = arith.extf %397 : vector<8x512xbf16> to vector<8x512xf32>
    %402 = arith.addf %400, %401 : vector<8x512xf32>
    %403 = vector.extract_strided_slice %402 {offsets = [0, 0], sizes = [8, 384], strides = [1, 1]} : vector<8x512xf32> to vector<8x384xf32>
    %404 = arith.negf %403 : vector<8x384xf32>
    %405 = math.exp %404 : vector<8x384xf32>
    %cst_100 = arith.constant 1.000000e+00 : f32
    %406 = vector.broadcast %cst_100 : f32 to vector<8x384xf32>
    %407 = arith.addf %406, %405 : vector<8x384xf32>
    %408 = arith.divf %406, %407 : vector<8x384xf32>
    %409 = vector.extract_strided_slice %408 {offsets = [0, 0], sizes = [8, 128], strides = [1, 1]} : vector<8x384xf32> to vector<8x128xf32>
    %410 = vector.extract_strided_slice %408 {offsets = [0, 128], sizes = [8, 128], strides = [1, 1]} : vector<8x384xf32> to vector<8x128xf32>
    %411 = vector.extract_strided_slice %408 {offsets = [0, 256], sizes = [8, 128], strides = [1, 1]} : vector<8x384xf32> to vector<8x128xf32>
    %412 = vector.extract_strided_slice %402 {offsets = [0, 384], sizes = [8, 128], strides = [1, 1]} : vector<8x512xf32> to vector<8x128xf32>
    %413 = math.tanh %412 : vector<8x128xf32>
    %414 = arith.mulf %410, %343 : vector<8x128xf32>
    %415 = arith.mulf %409, %413 : vector<8x128xf32>
    %416 = arith.addf %414, %415 : vector<8x128xf32>
    %417 = math.tanh %416 : vector<8x128xf32>
    %418 = arith.mulf %411, %417 : vector<8x128xf32>
    %419 = vector.broadcast %398 : i32 to vector<8x1xi32>
    %420 = arith.cmpi slt, %419, %3 : vector<8x1xi32>
    %421 = vector.shape_cast %420 : vector<8x1xi1> to vector<8x1xi1>
    %422 = vector.broadcast %421 : vector<8x1xi1> to vector<8x128xi1>
    %423 = arith.select %422, %418, %340 : vector<8x128xi1>, vector<8x128xf32>
    %424 = vector.shape_cast %420 : vector<8x1xi1> to vector<8x1xi1>
    %425 = vector.broadcast %424 : vector<8x1xi1> to vector<8x128xi1>
    %426 = arith.select %425, %416, %343 : vector<8x128xi1>, vector<8x128xf32>
    %cst_101 = arith.constant 0.000000e+00 : f32
    %427 = vector.shape_cast %420 : vector<8x1xi1> to vector<8x1xi1>
    %428 = vector.broadcast %427 : vector<8x1xi1> to vector<8x128xi1>
    %429 = vector.broadcast %cst_101 : f32 to vector<8x128xf32>
    %430 = arith.select %428, %423, %429 : vector<8x128xi1>, vector<8x128xf32>
    %cst_102 = arith.constant 0.000000e+00 : f32
    %431 = vector.broadcast %cst_102 : f32 to vector<8x128xf32>
    %432 = arith.cmpf oeq, %430, %431 : vector<8x128xf32>
    %cst_103 = arith.constant -1.000000e+09 : f32
    %433 = vector.broadcast %cst_103 : f32 to vector<8x128xf32>
    %434 = arith.select %432, %433, %430 : vector<8x128xi1>, vector<8x128xf32>
    %435 = arith.maximumf %352, %434 : vector<8x128xf32>
    %c5_i32 = arith.constant 5 : i32
    %436 = arith.addi %8, %c5_i32 : i32
    %437 = arith.index_cast %c5_i32 : i32 to index
    %c0_104 = arith.constant 0 : index
    %c0_105 = arith.constant 0 : index
    %438 = vector.load %arg2[%437, %c0_104, %c0_105] : memref<8x8x512xbf16, #tpu.memory_space<vmem>>, vector<1x8x512xbf16>
    %439 = vector.shape_cast %438 : vector<1x8x512xbf16> to vector<8x512xbf16>
    %440 = arith.truncf %381 : vector<8x128xf32> to vector<8x128xbf16>
    %cst_106 = arith.constant dense<0.000000e+00> : vector<8x512xf32>
    %441 = tpu.matmul %440, %5, %cst_106 {dimension_numbers = #tpu.dot_dimension_numbers<[1], [0], [0], [1], [0, 0, 1, 1], [], []>} : vector<8x128xbf16>, vector<128x512xbf16>, vector<8x512xf32> -> vector<8x512xf32>
    %442 = arith.extf %439 : vector<8x512xbf16> to vector<8x512xf32>
    %443 = arith.addf %441, %442 : vector<8x512xf32>
    %444 = vector.extract_strided_slice %443 {offsets = [0, 0], sizes = [8, 384], strides = [1, 1]} : vector<8x512xf32> to vector<8x384xf32>
    %445 = arith.negf %444 : vector<8x384xf32>
    %446 = math.exp %445 : vector<8x384xf32>
    %cst_107 = arith.constant 1.000000e+00 : f32
    %447 = vector.broadcast %cst_107 : f32 to vector<8x384xf32>
    %448 = arith.addf %447, %446 : vector<8x384xf32>
    %449 = arith.divf %447, %448 : vector<8x384xf32>
    %450 = vector.extract_strided_slice %449 {offsets = [0, 0], sizes = [8, 128], strides = [1, 1]} : vector<8x384xf32> to vector<8x128xf32>
    %451 = vector.extract_strided_slice %449 {offsets = [0, 128], sizes = [8, 128], strides = [1, 1]} : vector<8x384xf32> to vector<8x128xf32>
    %452 = vector.extract_strided_slice %449 {offsets = [0, 256], sizes = [8, 128], strides = [1, 1]} : vector<8x384xf32> to vector<8x128xf32>
    %453 = vector.extract_strided_slice %443 {offsets = [0, 384], sizes = [8, 128], strides = [1, 1]} : vector<8x512xf32> to vector<8x128xf32>
    %454 = math.tanh %453 : vector<8x128xf32>
    %455 = arith.mulf %451, %384 : vector<8x128xf32>
    %456 = arith.mulf %450, %454 : vector<8x128xf32>
    %457 = arith.addf %455, %456 : vector<8x128xf32>
    %458 = math.tanh %457 : vector<8x128xf32>
    %459 = arith.mulf %452, %458 : vector<8x128xf32>
    %460 = vector.broadcast %436 : i32 to vector<8x1xi32>
    %461 = arith.cmpi slt, %460, %3 : vector<8x1xi32>
    %462 = vector.shape_cast %461 : vector<8x1xi1> to vector<8x1xi1>
    %463 = vector.broadcast %462 : vector<8x1xi1> to vector<8x128xi1>
    %464 = arith.select %463, %459, %381 : vector<8x128xi1>, vector<8x128xf32>
    %465 = vector.shape_cast %461 : vector<8x1xi1> to vector<8x1xi1>
    %466 = vector.broadcast %465 : vector<8x1xi1> to vector<8x128xi1>
    %467 = arith.select %466, %457, %384 : vector<8x128xi1>, vector<8x128xf32>
    %cst_108 = arith.constant 0.000000e+00 : f32
    %468 = vector.shape_cast %461 : vector<8x1xi1> to vector<8x1xi1>
    %469 = vector.broadcast %468 : vector<8x1xi1> to vector<8x128xi1>
    %470 = vector.broadcast %cst_108 : f32 to vector<8x128xf32>
    %471 = arith.select %469, %464, %470 : vector<8x128xi1>, vector<8x128xf32>
    %cst_109 = arith.constant 0.000000e+00 : f32
    %472 = vector.broadcast %cst_109 : f32 to vector<8x128xf32>
    %473 = arith.cmpf oeq, %471, %472 : vector<8x128xf32>
    %cst_110 = arith.constant -1.000000e+09 : f32
    %474 = vector.broadcast %cst_110 : f32 to vector<8x128xf32>
    %475 = arith.select %473, %474, %471 : vector<8x128xi1>, vector<8x128xf32>
    %476 = arith.maximumf %393, %475 : vector<8x128xf32>
    %c7_i32_111 = arith.constant 7 : i32
    %477 = arith.subi %c7_i32_111, %c5_i32 : i32
    %478 = arith.index_cast %477 : i32 to index
    %c0_112 = arith.constant 0 : index
    %c0_113 = arith.constant 0 : index
    %479 = vector.load %arg3[%478, %c0_112, %c0_113] : memref<8x8x512xbf16, #tpu.memory_space<vmem>>, vector<1x8x512xbf16>
    %480 = vector.shape_cast %479 : vector<1x8x512xbf16> to vector<8x512xbf16>
    %c7_i32_114 = arith.constant 7 : i32
    %481 = arith.subi %c7_i32_114, %436 : i32
    %482 = arith.truncf %423 : vector<8x128xf32> to vector<8x128xbf16>
    %cst_115 = arith.constant dense<0.000000e+00> : vector<8x512xf32>
    %483 = tpu.matmul %482, %7, %cst_115 {dimension_numbers = #tpu.dot_dimension_numbers<[1], [0], [0], [1], [0, 0, 1, 1], [], []>} : vector<8x128xbf16>, vector<128x512xbf16>, vector<8x512xf32> -> vector<8x512xf32>
    %484 = arith.extf %480 : vector<8x512xbf16> to vector<8x512xf32>
    %485 = arith.addf %483, %484 : vector<8x512xf32>
    %486 = vector.extract_strided_slice %485 {offsets = [0, 0], sizes = [8, 384], strides = [1, 1]} : vector<8x512xf32> to vector<8x384xf32>
    %487 = arith.negf %486 : vector<8x384xf32>
    %488 = math.exp %487 : vector<8x384xf32>
    %cst_116 = arith.constant 1.000000e+00 : f32
    %489 = vector.broadcast %cst_116 : f32 to vector<8x384xf32>
    %490 = arith.addf %489, %488 : vector<8x384xf32>
    %491 = arith.divf %489, %490 : vector<8x384xf32>
    %492 = vector.extract_strided_slice %491 {offsets = [0, 0], sizes = [8, 128], strides = [1, 1]} : vector<8x384xf32> to vector<8x128xf32>
    %493 = vector.extract_strided_slice %491 {offsets = [0, 128], sizes = [8, 128], strides = [1, 1]} : vector<8x384xf32> to vector<8x128xf32>
    %494 = vector.extract_strided_slice %491 {offsets = [0, 256], sizes = [8, 128], strides = [1, 1]} : vector<8x384xf32> to vector<8x128xf32>
    %495 = vector.extract_strided_slice %485 {offsets = [0, 384], sizes = [8, 128], strides = [1, 1]} : vector<8x512xf32> to vector<8x128xf32>
    %496 = math.tanh %495 : vector<8x128xf32>
    %497 = arith.mulf %493, %426 : vector<8x128xf32>
    %498 = arith.mulf %492, %496 : vector<8x128xf32>
    %499 = arith.addf %497, %498 : vector<8x128xf32>
    %500 = math.tanh %499 : vector<8x128xf32>
    %501 = arith.mulf %494, %500 : vector<8x128xf32>
    %502 = vector.broadcast %481 : i32 to vector<8x1xi32>
    %503 = arith.cmpi slt, %502, %3 : vector<8x1xi32>
    %504 = vector.shape_cast %503 : vector<8x1xi1> to vector<8x1xi1>
    %505 = vector.broadcast %504 : vector<8x1xi1> to vector<8x128xi1>
    %506 = arith.select %505, %501, %423 : vector<8x128xi1>, vector<8x128xf32>
    %507 = vector.shape_cast %503 : vector<8x1xi1> to vector<8x1xi1>
    %508 = vector.broadcast %507 : vector<8x1xi1> to vector<8x128xi1>
    %509 = arith.select %508, %499, %426 : vector<8x128xi1>, vector<8x128xf32>
    %cst_117 = arith.constant 0.000000e+00 : f32
    %510 = vector.shape_cast %503 : vector<8x1xi1> to vector<8x1xi1>
    %511 = vector.broadcast %510 : vector<8x1xi1> to vector<8x128xi1>
    %512 = vector.broadcast %cst_117 : f32 to vector<8x128xf32>
    %513 = arith.select %511, %506, %512 : vector<8x128xi1>, vector<8x128xf32>
    %cst_118 = arith.constant 0.000000e+00 : f32
    %514 = vector.broadcast %cst_118 : f32 to vector<8x128xf32>
    %515 = arith.cmpf oeq, %513, %514 : vector<8x128xf32>
    %cst_119 = arith.constant -1.000000e+09 : f32
    %516 = vector.broadcast %cst_119 : f32 to vector<8x128xf32>
    %517 = arith.select %515, %516, %513 : vector<8x128xi1>, vector<8x128xf32>
    %518 = arith.maximumf %435, %517 : vector<8x128xf32>
    %c6_i32 = arith.constant 6 : i32
    %519 = arith.addi %8, %c6_i32 : i32
    %520 = arith.index_cast %c6_i32 : i32 to index
    %c0_120 = arith.constant 0 : index
    %c0_121 = arith.constant 0 : index
    %521 = vector.load %arg2[%520, %c0_120, %c0_121] : memref<8x8x512xbf16, #tpu.memory_space<vmem>>, vector<1x8x512xbf16>
    %522 = vector.shape_cast %521 : vector<1x8x512xbf16> to vector<8x512xbf16>
    %523 = arith.truncf %464 : vector<8x128xf32> to vector<8x128xbf16>
    %cst_122 = arith.constant dense<0.000000e+00> : vector<8x512xf32>
    %524 = tpu.matmul %523, %5, %cst_122 {dimension_numbers = #tpu.dot_dimension_numbers<[1], [0], [0], [1], [0, 0, 1, 1], [], []>} : vector<8x128xbf16>, vector<128x512xbf16>, vector<8x512xf32> -> vector<8x512xf32>
    %525 = arith.extf %522 : vector<8x512xbf16> to vector<8x512xf32>
    %526 = arith.addf %524, %525 : vector<8x512xf32>
    %527 = vector.extract_strided_slice %526 {offsets = [0, 0], sizes = [8, 384], strides = [1, 1]} : vector<8x512xf32> to vector<8x384xf32>
    %528 = arith.negf %527 : vector<8x384xf32>
    %529 = math.exp %528 : vector<8x384xf32>
    %cst_123 = arith.constant 1.000000e+00 : f32
    %530 = vector.broadcast %cst_123 : f32 to vector<8x384xf32>
    %531 = arith.addf %530, %529 : vector<8x384xf32>
    %532 = arith.divf %530, %531 : vector<8x384xf32>
    %533 = vector.extract_strided_slice %532 {offsets = [0, 0], sizes = [8, 128], strides = [1, 1]} : vector<8x384xf32> to vector<8x128xf32>
    %534 = vector.extract_strided_slice %532 {offsets = [0, 128], sizes = [8, 128], strides = [1, 1]} : vector<8x384xf32> to vector<8x128xf32>
    %535 = vector.extract_strided_slice %532 {offsets = [0, 256], sizes = [8, 128], strides = [1, 1]} : vector<8x384xf32> to vector<8x128xf32>
    %536 = vector.extract_strided_slice %526 {offsets = [0, 384], sizes = [8, 128], strides = [1, 1]} : vector<8x512xf32> to vector<8x128xf32>
    %537 = math.tanh %536 : vector<8x128xf32>
    %538 = arith.mulf %534, %467 : vector<8x128xf32>
    %539 = arith.mulf %533, %537 : vector<8x128xf32>
    %540 = arith.addf %538, %539 : vector<8x128xf32>
    %541 = math.tanh %540 : vector<8x128xf32>
    %542 = arith.mulf %535, %541 : vector<8x128xf32>
    %543 = vector.broadcast %519 : i32 to vector<8x1xi32>
    %544 = arith.cmpi slt, %543, %3 : vector<8x1xi32>
    %545 = vector.shape_cast %544 : vector<8x1xi1> to vector<8x1xi1>
    %546 = vector.broadcast %545 : vector<8x1xi1> to vector<8x128xi1>
    %547 = arith.select %546, %542, %464 : vector<8x128xi1>, vector<8x128xf32>
    %548 = vector.shape_cast %544 : vector<8x1xi1> to vector<8x1xi1>
    %549 = vector.broadcast %548 : vector<8x1xi1> to vector<8x128xi1>
    %550 = arith.select %549, %540, %467 : vector<8x128xi1>, vector<8x128xf32>
    %cst_124 = arith.constant 0.000000e+00 : f32
    %551 = vector.shape_cast %544 : vector<8x1xi1> to vector<8x1xi1>
    %552 = vector.broadcast %551 : vector<8x1xi1> to vector<8x128xi1>
    %553 = vector.broadcast %cst_124 : f32 to vector<8x128xf32>
    %554 = arith.select %552, %547, %553 : vector<8x128xi1>, vector<8x128xf32>
    %cst_125 = arith.constant 0.000000e+00 : f32
    %555 = vector.broadcast %cst_125 : f32 to vector<8x128xf32>
    %556 = arith.cmpf oeq, %554, %555 : vector<8x128xf32>
    %cst_126 = arith.constant -1.000000e+09 : f32
    %557 = vector.broadcast %cst_126 : f32 to vector<8x128xf32>
    %558 = arith.select %556, %557, %554 : vector<8x128xi1>, vector<8x128xf32>
    %559 = arith.maximumf %476, %558 : vector<8x128xf32>
    %c7_i32_127 = arith.constant 7 : i32
    %560 = arith.subi %c7_i32_127, %c6_i32 : i32
    %561 = arith.index_cast %560 : i32 to index
    %c0_128 = arith.constant 0 : index
    %c0_129 = arith.constant 0 : index
    %562 = vector.load %arg3[%561, %c0_128, %c0_129] : memref<8x8x512xbf16, #tpu.memory_space<vmem>>, vector<1x8x512xbf16>
    %563 = vector.shape_cast %562 : vector<1x8x512xbf16> to vector<8x512xbf16>
    %c7_i32_130 = arith.constant 7 : i32
    %564 = arith.subi %c7_i32_130, %519 : i32
    %565 = arith.truncf %506 : vector<8x128xf32> to vector<8x128xbf16>
    %cst_131 = arith.constant dense<0.000000e+00> : vector<8x512xf32>
    %566 = tpu.matmul %565, %7, %cst_131 {dimension_numbers = #tpu.dot_dimension_numbers<[1], [0], [0], [1], [0, 0, 1, 1], [], []>} : vector<8x128xbf16>, vector<128x512xbf16>, vector<8x512xf32> -> vector<8x512xf32>
    %567 = arith.extf %563 : vector<8x512xbf16> to vector<8x512xf32>
    %568 = arith.addf %566, %567 : vector<8x512xf32>
    %569 = vector.extract_strided_slice %568 {offsets = [0, 0], sizes = [8, 384], strides = [1, 1]} : vector<8x512xf32> to vector<8x384xf32>
    %570 = arith.negf %569 : vector<8x384xf32>
    %571 = math.exp %570 : vector<8x384xf32>
    %cst_132 = arith.constant 1.000000e+00 : f32
    %572 = vector.broadcast %cst_132 : f32 to vector<8x384xf32>
    %573 = arith.addf %572, %571 : vector<8x384xf32>
    %574 = arith.divf %572, %573 : vector<8x384xf32>
    %575 = vector.extract_strided_slice %574 {offsets = [0, 0], sizes = [8, 128], strides = [1, 1]} : vector<8x384xf32> to vector<8x128xf32>
    %576 = vector.extract_strided_slice %574 {offsets = [0, 128], sizes = [8, 128], strides = [1, 1]} : vector<8x384xf32> to vector<8x128xf32>
    %577 = vector.extract_strided_slice %574 {offsets = [0, 256], sizes = [8, 128], strides = [1, 1]} : vector<8x384xf32> to vector<8x128xf32>
    %578 = vector.extract_strided_slice %568 {offsets = [0, 384], sizes = [8, 128], strides = [1, 1]} : vector<8x512xf32> to vector<8x128xf32>
    %579 = math.tanh %578 : vector<8x128xf32>
    %580 = arith.mulf %576, %509 : vector<8x128xf32>
    %581 = arith.mulf %575, %579 : vector<8x128xf32>
    %582 = arith.addf %580, %581 : vector<8x128xf32>
    %583 = math.tanh %582 : vector<8x128xf32>
    %584 = arith.mulf %577, %583 : vector<8x128xf32>
    %585 = vector.broadcast %564 : i32 to vector<8x1xi32>
    %586 = arith.cmpi slt, %585, %3 : vector<8x1xi32>
    %587 = vector.shape_cast %586 : vector<8x1xi1> to vector<8x1xi1>
    %588 = vector.broadcast %587 : vector<8x1xi1> to vector<8x128xi1>
    %589 = arith.select %588, %584, %506 : vector<8x128xi1>, vector<8x128xf32>
    %590 = vector.shape_cast %586 : vector<8x1xi1> to vector<8x1xi1>
    %591 = vector.broadcast %590 : vector<8x1xi1> to vector<8x128xi1>
    %592 = arith.select %591, %582, %509 : vector<8x128xi1>, vector<8x128xf32>
    %cst_133 = arith.constant 0.000000e+00 : f32
    %593 = vector.shape_cast %586 : vector<8x1xi1> to vector<8x1xi1>
    %594 = vector.broadcast %593 : vector<8x1xi1> to vector<8x128xi1>
    %595 = vector.broadcast %cst_133 : f32 to vector<8x128xf32>
    %596 = arith.select %594, %589, %595 : vector<8x128xi1>, vector<8x128xf32>
    %cst_134 = arith.constant 0.000000e+00 : f32
    %597 = vector.broadcast %cst_134 : f32 to vector<8x128xf32>
    %598 = arith.cmpf oeq, %596, %597 : vector<8x128xf32>
    %cst_135 = arith.constant -1.000000e+09 : f32
    %599 = vector.broadcast %cst_135 : f32 to vector<8x128xf32>
    %600 = arith.select %598, %599, %596 : vector<8x128xi1>, vector<8x128xf32>
    %601 = arith.maximumf %518, %600 : vector<8x128xf32>
    %c7_i32_136 = arith.constant 7 : i32
    %602 = arith.addi %8, %c7_i32_136 : i32
    %603 = arith.index_cast %c7_i32_136 : i32 to index
    %c0_137 = arith.constant 0 : index
    %c0_138 = arith.constant 0 : index
    %604 = vector.load %arg2[%603, %c0_137, %c0_138] : memref<8x8x512xbf16, #tpu.memory_space<vmem>>, vector<1x8x512xbf16>
    %605 = vector.shape_cast %604 : vector<1x8x512xbf16> to vector<8x512xbf16>
    %606 = arith.truncf %547 : vector<8x128xf32> to vector<8x128xbf16>
    %cst_139 = arith.constant dense<0.000000e+00> : vector<8x512xf32>
    %607 = tpu.matmul %606, %5, %cst_139 {dimension_numbers = #tpu.dot_dimension_numbers<[1], [0], [0], [1], [0, 0, 1, 1], [], []>} : vector<8x128xbf16>, vector<128x512xbf16>, vector<8x512xf32> -> vector<8x512xf32>
    %608 = arith.extf %605 : vector<8x512xbf16> to vector<8x512xf32>
    %609 = arith.addf %607, %608 : vector<8x512xf32>
    %610 = vector.extract_strided_slice %609 {offsets = [0, 0], sizes = [8, 384], strides = [1, 1]} : vector<8x512xf32> to vector<8x384xf32>
    %611 = arith.negf %610 : vector<8x384xf32>
    %612 = math.exp %611 : vector<8x384xf32>
    %cst_140 = arith.constant 1.000000e+00 : f32
    %613 = vector.broadcast %cst_140 : f32 to vector<8x384xf32>
    %614 = arith.addf %613, %612 : vector<8x384xf32>
    %615 = arith.divf %613, %614 : vector<8x384xf32>
    %616 = vector.extract_strided_slice %615 {offsets = [0, 0], sizes = [8, 128], strides = [1, 1]} : vector<8x384xf32> to vector<8x128xf32>
    %617 = vector.extract_strided_slice %615 {offsets = [0, 128], sizes = [8, 128], strides = [1, 1]} : vector<8x384xf32> to vector<8x128xf32>
    %618 = vector.extract_strided_slice %615 {offsets = [0, 256], sizes = [8, 128], strides = [1, 1]} : vector<8x384xf32> to vector<8x128xf32>
    %619 = vector.extract_strided_slice %609 {offsets = [0, 384], sizes = [8, 128], strides = [1, 1]} : vector<8x512xf32> to vector<8x128xf32>
    %620 = math.tanh %619 : vector<8x128xf32>
    %621 = arith.mulf %617, %550 : vector<8x128xf32>
    %622 = arith.mulf %616, %620 : vector<8x128xf32>
    %623 = arith.addf %621, %622 : vector<8x128xf32>
    %624 = math.tanh %623 : vector<8x128xf32>
    %625 = arith.mulf %618, %624 : vector<8x128xf32>
    %626 = vector.broadcast %602 : i32 to vector<8x1xi32>
    %627 = arith.cmpi slt, %626, %3 : vector<8x1xi32>
    %628 = vector.shape_cast %627 : vector<8x1xi1> to vector<8x1xi1>
    %629 = vector.broadcast %628 : vector<8x1xi1> to vector<8x128xi1>
    %630 = arith.select %629, %625, %547 : vector<8x128xi1>, vector<8x128xf32>
    %631 = vector.shape_cast %627 : vector<8x1xi1> to vector<8x1xi1>
    %632 = vector.broadcast %631 : vector<8x1xi1> to vector<8x128xi1>
    %633 = arith.select %632, %623, %550 : vector<8x128xi1>, vector<8x128xf32>
    %cst_141 = arith.constant 0.000000e+00 : f32
    %634 = vector.shape_cast %627 : vector<8x1xi1> to vector<8x1xi1>
    %635 = vector.broadcast %634 : vector<8x1xi1> to vector<8x128xi1>
    %636 = vector.broadcast %cst_141 : f32 to vector<8x128xf32>
    %637 = arith.select %635, %630, %636 : vector<8x128xi1>, vector<8x128xf32>
    %cst_142 = arith.constant 0.000000e+00 : f32
    %638 = vector.broadcast %cst_142 : f32 to vector<8x128xf32>
    %639 = arith.cmpf oeq, %637, %638 : vector<8x128xf32>
    %cst_143 = arith.constant -1.000000e+09 : f32
    %640 = vector.broadcast %cst_143 : f32 to vector<8x128xf32>
    %641 = arith.select %639, %640, %637 : vector<8x128xi1>, vector<8x128xf32>
    %642 = arith.maximumf %559, %641 : vector<8x128xf32>
    %c7_i32_144 = arith.constant 7 : i32
    %643 = arith.subi %c7_i32_144, %c7_i32_136 : i32
    %644 = arith.index_cast %643 : i32 to index
    %c0_145 = arith.constant 0 : index
    %c0_146 = arith.constant 0 : index
    %645 = vector.load %arg3[%644, %c0_145, %c0_146] : memref<8x8x512xbf16, #tpu.memory_space<vmem>>, vector<1x8x512xbf16>
    %646 = vector.shape_cast %645 : vector<1x8x512xbf16> to vector<8x512xbf16>
    %c7_i32_147 = arith.constant 7 : i32
    %647 = arith.subi %c7_i32_147, %602 : i32
    %648 = arith.truncf %589 : vector<8x128xf32> to vector<8x128xbf16>
    %cst_148 = arith.constant dense<0.000000e+00> : vector<8x512xf32>
    %649 = tpu.matmul %648, %7, %cst_148 {dimension_numbers = #tpu.dot_dimension_numbers<[1], [0], [0], [1], [0, 0, 1, 1], [], []>} : vector<8x128xbf16>, vector<128x512xbf16>, vector<8x512xf32> -> vector<8x512xf32>
    %650 = arith.extf %646 : vector<8x512xbf16> to vector<8x512xf32>
    %651 = arith.addf %649, %650 : vector<8x512xf32>
    %652 = vector.extract_strided_slice %651 {offsets = [0, 0], sizes = [8, 384], strides = [1, 1]} : vector<8x512xf32> to vector<8x384xf32>
    %653 = arith.negf %652 : vector<8x384xf32>
    %654 = math.exp %653 : vector<8x384xf32>
    %cst_149 = arith.constant 1.000000e+00 : f32
    %655 = vector.broadcast %cst_149 : f32 to vector<8x384xf32>
    %656 = arith.addf %655, %654 : vector<8x384xf32>
    %657 = arith.divf %655, %656 : vector<8x384xf32>
    %658 = vector.extract_strided_slice %657 {offsets = [0, 0], sizes = [8, 128], strides = [1, 1]} : vector<8x384xf32> to vector<8x128xf32>
    %659 = vector.extract_strided_slice %657 {offsets = [0, 128], sizes = [8, 128], strides = [1, 1]} : vector<8x384xf32> to vector<8x128xf32>
    %660 = vector.extract_strided_slice %657 {offsets = [0, 256], sizes = [8, 128], strides = [1, 1]} : vector<8x384xf32> to vector<8x128xf32>
    %661 = vector.extract_strided_slice %651 {offsets = [0, 384], sizes = [8, 128], strides = [1, 1]} : vector<8x512xf32> to vector<8x128xf32>
    %662 = math.tanh %661 : vector<8x128xf32>
    %663 = arith.mulf %659, %592 : vector<8x128xf32>
    %664 = arith.mulf %658, %662 : vector<8x128xf32>
    %665 = arith.addf %663, %664 : vector<8x128xf32>
    %666 = math.tanh %665 : vector<8x128xf32>
    %667 = arith.mulf %660, %666 : vector<8x128xf32>
    %668 = vector.broadcast %647 : i32 to vector<8x1xi32>
    %669 = arith.cmpi slt, %668, %3 : vector<8x1xi32>
    %670 = vector.shape_cast %669 : vector<8x1xi1> to vector<8x1xi1>
    %671 = vector.broadcast %670 : vector<8x1xi1> to vector<8x128xi1>
    %672 = arith.select %671, %667, %589 : vector<8x128xi1>, vector<8x128xf32>
    %673 = vector.shape_cast %669 : vector<8x1xi1> to vector<8x1xi1>
    %674 = vector.broadcast %673 : vector<8x1xi1> to vector<8x128xi1>
    %675 = arith.select %674, %665, %592 : vector<8x128xi1>, vector<8x128xf32>
    %cst_150 = arith.constant 0.000000e+00 : f32
    %676 = vector.shape_cast %669 : vector<8x1xi1> to vector<8x1xi1>
    %677 = vector.broadcast %676 : vector<8x1xi1> to vector<8x128xi1>
    %678 = vector.broadcast %cst_150 : f32 to vector<8x128xf32>
    %679 = arith.select %677, %672, %678 : vector<8x128xi1>, vector<8x128xf32>
    %cst_151 = arith.constant 0.000000e+00 : f32
    %680 = vector.broadcast %cst_151 : f32 to vector<8x128xf32>
    %681 = arith.cmpf oeq, %679, %680 : vector<8x128xf32>
    %cst_152 = arith.constant -1.000000e+09 : f32
    %682 = vector.broadcast %cst_152 : f32 to vector<8x128xf32>
    %683 = arith.select %681, %682, %679 : vector<8x128xi1>, vector<8x128xf32>
    %684 = arith.maximumf %601, %683 : vector<8x128xf32>
    %c8_i32_153 = arith.constant 8 : i32
    %c0_154 = arith.constant 0 : index
    %c0_155 = arith.constant 0 : index
    %c0_156 = arith.constant 0 : index
    %685 = vector.load %arg9[%c0_154, %c0_155, %c0_156] : memref<2x8x128xf32, #tpu.memory_space<vmem>>, vector<1x8x128xf32>
    %686 = vector.shape_cast %685 : vector<1x8x128xf32> to vector<8x128xf32>
    %687 = vector.shape_cast %630 : vector<8x128xf32> to vector<1x8x128xf32>
    tpu.vector_store %arg9[%c0_154, %c0_155, %c0_156], %687 {strides = array<i32>} : memref<2x8x128xf32, #tpu.memory_space<vmem>>, vector<1x8x128xf32>,
    %c0_157 = arith.constant 0 : index
    %c0_158 = arith.constant 0 : index
    %c0_159 = arith.constant 0 : index
    %688 = vector.load %arg10[%c0_157, %c0_158, %c0_159] : memref<2x8x128xf32, #tpu.memory_space<vmem>>, vector<1x8x128xf32>
    %689 = vector.shape_cast %688 : vector<1x8x128xf32> to vector<8x128xf32>
    %690 = vector.shape_cast %633 : vector<8x128xf32> to vector<1x8x128xf32>
    tpu.vector_store %arg10[%c0_157, %c0_158, %c0_159], %690 {strides = array<i32>} : memref<2x8x128xf32, #tpu.memory_space<vmem>>, vector<1x8x128xf32>,
    %c0_160 = arith.constant 0 : index
    %c0_161 = arith.constant 0 : index
    %c0_162 = arith.constant 0 : index
    %691 = vector.load %arg11[%c0_160, %c0_161, %c0_162] : memref<2x8x128xf32, #tpu.memory_space<vmem>>, vector<1x8x128xf32>
    %692 = vector.shape_cast %691 : vector<1x8x128xf32> to vector<8x128xf32>
    %693 = vector.shape_cast %642 : vector<8x128xf32> to vector<1x8x128xf32>
    tpu.vector_store %arg11[%c0_160, %c0_161, %c0_162], %693 {strides = array<i32>} : memref<2x8x128xf32, #tpu.memory_space<vmem>>, vector<1x8x128xf32>,
    %c1_163 = arith.constant 1 : index
    %c0_164 = arith.constant 0 : index
    %c0_165 = arith.constant 0 : index
    %694 = vector.load %arg9[%c1_163, %c0_164, %c0_165] : memref<2x8x128xf32, #tpu.memory_space<vmem>>, vector<1x8x128xf32>
    %695 = vector.shape_cast %694 : vector<1x8x128xf32> to vector<8x128xf32>
    %696 = vector.shape_cast %672 : vector<8x128xf32> to vector<1x8x128xf32>
    tpu.vector_store %arg9[%c1_163, %c0_164, %c0_165], %696 {strides = array<i32>} : memref<2x8x128xf32, #tpu.memory_space<vmem>>, vector<1x8x128xf32>,
    %c1_166 = arith.constant 1 : index
    %c0_167 = arith.constant 0 : index
    %c0_168 = arith.constant 0 : index
    %697 = vector.load %arg10[%c1_166, %c0_167, %c0_168] : memref<2x8x128xf32, #tpu.memory_space<vmem>>, vector<1x8x128xf32>
    %698 = vector.shape_cast %697 : vector<1x8x128xf32> to vector<8x128xf32>
    %699 = vector.shape_cast %675 : vector<8x128xf32> to vector<1x8x128xf32>
    tpu.vector_store %arg10[%c1_166, %c0_167, %c0_168], %699 {strides = array<i32>} : memref<2x8x128xf32, #tpu.memory_space<vmem>>, vector<1x8x128xf32>,
    %c1_169 = arith.constant 1 : index
    %c0_170 = arith.constant 0 : index
    %c0_171 = arith.constant 0 : index
    %700 = vector.load %arg11[%c1_169, %c0_170, %c0_171] : memref<2x8x128xf32, #tpu.memory_space<vmem>>, vector<1x8x128xf32>
    %701 = vector.shape_cast %700 : vector<1x8x128xf32> to vector<8x128xf32>
    %702 = vector.shape_cast %684 : vector<8x128xf32> to vector<1x8x128xf32>
    tpu.vector_store %arg11[%c1_169, %c0_170, %c0_171], %702 {strides = array<i32>} : memref<2x8x128xf32, #tpu.memory_space<vmem>>, vector<1x8x128xf32>,
    %c0_i32_172 = arith.constant 0 : i32
    %703 = arith.cmpi eq, %arg0, %c0_i32_172 : i32
    %704 = arith.extui %703 : i1 to i32
    %c0_i32_173 = arith.constant 0 : i32
    %705 = arith.cmpi ne, %704, %c0_i32_173 : i32
    scf.if %705 {
      %c0_174 = arith.constant 0 : index
      %c0_175 = arith.constant 0 : index
      %c0_176 = arith.constant 0 : index
      %706 = vector.load %arg5[%c0_174, %c0_175, %c0_176] : memref<2x8x128xf32, #tpu.memory_space<vmem>>, vector<1x8x128xf32>
      %707 = vector.shape_cast %706 : vector<1x8x128xf32> to vector<8x128xf32>
      %708 = vector.shape_cast %630 : vector<8x128xf32> to vector<1x8x128xf32>
      tpu.vector_store %arg5[%c0_174, %c0_175, %c0_176], %708 {strides = array<i32>} : memref<2x8x128xf32, #tpu.memory_space<vmem>>, vector<1x8x128xf32>,
      %c0_177 = arith.constant 0 : index
      %c0_178 = arith.constant 0 : index
      %c0_179 = arith.constant 0 : index
      %709 = vector.load %arg6[%c0_177, %c0_178, %c0_179] : memref<2x8x128xf32, #tpu.memory_space<vmem>>, vector<1x8x128xf32>
      %710 = vector.shape_cast %709 : vector<1x8x128xf32> to vector<8x128xf32>
      %711 = vector.shape_cast %642 : vector<8x128xf32> to vector<1x8x128xf32>
      tpu.vector_store %arg6[%c0_177, %c0_178, %c0_179], %711 {strides = array<i32>} : memref<2x8x128xf32, #tpu.memory_space<vmem>>, vector<1x8x128xf32>,
      %c1_180 = arith.constant 1 : index
      %c0_181 = arith.constant 0 : index
      %c0_182 = arith.constant 0 : index
      %712 = vector.load %arg5[%c1_180, %c0_181, %c0_182] : memref<2x8x128xf32, #tpu.memory_space<vmem>>, vector<1x8x128xf32>
      %713 = vector.shape_cast %712 : vector<1x8x128xf32> to vector<8x128xf32>
      %714 = vector.shape_cast %672 : vector<8x128xf32> to vector<1x8x128xf32>
      tpu.vector_store %arg5[%c1_180, %c0_181, %c0_182], %714 {strides = array<i32>} : memref<2x8x128xf32, #tpu.memory_space<vmem>>, vector<1x8x128xf32>,
      %c1_183 = arith.constant 1 : index
      %c0_184 = arith.constant 0 : index
      %c0_185 = arith.constant 0 : index
      %715 = vector.load %arg6[%c1_183, %c0_184, %c0_185] : memref<2x8x128xf32, #tpu.memory_space<vmem>>, vector<1x8x128xf32>
      %716 = vector.shape_cast %715 : vector<1x8x128xf32> to vector<8x128xf32>
      %717 = vector.shape_cast %684 : vector<8x128xf32> to vector<1x8x128xf32>
      tpu.vector_store %arg6[%c1_183, %c0_184, %c0_185], %717 {strides = array<i32>} : memref<2x8x128xf32, #tpu.memory_space<vmem>>, vector<1x8x128xf32>,
    } else {
    }
    return
  }
  func.func @transform_0(%arg0: i32) -> (i32, i32) {
    %c0_i32 = arith.constant 0 : i32
    %c0_i32_0 = arith.constant 0 : i32
    %c0_i32_1 = arith.constant 0 : i32
    return %c0_i32, %c0_i32_0 : i32, i32
  }
  func.func @transform_1(%arg0: i32) -> (i32, i32, i32) {
    %c0_i32 = arith.constant 0 : i32
    %c0_i32_0 = arith.constant 0 : i32
    %c0_i32_1 = arith.constant 0 : i32
    return %arg0, %c0_i32, %c0_i32_0 : i32, i32, i32
  }
  func.func @transform_2(%arg0: i32) -> (i32, i32, i32) {
    %c0_i32 = arith.constant 0 : i32
    %0 = arith.subi %c0_i32, %arg0 : i32
    %c0_i32_0 = arith.constant 0 : i32
    %c0_i32_1 = arith.constant 0 : i32
    %c0_i32_2 = arith.constant 0 : i32
    return %0, %c0_i32_0, %c0_i32_1 : i32, i32, i32
  }
  func.func @transform_4(%arg0: i32) -> (i32, i32, i32) {
    %c0_i32 = arith.constant 0 : i32
    %c0_i32_0 = arith.constant 0 : i32
    %c0_i32_1 = arith.constant 0 : i32
    %c0_i32_2 = arith.constant 0 : i32
    return %c0_i32, %c0_i32_0, %c0_i32_1 : i32, i32, i32
  }
  func.func @transform_5(%arg0: i32) -> (i32, i32, i32) {
    %c0_i32 = arith.constant 0 : i32
    %c0_i32_0 = arith.constant 0 : i32
    %c0_i32_1 = arith.constant 0 : i32
    %c0_i32_2 = arith.constant 0 : i32
    return %c0_i32, %c0_i32_0, %c0_i32_1 : i32, i32, i32
  }
}

</mosaic_0001>

<llo_original>
// kernel: base_lstm_encoder.1
$region0: #{base_lstm_encoder.1}
  #allocation0 [shape = 'u32[]', space=smem, size = 0x4, offset = 0x4, fixed_abs, tag = 'smem constant byte address 0x4 - core index']
  #allocation1 [shape = 'u32[72,128]{1,0:T(1,128)}', space=vmem, size = 0x9000, scoped, tag = 'internal scratch']
  #allocation2 [shape = 'bf16[2,128,512]{2,1,0:T(8,128)(2,1)}', space=vmem, size = 0x40000, scoped, tag = 'scratch operand']
  #allocation3 [shape = 's32[1]{0}', space=sflag, size = 0x4, scoped, tag = 'scratch operand']
  #allocation4 [shape = 'f32[2,8,128]{2,1,0:T(8,128)}', space=vmem, size = 0x2000, scoped, tag = 'scratch operand']
  #allocation5 [shape = 'f32[2,8,128]{2,1,0:T(8,128)}', space=vmem, size = 0x2000, scoped, tag = 'scratch operand']
  #allocation6 [shape = 'f32[2,8,128]{2,1,0:T(8,128)}', space=vmem, size = 0x2000, scoped, tag = 'scratch operand']
  #allocation9 [shape = 's32[]', space=sflag, size = 0x4, offset = 0, fixed_abs, tag = 'sflag constant byte address 0x0 - dummy sync flag']
  %s0 = inlined_call_operand.vmem [shape: s32[8,1], index: 0, kind: input, shape index: {}]
  %s1 = inlined_call_operand.vmem [shape: bf16[8,8,512], index: 1, kind: input, shape index: {}]
  %s2 = inlined_call_operand.vmem [shape: bf16[8,8,512], index: 2, kind: input, shape index: {}]
  %s3 = inlined_call_operand.vmem [shape: bf16[2,128,512], index: 3, kind: input, shape index: {}]
  %s4 = inlined_call_operand.hbm [shape: f32[2,8,128], index: 4, kind: output, shape index: {0}]
  %s5 = inlined_call_operand.vmem [shape: f32[2,8,128], index: 5, kind: output, shape index: {1}]
  %6 = xla_tuple %s4, %s5
  %s7 = sld [smem:[#allocation0]]
  $region57: #{base_lstm_encoder.1} parent=0
    _
  %s9 = ssub.s32 1, %s7
  %s10 = scalar_select 0, %s9, %s7
  $region1: #{base_lstm_encoder.1} parent=0
    #allocation7 [shape = 'u8[8192]{0}', space=vmem, size = 0x2000, scoped, tag = 'output window, operand 0, single buffered']
    #allocation8 [shape = 's32[1]{0}', space=sflag, size = 0x4, scoped, tag = 'scoped memory for base_lstm_encoder.1']
    %11 = vsyncpa [#allocation8], 0
    // Predicated region
    $region2: #{base_lstm_encoder.1} parent=1 // pred_check
      _
    $region3: #{base_lstm_encoder.1} parent=1 // pred_check_branch
      %13 = sbr.rel (0) target = $region5
    $region4: #{base_lstm_encoder.1} parent=1 // pred_region
      _
    $region5: #{base_lstm_encoder.1} parent=1 // pred_fallthru
      _
    // Predicated region
    $region6: #{base_lstm_encoder.1} parent=1 // pred_check
      _
    $region7: #{base_lstm_encoder.1} parent=1 // pred_check_branch
      %15 = sbr.rel (0) target = $region9
    $region8: #{base_lstm_encoder.1} parent=1 // pred_region
      _
    $region9: #{base_lstm_encoder.1} parent=1 // pred_fallthru
      _
    // Predicated region
    $region10: #{base_lstm_encoder.1} parent=1 // pred_check
      _
    $region11: #{base_lstm_encoder.1} parent=1 // pred_check_branch
      %17 = sbr.rel (0) target = $region13
    $region12: #{base_lstm_encoder.1} parent=1 // pred_region
      %s18 = ssub.s32 0, 0
      %s19 = smul.u32 8, %s18
      %p20 = scmp.lt.s32.totalorder %s19, 7
      %s21 = scalar_select %p20, %s19, 7
      %s22 = smul.addr %s21, 4
      %s23 = smul.addr %s22, 4
      %s24 = scalar_lea.vmem %s2, %s23
      %s25 = ssub.s32 0, 0
      %s26 = smul.u32 8, %s25
    $region13: #{base_lstm_encoder.1} parent=1 // pred_fallthru
      _
    %s27 = ssub.s32 0, 0
    %s28 = smul.u32 8, %s27
    %p29 = scmp.lt.s32.totalorder %s28, 7
    %s30 = scalar_select %p29, %s28, 7
    %s31 = smul.addr %s30, 4
    %s32 = smul.addr %s31, 4
    %s33 = scalar_lea.vmem %s2, %s32
    %s34 = ssub.s32 0, 0
    %s35 = smul.u32 8, %s34
    %p36 = scmp.lt.s32.totalorder %s35, 7
    %s37 = scalar_select %p36, %s35, 7
    %s38 = smul.addr %s37, 4
    %s39 = smul.addr %s38, 4
    %s40 = scalar_lea.vmem %s2, %s39
    %s41 = ssub.s32 0, 0
    %s42 = smul.u32 8, %s41
    %p43 = scmp.eq.s32.totalorder 0, 0
    // Predicated region
    $region14: #{base_lstm_encoder.1} parent=1 // pred_check
      %p44 = pneg %p43
    $region15: #{base_lstm_encoder.1} parent=1 // pred_check_branch
      %46 = sbr.rel (%p44) target = $region17
    $region16: #{base_lstm_encoder.1} parent=1 // pred_region
      // Predicated region
      $region18: #{base_lstm_encoder.1} parent=16 // pred_check
        _
      $region19: #{base_lstm_encoder.1} parent=16 // pred_check_branch
        %48 = sbr.rel (0) target = $region21
      $region20: #{base_lstm_encoder.1} parent=16 // pred_region
        loop: start=0, step=1, limit=1
        $region22: #{base_lstm_encoder.1} parent=20 // loop_pre_header
          _
        $region23: #{base_lstm_encoder.1} parent=20 // loop_header
          %s50 = sphi 0, %s54
          %p51 = scmp.ge.s32.totalorder %s50, 1
          %s55 = sphi %s3, %s3
          %s56 = sphi [#allocation2], [#allocation2]
        $region24: #{base_lstm_encoder.1} parent=20 // loop_header_branch
          %53 = sbr.rel (%p51) target = $region28
        $region25: #{base_lstm_encoder.1} parent=20 // loop_body
          %v57 = vld [vmem:[%s55] sm:$0xff]
          %58 = vst [vmem:[%s56] sm:$0xff] %v57
          %v59 = vld [vmem:[%s55 + $0x8] sm:$0xff]
          %60 = vst [vmem:[%s56 + $0x8] sm:$0xff] %v59
          %v61 = vld [vmem:[%s55 + $0x10] sm:$0xff]
          %62 = vst [vmem:[%s56 + $0x10] sm:$0xff] %v61
          %v63 = vld [vmem:[%s55 + $0x18] sm:$0xff]
          %64 = vst [vmem:[%s56 + $0x18] sm:$0xff] %v63
          %v65 = vld [vmem:[%s55 + $0x20] sm:$0xff]
          %66 = vst [vmem:[%s56 + $0x20] sm:$0xff] %v65
          %v67 = vld [vmem:[%s55 + $0x28] sm:$0xff]
          %68 = vst [vmem:[%s56 + $0x28] sm:$0xff] %v67
          %v69 = vld [vmem:[%s55 + $0x30] sm:$0xff]
          %70 = vst [vmem:[%s56 + $0x30] sm:$0xff] %v69
          %v71 = vld [vmem:[%s55 + $0x38] sm:$0xff]
          %72 = vst [vmem:[%s56 + $0x38] sm:$0xff] %v71
          %v73 = vld [vmem:[%s55 + $0x40] sm:$0xff]
          %74 = vst [vmem:[%s56 + $0x40] sm:$0xff] %v73
          %v75 = vld [vmem:[%s55 + $0x48] sm:$0xff]
          %76 = vst [vmem:[%s56 + $0x48] sm:$0xff] %v75
          %v77 = vld [vmem:[%s55 + $0x50] sm:$0xff]
          %78 = vst [vmem:[%s56 + $0x50] sm:$0xff] %v77
          %v79 = vld [vmem:[%s55 + $0x58] sm:$0xff]
          %80 = vst [vmem:[%s56 + $0x58] sm:$0xff] %v79
          %v81 = vld [vmem:[%s55 + $0x60] sm:$0xff]
          %82 = vst [vmem:[%s56 + $0x60] sm:$0xff] %v81
          %v83 = vld [vmem:[%s55 + $0x68] sm:$0xff]
          %84 = vst [vmem:[%s56 + $0x68] sm:$0xff] %v83
          %v85 = vld [vmem:[%s55 + $0x70] sm:$0xff]
          %86 = vst [vmem:[%s56 + $0x70] sm:$0xff] %v85
          %v87 = vld [vmem:[%s55 + $0x78] sm:$0xff]
          %88 = vst [vmem:[%s56 + $0x78] sm:$0xff] %v87
          %v89 = vld [vmem:[%s55 + $0x80] sm:$0xff]
          %90 = vst [vmem:[%s56 + $0x80] sm:$0xff] %v89
          %v91 = vld [vmem:[%s55 + $0x88] sm:$0xff]
          %92 = vst [vmem:[%s56 + $0x88] sm:$0xff] %v91
          %v93 = vld [vmem:[%s55 + $0x90] sm:$0xff]
          %94 = vst [vmem:[%s56 + $0x90] sm:$0xff] %v93
          %v95 = vld [vmem:[%s55 + $0x98] sm:$0xff]
          %96 = vst [vmem:[%s56 + $0x98] sm:$0xff] %v95
          %v97 = vld [vmem:[%s55 + $0xa0] sm:$0xff]
          %98 = vst [vmem:[%s56 + $0xa0] sm:$0xff] %v97
          %v99 = vld [vmem:[%s55 + $0xa8] sm:$0xff]
          %100 = vst [vmem:[%s56 + $0xa8] sm:$0xff] %v99
          %v101 = vld [vmem:[%s55 + $0xb0] sm:$0xff]
          %102 = vst [vmem:[%s56 + $0xb0] sm:$0xff] %v101
          %v103 = vld [vmem:[%s55 + $0xb8] sm:$0xff]
          %104 = vst [vmem:[%s56 + $0xb8] sm:$0xff] %v103
          %v105 = vld [vmem:[%s55 + $0xc0] sm:$0xff]
          %106 = vst [vmem:[%s56 + $0xc0] sm:$0xff] %v105
          %v107 = vld [vmem:[%s55 + $0xc8] sm:$0xff]
          %108 = vst [vmem:[%s56 + $0xc8] sm:$0xff] %v107
          %v109 = vld [vmem:[%s55 + $0xd0] sm:$0xff]
          %110 = vst [vmem:[%s56 + $0xd0] sm:$0xff] %v109
          %v111 = vld [vmem:[%s55 + $0xd8] sm:$0xff]
          %112 = vst [vmem:[%s56 + $0xd8] sm:$0xff] %v111
          %v113 = vld [vmem:[%s55 + $0xe0] sm:$0xff]
          %114 = vst [vmem:[%s56 + $0xe0] sm:$0xff] %v113
          %v115 = vld [vmem:[%s55 + $0xe8] sm:$0xff]
          %116 = vst [vmem:[%s56 + $0xe8] sm:$0xff] %v115
          %v117 = vld [vmem:[%s55 + $0xf0] sm:$0xff]
          %118 = vst [vmem:[%s56 + $0xf0] sm:$0xff] %v117
          %v119 = vld [vmem:[%s55 + $0xf8] sm:$0xff]
          %120 = vst [vmem:[%s56 + $0xf8] sm:$0xff] %v119
          %v121 = vld [vmem:[%s55 + $0x100] sm:$0xff]
          %122 = vst [vmem:[%s56 + $0x100] sm:$0xff] %v121
          %v123 = vld [vmem:[%s55 + $0x108] sm:$0xff]
          %124 = vst [vmem:[%s56 + $0x108] sm:$0xff] %v123
          %v125 = vld [vmem:[%s55 + $0x110] sm:$0xff]
          %126 = vst [vmem:[%s56 + $0x110] sm:$0xff] %v125
          %v127 = vld [vmem:[%s55 + $0x118] sm:$0xff]
          %128 = vst [vmem:[%s56 + $0x118] sm:$0xff] %v127
          %v129 = vld [vmem:[%s55 + $0x120] sm:$0xff]
          %130 = vst [vmem:[%s56 + $0x120] sm:$0xff] %v129
          %v131 = vld [vmem:[%s55 + $0x128] sm:$0xff]
          %132 = vst [vmem:[%s56 + $0x128] sm:$0xff] %v131
          %v133 = vld [vmem:[%s55 + $0x130] sm:$0xff]
          %134 = vst [vmem:[%s56 + $0x130] sm:$0xff] %v133
          %v135 = vld [vmem:[%s55 + $0x138] sm:$0xff]
          %136 = vst [vmem:[%s56 + $0x138] sm:$0xff] %v135
          %v137 = vld [vmem:[%s55 + $0x140] sm:$0xff]
          %138 = vst [vmem:[%s56 + $0x140] sm:$0xff] %v137
          %v139 = vld [vmem:[%s55 + $0x148] sm:$0xff]
          %140 = vst [vmem:[%s56 + $0x148] sm:$0xff] %v139
          %v141 = vld [vmem:[%s55 + $0x150] sm:$0xff]
          %142 = vst [vmem:[%s56 + $0x150] sm:$0xff] %v141
          %v143 = vld [vmem:[%s55 + $0x158] sm:$0xff]
          %144 = vst [vmem:[%s56 + $0x158] sm:$0xff] %v143
          %v145 = vld [vmem:[%s55 + $0x160] sm:$0xff]
          %146 = vst [vmem:[%s56 + $0x160] sm:$0xff] %v145
          %v147 = vld [vmem:[%s55 + $0x168] sm:$0xff]
          %148 = vst [vmem:[%s56 + $0x168] sm:$0xff] %v147
          %v149 = vld [vmem:[%s55 + $0x170] sm:$0xff]
          %150 = vst [vmem:[%s56 + $0x170] sm:$0xff] %v149
          %v151 = vld [vmem:[%s55 + $0x178] sm:$0xff]
          %152 = vst [vmem:[%s56 + $0x178] sm:$0xff] %v151
          %v153 = vld [vmem:[%s55 + $0x180] sm:$0xff]
          %154 = vst [vmem:[%s56 + $0x180] sm:$0xff] %v153
          %v155 = vld [vmem:[%s55 + $0x188] sm:$0xff]
          %156 = vst [vmem:[%s56 + $0x188] sm:$0xff] %v155
          %v157 = vld [vmem:[%s55 + $0x190] sm:$0xff]
          %158 = vst [vmem:[%s56 + $0x190] sm:$0xff] %v157
          %v159 = vld [vmem:[%s55 + $0x198] sm:$0xff]
          %160 = vst [vmem:[%s56 + $0x198] sm:$0xff] %v159
          %v161 = vld [vmem:[%s55 + $0x1a0] sm:$0xff]
          %162 = vst [vmem:[%s56 + $0x1a0] sm:$0xff] %v161
          %v163 = vld [vmem:[%s55 + $0x1a8] sm:$0xff]
          %164 = vst [vmem:[%s56 + $0x1a8] sm:$0xff] %v163
          %v165 = vld [vmem:[%s55 + $0x1b0] sm:$0xff]
          %166 = vst [vmem:[%s56 + $0x1b0] sm:$0xff] %v165
          %v167 = vld [vmem:[%s55 + $0x1b8] sm:$0xff]
          %168 = vst [vmem:[%s56 + $0x1b8] sm:$0xff] %v167
          %v169 = vld [vmem:[%s55 + $0x1c0] sm:$0xff]
          %170 = vst [vmem:[%s56 + $0x1c0] sm:$0xff] %v169
          %v171 = vld [vmem:[%s55 + $0x1c8] sm:$0xff]
          %172 = vst [vmem:[%s56 + $0x1c8] sm:$0xff] %v171
          %v173 = vld [vmem:[%s55 + $0x1d0] sm:$0xff]
          %174 = vst [vmem:[%s56 + $0x1d0] sm:$0xff] %v173
          %v175 = vld [vmem:[%s55 + $0x1d8] sm:$0xff]
          %176 = vst [vmem:[%s56 + $0x1d8] sm:$0xff] %v175
          %v177 = vld [vmem:[%s55 + $0x1e0] sm:$0xff]
          %178 = vst [vmem:[%s56 + $0x1e0] sm:$0xff] %v177
          %v179 = vld [vmem:[%s55 + $0x1e8] sm:$0xff]
          %180 = vst [vmem:[%s56 + $0x1e8] sm:$0xff] %v179
          %v181 = vld [vmem:[%s55 + $0x1f0] sm:$0xff]
          %182 = vst [vmem:[%s56 + $0x1f0] sm:$0xff] %v181
          %v183 = vld [vmem:[%s55 + $0x1f8] sm:$0xff]
          %184 = vst [vmem:[%s56 + $0x1f8] sm:$0xff] %v183
        $region26: #{base_lstm_encoder.1} parent=20 // loop_footer
          %s54 = sadd.s32 1, %s50
        $region27: #{base_lstm_encoder.1} parent=20 // loop_footer_branch
          %49 = sbr.rel target = $region23
        $region28: #{base_lstm_encoder.1} parent=20 // loop_exit
          _
      $region21: #{base_lstm_encoder.1} parent=16 // pred_fallthru
        _
      // Predicated region
      $region29: #{base_lstm_encoder.1} parent=16 // pred_check
        _
      $region30: #{base_lstm_encoder.1} parent=16 // pred_check_branch
        %186 = sbr.rel target = $region32
      $region31: #{base_lstm_encoder.1} parent=16 // pred_region
        _
      $region32: #{base_lstm_encoder.1} parent=16 // pred_fallthru
        _
      // Predicated region
      $region33: #{base_lstm_encoder.1} parent=16 // pred_check
        _
      $region34: #{base_lstm_encoder.1} parent=16 // pred_check_branch
        %189 = sbr.rel (0) target = $region36
      $region35: #{base_lstm_encoder.1} parent=16 // pred_region
        %190 = vsyncadd [#allocation3], 8192
      $region36: #{base_lstm_encoder.1} parent=16 // pred_fallthru
        _
      %191 = vst [vmem:[#allocation4] sm:$0xff] 0.0
      %192 = vst [vmem:[#allocation4 + $0x8] sm:$0xff] 0.0
      %193 = vst [vmem:[#allocation5] sm:$0xff] 0.0
      %194 = vst [vmem:[#allocation5 + $0x8] sm:$0xff] 0.0
      %195 = vst [vmem:[#allocation6] sm:$0xff] -1e+09
      %196 = vst [vmem:[#allocation6 + $0x8] sm:$0xff] -1e+09
      %s197 = smul.u32 4, 2
      %s198 = smul.u32 %s197, 16
      %s199 = smul.u32 %s198, 4
      %s200 = sshll.u32 %s199, 4
      %201 = dma.done [#allocation3], %s200
    $region17: #{base_lstm_encoder.1} parent=1 // pred_fallthru
      _
    %v202 = vld [vmem:[%s0] sm:$0xff]
    %v203 = vld [vmem:[#allocation2] sm:$0xff]
    %v204 = vld [vmem:[#allocation2 + $0x8] sm:$0xff]
    %v205 = vld [vmem:[#allocation2 + $0x10] sm:$0xff]
    %v206 = vld [vmem:[#allocation2 + $0x18] sm:$0xff]
    %v207 = vld [vmem:[#allocation2 + $0x20] sm:$0xff]
    %v208 = vld [vmem:[#allocation2 + $0x28] sm:$0xff]
    %v209 = vld [vmem:[#allocation2 + $0x30] sm:$0xff]
    %v210 = vld [vmem:[#allocation2 + $0x38] sm:$0xff]
    %v211 = vld [vmem:[#allocation2 + $0x40] sm:$0xff]
    %v212 = vld [vmem:[#allocation2 + $0x48] sm:$0xff]
    %v213 = vld [vmem:[#allocation2 + $0x50] sm:$0xff]
    %v214 = vld [vmem:[#allocation2 + $0x58] sm:$0xff]
    %v215 = vld [vmem:[#allocation2 + $0x60] sm:$0xff]
    %v216 = vld [vmem:[#allocation2 + $0x68] sm:$0xff]
    %v217 = vld [vmem:[#allocation2 + $0x70] sm:$0xff]
    %v218 = vld [vmem:[#allocation2 + $0x78] sm:$0xff]
    %v219 = vld [vmem:[#allocation2 + $0x80] sm:$0xff]
    %v220 = vld [vmem:[#allocation2 + $0x88] sm:$0xff]
    %v221 = vld [vmem:[#allocation2 + $0x90] sm:$0xff]
    %v222 = vld [vmem:[#allocation2 + $0x98] sm:$0xff]
    %v223 = vld [vmem:[#allocation2 + $0xa0] sm:$0xff]
    %v224 = vld [vmem:[#allocation2 + $0xa8] sm:$0xff]
    %v225 = vld [vmem:[#allocation2 + $0xb0] sm:$0xff]
    %v226 = vld [vmem:[#allocation2 + $0xb8] sm:$0xff]
    %v227 = vld [vmem:[#allocation2 + $0xc0] sm:$0xff]
    %v228 = vld [vmem:[#allocation2 + $0xc8] sm:$0xff]
    %v229 = vld [vmem:[#allocation2 + $0xd0] sm:$0xff]
    %v230 = vld [vmem:[#allocation2 + $0xd8] sm:$0xff]
    %v231 = vld [vmem:[#allocation2 + $0xe0] sm:$0xff]
    %v232 = vld [vmem:[#allocation2 + $0xe8] sm:$0xff]
    %v233 = vld [vmem:[#allocation2 + $0xf0] sm:$0xff]
    %v234 = vld [vmem:[#allocation2 + $0xf8] sm:$0xff]
    %s235 = scalar_lea.vmem [#allocation2], 256
    %v236 = vld [vmem:[%s235] sm:$0xff]
    %v237 = vld [vmem:[%s235 + $0x8] sm:$0xff]
    %v238 = vld [vmem:[%s235 + $0x10] sm:$0xff]
    %v239 = vld [vmem:[%s235 + $0x18] sm:$0xff]
    %v240 = vld [vmem:[%s235 + $0x20] sm:$0xff]
    %v241 = vld [vmem:[%s235 + $0x28] sm:$0xff]
    %v242 = vld [vmem:[%s235 + $0x30] sm:$0xff]
    %v243 = vld [vmem:[%s235 + $0x38] sm:$0xff]
    %v244 = vld [vmem:[%s235 + $0x40] sm:$0xff]
    %v245 = vld [vmem:[%s235 + $0x48] sm:$0xff]
    %v246 = vld [vmem:[%s235 + $0x50] sm:$0xff]
    %v247 = vld [vmem:[%s235 + $0x58] sm:$0xff]
    %v248 = vld [vmem:[%s235 + $0x60] sm:$0xff]
    %v249 = vld [vmem:[%s235 + $0x68] sm:$0xff]
    %v250 = vld [vmem:[%s235 + $0x70] sm:$0xff]
    %v251 = vld [vmem:[%s235 + $0x78] sm:$0xff]
    %v252 = vld [vmem:[%s235 + $0x80] sm:$0xff]
    %v253 = vld [vmem:[%s235 + $0x88] sm:$0xff]
    %v254 = vld [vmem:[%s235 + $0x90] sm:$0xff]
    %v255 = vld [vmem:[%s235 + $0x98] sm:$0xff]
    %v256 = vld [vmem:[%s235 + $0xa0] sm:$0xff]
    %v257 = vld [vmem:[%s235 + $0xa8] sm:$0xff]
    %v258 = vld [vmem:[%s235 + $0xb0] sm:$0xff]
    %v259 = vld [vmem:[%s235 + $0xb8] sm:$0xff]
    %v260 = vld [vmem:[%s235 + $0xc0] sm:$0xff]
    %v261 = vld [vmem:[%s235 + $0xc8] sm:$0xff]
    %v262 = vld [vmem:[%s235 + $0xd0] sm:$0xff]
    %v263 = vld [vmem:[%s235 + $0xd8] sm:$0xff]
    %v264 = vld [vmem:[%s235 + $0xe0] sm:$0xff]
    %v265 = vld [vmem:[%s235 + $0xe8] sm:$0xff]
    %v266 = vld [vmem:[%s235 + $0xf0] sm:$0xff]
    %v267 = vld [vmem:[%s235 + $0xf8] sm:$0xff]
    %s268 = smul.u32 0, 8
    %v269 = vld [vmem:[#allocation4] sm:$0xff]
    %s270 = scalar_lea.vmem [#allocation4], 8
    %v271 = vld [vmem:[%s270] sm:$0xff]
    %v272 = vld [vmem:[#allocation5] sm:$0xff]
    %s273 = scalar_lea.vmem [#allocation5], 8
    %v274 = vld [vmem:[%s273] sm:$0xff]
    %v275 = vld [vmem:[#allocation6] sm:$0xff]
    %s276 = scalar_lea.vmem [#allocation6], 8
    %v277 = vld [vmem:[%s276] sm:$0xff]
    %v278 = vld [vmem:[%s1] sm:$0xff]
    %v279 = vld [vmem:[%s1 + $0x8] sm:$0xff]
    %v280 = vpack.c.bf16 %v269, %v269
    %v281 = vunpack.c.l.bf16 %v278
    %v282 = vunpack.c.h.bf16 %v278
    %v283 = vunpack.c.l.bf16 %v279
    %v284 = vunpack.c.h.bf16 %v279
    %v317 = vunpack.c.l.b16 %v203
    %v318 = vunpack.c.h.b16 %v203
    %v319 = vunpack.c.l.b16 %v204
    %v320 = vunpack.c.h.b16 %v204
    %v321 = vunpack.c.l.b16 %v205
    %v322 = vunpack.c.h.b16 %v205
    %v323 = vunpack.c.l.b16 %v206
    %v324 = vunpack.c.h.b16 %v206
    %v325 = vunpack.c.l.b16 %v207
    %v326 = vunpack.c.h.b16 %v207
    %v327 = vunpack.c.l.b16 %v208
    %v328 = vunpack.c.h.b16 %v208
    %v329 = vunpack.c.l.b16 %v209
    %v330 = vunpack.c.h.b16 %v209
    %v331 = vunpack.c.l.b16 %v210
    %v332 = vunpack.c.h.b16 %v210
    %v333 = vunpack.c.l.b16 %v211
    %v334 = vunpack.c.h.b16 %v211
    %v335 = vunpack.c.l.b16 %v212
    %v336 = vunpack.c.h.b16 %v212
    %v337 = vunpack.c.l.b16 %v213
    %v338 = vunpack.c.h.b16 %v213
    %v339 = vunpack.c.l.b16 %v214
    %v340 = vunpack.c.h.b16 %v214
    %v341 = vunpack.c.l.b16 %v215
    %v342 = vunpack.c.h.b16 %v215
    %v343 = vunpack.c.l.b16 %v216
    %v344 = vunpack.c.h.b16 %v216
    %v345 = vunpack.c.l.b16 %v217
    %v346 = vunpack.c.h.b16 %v217
    %v347 = vunpack.c.l.b16 %v218
    %v348 = vunpack.c.h.b16 %v218
    %v349 = vunpack.c.l.b16 %v219
    %v350 = vunpack.c.h.b16 %v219
    %v351 = vunpack.c.l.b16 %v220
    %v352 = vunpack.c.h.b16 %v220
    %v353 = vunpack.c.l.b16 %v221
    %v354 = vunpack.c.h.b16 %v221
    %v355 = vunpack.c.l.b16 %v222
    %v356 = vunpack.c.h.b16 %v222
    %v357 = vunpack.c.l.b16 %v223
    %v358 = vunpack.c.h.b16 %v223
    %v359 = vunpack.c.l.b16 %v224
    %v360 = vunpack.c.h.b16 %v224
    %v361 = vunpack.c.l.b16 %v225
    %v362 = vunpack.c.h.b16 %v225
    %v363 = vunpack.c.l.b16 %v226
    %v364 = vunpack.c.h.b16 %v226
    %v365 = vunpack.c.l.b16 %v227
    %v366 = vunpack.c.h.b16 %v227
    %v367 = vunpack.c.l.b16 %v228
    %v368 = vunpack.c.h.b16 %v228
    %v369 = vunpack.c.l.b16 %v229
    %v370 = vunpack.c.h.b16 %v229
    %v371 = vunpack.c.l.b16 %v230
    %v372 = vunpack.c.h.b16 %v230
    %v373 = vunpack.c.l.b16 %v231
    %v374 = vunpack.c.h.b16 %v231
    %v375 = vunpack.c.l.b16 %v232
    %v376 = vunpack.c.h.b16 %v232
    %v377 = vunpack.c.l.b16 %v233
    %v378 = vunpack.c.h.b16 %v233
    %v379 = vunpack.c.l.b16 %v234
    %v380 = vunpack.c.h.b16 %v234
    %v381 = vpack.c.b16 %v321, %v317
    %v382 = vpack.c.b16 %v322, %v318
    %v383 = vpack.c.b16 %v323, %v319
    %v384 = vpack.c.b16 %v324, %v320
    %v385 = vpack.c.b16 %v329, %v325
    %v386 = vpack.c.b16 %v330, %v326
    %v387 = vpack.c.b16 %v331, %v327
    %v388 = vpack.c.b16 %v332, %v328
    %v389 = vpack.c.b16 %v337, %v333
    %v390 = vpack.c.b16 %v338, %v334
    %v391 = vpack.c.b16 %v339, %v335
    %v392 = vpack.c.b16 %v340, %v336
    %v393 = vpack.c.b16 %v345, %v341
    %v394 = vpack.c.b16 %v346, %v342
    %v395 = vpack.c.b16 %v347, %v343
    %v396 = vpack.c.b16 %v348, %v344
    %v397 = vpack.c.b16 %v353, %v349
    %v398 = vpack.c.b16 %v354, %v350
    %v399 = vpack.c.b16 %v355, %v351
    %v400 = vpack.c.b16 %v356, %v352
    %v401 = vpack.c.b16 %v361, %v357
    %v402 = vpack.c.b16 %v362, %v358
    %v403 = vpack.c.b16 %v363, %v359
    %v404 = vpack.c.b16 %v364, %v360
    %v405 = vpack.c.b16 %v369, %v365
    %v406 = vpack.c.b16 %v370, %v366
    %v407 = vpack.c.b16 %v371, %v367
    %v408 = vpack.c.b16 %v372, %v368
    %v409 = vpack.c.b16 %v377, %v373
    %v410 = vpack.c.b16 %v378, %v374
    %v411 = vpack.c.b16 %v379, %v375
    %v412 = vpack.c.b16 %v380, %v376
    %445 = vmatpush.bf16.msra.mxu0 %v409
    %446 = vmatpush.bf16.msra.mxu0 %v405
    %447 = vmatpush.bf16.msra.mxu0 %v401
    %448 = vmatpush.bf16.msra.mxu0 %v397
    %449 = vmatpush.bf16.msra.mxu0 %v393
    %450 = vmatpush.bf16.msra.mxu0 %v389
    %451 = vmatpush.bf16.msra.mxu0 %v385
    %452 = vmatpush.bf16.msra.mxu0 %v381
    %453 = vmatmul.bf16.gmra.mxu0 %v280
    %v454 = vpop.f32.mrf.mxu0
    %v455 = vadd.f32 %v281, %v454
    %v456 = vpop.f32.mrf.mxu0
    %457 = vdwg.mxu0
    %458 = vmatpush.bf16.msra.mxu0 %v410
    %459 = vmatpush.bf16.msra.mxu0 %v406
    %460 = vmatpush.bf16.msra.mxu0 %v402
    %461 = vmatpush.bf16.msra.mxu0 %v398
    %462 = vmatpush.bf16.msra.mxu0 %v394
    %463 = vmatpush.bf16.msra.mxu0 %v390
    %464 = vmatpush.bf16.msra.mxu0 %v386
    %465 = vmatpush.bf16.msra.mxu0 %v382
    %466 = vmatmul.bf16.gmra.mxu0 %v280
    %v467 = vpop.f32.mrf.mxu0
    %v468 = vadd.f32 %v282, %v467
    %v469 = vpop.f32.mrf.mxu0
    %470 = vdwg.mxu0
    %471 = vmatpush.bf16.msra.mxu0 %v411
    %472 = vmatpush.bf16.msra.mxu0 %v407
    %473 = vmatpush.bf16.msra.mxu0 %v403
    %474 = vmatpush.bf16.msra.mxu0 %v399
    %475 = vmatpush.bf16.msra.mxu0 %v395
    %476 = vmatpush.bf16.msra.mxu0 %v391
    %477 = vmatpush.bf16.msra.mxu0 %v387
    %478 = vmatpush.bf16.msra.mxu0 %v383
    %479 = vmatmul.bf16.gmra.mxu0 %v280
    %v480 = vpop.f32.mrf.mxu0
    %v481 = vadd.f32 %v283, %v480
    %v482 = vpop.f32.mrf.mxu0
    %483 = vdwg.mxu0
    %484 = vmatpush.bf16.msra.mxu0 %v412
    %485 = vmatpush.bf16.msra.mxu0 %v408
    %486 = vmatpush.bf16.msra.mxu0 %v404
    %487 = vmatpush.bf16.msra.mxu0 %v400
    %488 = vmatpush.bf16.msra.mxu0 %v396
    %489 = vmatpush.bf16.msra.mxu0 %v392
    %490 = vmatpush.bf16.msra.mxu0 %v388
    %491 = vmatpush.bf16.msra.mxu0 %v384
    %492 = vmatmul.bf16.gmra.mxu0 %v280
    %v493 = vpop.f32.mrf.mxu0
    %v494 = vadd.f32 %v284, %v493
    %v495 = vpop.f32.mrf.mxu0
    %496 = vdwg.mxu0
    %v497 = vxor.u32 %v455, 2147483648
    %v498 = vxor.u32 %v468, 2147483648
    %v499 = vxor.u32 %v481, 2147483648
    %v500 = vmul.f32 %v497, 1.442695
    %v501 = vpow.pop %v500
    %v502 = vmul.f32 %v498, 1.442695
    %v503 = vpow.pop %v502
    %v504 = vmul.f32 %v499, 1.442695
    %v505 = vpow.pop %v504
    %v506 = vadd.f32 %v501, 1.0
    %v507 = vadd.f32 %v503, 1.0
    %v508 = vadd.f32 %v505, 1.0
    %v509 = vrcp.pop %v506
    %v510 = vmul.f32 %v506, %v509
    %v511 = vsub.f32 1.0, %v510
    %v512 = vmul.f32 %v509, %v511
    %v513 = vadd.f32 %v509, %v512
    %vm514 = vweird.f32 %v506
    %vm515 = vweird.f32 %v509
    %vm516 = vmor %vm514, %vm515
    %v517 = vsel %vm516, %v509, %v513
    %v518 = vand.u32 2147483647, %v506
    %vm519 = vcmp.eq.f32.partialorder %v518, 8.507059e+37
    %v520 = vand.u32 %v506, 2147483648
    %v521 = vor.u32 1.1754944e-38, %v520
    %v522 = vsel %vm519, %v521, %v517
    %v523 = vmul.f32 1.0, %v522
    %v524 = vrcp.pop %v507
    %v525 = vmul.f32 %v507, %v524
    %v526 = vsub.f32 1.0, %v525
    %v527 = vmul.f32 %v524, %v526
    %v528 = vadd.f32 %v524, %v527
    %vm529 = vweird.f32 %v507
    %vm530 = vweird.f32 %v524
    %vm531 = vmor %vm529, %vm530
    %v532 = vsel %vm531, %v524, %v528
    %v533 = vand.u32 2147483647, %v507
    %vm534 = vcmp.eq.f32.partialorder %v533, 8.507059e+37
    %v535 = vand.u32 %v507, 2147483648
    %v536 = vor.u32 1.1754944e-38, %v535
    %v537 = vsel %vm534, %v536, %v532
    %v538 = vmul.f32 1.0, %v537
    %v539 = vrcp.pop %v508
    %v540 = vmul.f32 %v508, %v539
    %v541 = vsub.f32 1.0, %v540
    %v542 = vmul.f32 %v539, %v541
    %v543 = vadd.f32 %v539, %v542
    %vm544 = vweird.f32 %v508
    %vm545 = vweird.f32 %v539
    %vm546 = vmor %vm544, %vm545
    %v547 = vsel %vm546, %v539, %v543
    %v548 = vand.u32 2147483647, %v508
    %vm549 = vcmp.eq.f32.partialorder %v548, 8.507059e+37
    %v550 = vand.u32 %v508, 2147483648
    %v551 = vor.u32 1.1754944e-38, %v550
    %v552 = vsel %vm549, %v551, %v547
    %v553 = vmul.f32 1.0, %v552
    %v554 = vtanh.pop %v494
    %v555 = vmul.f32 %v538, %v272
    %v556 = vmul.f32 %v523, %v554
    %v557 = vadd.f32 %v555, %v556
    %v558 = vtanh.pop %v557
    %v559 = vmul.f32 %v553, %v558
    %v560 = vstv %s268
    %vm561 = vcmp.lt.s32.totalorder %v560, %v202
    %v562 = vsel %vm561, 1, 0
    %563 = vset.pattern.permute.xlu0 0
    %564 = vperm.xlu0 %563, %v562
    %v565 = vpop.permute.xlu0 %564
    %vm566 = vcmp.eq.s32.totalorder %v565, 1
    %v567 = vsel %vm566, %v559, %v269
    %v568 = vsel %vm566, %v557, %v272
    %v569 = vsel %vm566, %v559, 0.0
    %vm570 = vcmp.eq.f32.partialorder %v569, 0.0
    %v571 = vsel %vm570, -1e+09, %v569
    %v572 = vmax.f32 %v275, %v571
    %s573 = scalar_lea.vmem %s40, 112
    %v574 = vld [vmem:[%s573] sm:$0xff]
    %v575 = vld [vmem:[%s573 + $0x8] sm:$0xff]
    %s576 = ssub.s32 7, %s268
    %v577 = vpack.c.bf16 %v271, %v271
    %v578 = vunpack.c.l.bf16 %v574
    %v579 = vunpack.c.h.bf16 %v574
    %v580 = vunpack.c.l.bf16 %v575
    %v581 = vunpack.c.h.bf16 %v575
    %v614 = vunpack.c.l.b16 %v236
    %v615 = vunpack.c.h.b16 %v236
    %v616 = vunpack.c.l.b16 %v237
    %v617 = vunpack.c.h.b16 %v237
    %v618 = vunpack.c.l.b16 %v238
    %v619 = vunpack.c.h.b16 %v238
    %v620 = vunpack.c.l.b16 %v239
    %v621 = vunpack.c.h.b16 %v239
    %v622 = vunpack.c.l.b16 %v240
    %v623 = vunpack.c.h.b16 %v240
    %v624 = vunpack.c.l.b16 %v241
    %v625 = vunpack.c.h.b16 %v241
    %v626 = vunpack.c.l.b16 %v242
    %v627 = vunpack.c.h.b16 %v242
    %v628 = vunpack.c.l.b16 %v243
    %v629 = vunpack.c.h.b16 %v243
    %v630 = vunpack.c.l.b16 %v244
    %v631 = vunpack.c.h.b16 %v244
    %v632 = vunpack.c.l.b16 %v245
    %v633 = vunpack.c.h.b16 %v245
    %v634 = vunpack.c.l.b16 %v246
    %v635 = vunpack.c.h.b16 %v246
    %v636 = vunpack.c.l.b16 %v247
    %v637 = vunpack.c.h.b16 %v247
    %v638 = vunpack.c.l.b16 %v248
    %v639 = vunpack.c.h.b16 %v248
    %v640 = vunpack.c.l.b16 %v249
    %v641 = vunpack.c.h.b16 %v249
    %v642 = vunpack.c.l.b16 %v250
    %v643 = vunpack.c.h.b16 %v250
    %v644 = vunpack.c.l.b16 %v251
    %v645 = vunpack.c.h.b16 %v251
    %v646 = vunpack.c.l.b16 %v252
    %v647 = vunpack.c.h.b16 %v252
    %v648 = vunpack.c.l.b16 %v253
    %v649 = vunpack.c.h.b16 %v253
    %v650 = vunpack.c.l.b16 %v254
    %v651 = vunpack.c.h.b16 %v254
    %v652 = vunpack.c.l.b16 %v255
    %v653 = vunpack.c.h.b16 %v255
    %v654 = vunpack.c.l.b16 %v256
    %v655 = vunpack.c.h.b16 %v256
    %v656 = vunpack.c.l.b16 %v257
    %v657 = vunpack.c.h.b16 %v257
    %v658 = vunpack.c.l.b16 %v258
    %v659 = vunpack.c.h.b16 %v258
    %v660 = vunpack.c.l.b16 %v259
    %v661 = vunpack.c.h.b16 %v259
    %v662 = vunpack.c.l.b16 %v260
    %v663 = vunpack.c.h.b16 %v260
    %v664 = vunpack.c.l.b16 %v261
    %v665 = vunpack.c.h.b16 %v261
    %v666 = vunpack.c.l.b16 %v262
    %v667 = vunpack.c.h.b16 %v262
    %v668 = vunpack.c.l.b16 %v263
    %v669 = vunpack.c.h.b16 %v263
    %v670 = vunpack.c.l.b16 %v264
    %v671 = vunpack.c.h.b16 %v264
    %v672 = vunpack.c.l.b16 %v265
    %v673 = vunpack.c.h.b16 %v265
    %v674 = vunpack.c.l.b16 %v266
    %v675 = vunpack.c.h.b16 %v266
    %v676 = vunpack.c.l.b16 %v267
    %v677 = vunpack.c.h.b16 %v267
    %v678 = vpack.c.b16 %v618, %v614
    %v679 = vpack.c.b16 %v619, %v615
    %v680 = vpack.c.b16 %v620, %v616
    %v681 = vpack.c.b16 %v621, %v617
    %v682 = vpack.c.b16 %v626, %v622
    %v683 = vpack.c.b16 %v627, %v623
    %v684 = vpack.c.b16 %v628, %v624
    %v685 = vpack.c.b16 %v629, %v625
    %v686 = vpack.c.b16 %v634, %v630
    %v687 = vpack.c.b16 %v635, %v631
    %v688 = vpack.c.b16 %v636, %v632
    %v689 = vpack.c.b16 %v637, %v633
    %v690 = vpack.c.b16 %v642, %v638
    %v691 = vpack.c.b16 %v643, %v639
    %v692 = vpack.c.b16 %v644, %v640
    %v693 = vpack.c.b16 %v645, %v641
    %v694 = vpack.c.b16 %v650, %v646
    %v695 = vpack.c.b16 %v651, %v647
    %v696 = vpack.c.b16 %v652, %v648
    %v697 = vpack.c.b16 %v653, %v649
    %v698 = vpack.c.b16 %v658, %v654
    %v699 = vpack.c.b16 %v659, %v655
    %v700 = vpack.c.b16 %v660, %v656
    %v701 = vpack.c.b16 %v661, %v657
    %v702 = vpack.c.b16 %v666, %v662
    %v703 = vpack.c.b16 %v667, %v663
    %v704 = vpack.c.b16 %v668, %v664
    %v705 = vpack.c.b16 %v669, %v665
    %v706 = vpack.c.b16 %v674, %v670
    %v707 = vpack.c.b16 %v675, %v671
    %v708 = vpack.c.b16 %v676, %v672
    %v709 = vpack.c.b16 %v677, %v673
    %742 = vmatpush.bf16.msra.mxu0 %v706
    %743 = vmatpush.bf16.msra.mxu0 %v702
    %744 = vmatpush.bf16.msra.mxu0 %v698
    %745 = vmatpush.bf16.msra.mxu0 %v694
    %746 = vmatpush.bf16.msra.mxu0 %v690
    %747 = vmatpush.bf16.msra.mxu0 %v686
    %748 = vmatpush.bf16.msra.mxu0 %v682
    %749 = vmatpush.bf16.msra.mxu0 %v678
    %750 = vmatmul.bf16.gmra.mxu0 %v577
    %v751 = vpop.f32.mrf.mxu0
    %v752 = vadd.f32 %v578, %v751
    %v753 = vpop.f32.mrf.mxu0
    %754 = vdwg.mxu0
    %755 = vmatpush.bf16.msra.mxu0 %v707
    %756 = vmatpush.bf16.msra.mxu0 %v703
    %757 = vmatpush.bf16.msra.mxu0 %v699
    %758 = vmatpush.bf16.msra.mxu0 %v695
    %759 = vmatpush.bf16.msra.mxu0 %v691
    %760 = vmatpush.bf16.msra.mxu0 %v687
    %761 = vmatpush.bf16.msra.mxu0 %v683
    %762 = vmatpush.bf16.msra.mxu0 %v679
    %763 = vmatmul.bf16.gmra.mxu0 %v577
    %v764 = vpop.f32.mrf.mxu0
    %v765 = vadd.f32 %v579, %v764
    %v766 = vpop.f32.mrf.mxu0
    %767 = vdwg.mxu0
    %768 = vmatpush.bf16.msra.mxu0 %v708
    %769 = vmatpush.bf16.msra.mxu0 %v704
    %770 = vmatpush.bf16.msra.mxu0 %v700
    %771 = vmatpush.bf16.msra.mxu0 %v696
    %772 = vmatpush.bf16.msra.mxu0 %v692
    %773 = vmatpush.bf16.msra.mxu0 %v688
    %774 = vmatpush.bf16.msra.mxu0 %v684
    %775 = vmatpush.bf16.msra.mxu0 %v680
    %776 = vmatmul.bf16.gmra.mxu0 %v577
    %v777 = vpop.f32.mrf.mxu0
    %v778 = vadd.f32 %v580, %v777
    %v779 = vpop.f32.mrf.mxu0
    %780 = vdwg.mxu0
    %781 = vmatpush.bf16.msra.mxu0 %v709
    %782 = vmatpush.bf16.msra.mxu0 %v705
    %783 = vmatpush.bf16.msra.mxu0 %v701
    %784 = vmatpush.bf16.msra.mxu0 %v697
    %785 = vmatpush.bf16.msra.mxu0 %v693
    %786 = vmatpush.bf16.msra.mxu0 %v689
    %787 = vmatpush.bf16.msra.mxu0 %v685
    %788 = vmatpush.bf16.msra.mxu0 %v681
    %789 = vmatmul.bf16.gmra.mxu0 %v577
    %v790 = vpop.f32.mrf.mxu0
    %v791 = vadd.f32 %v581, %v790
    %v792 = vpop.f32.mrf.mxu0
    %793 = vdwg.mxu0
    %v794 = vxor.u32 %v752, 2147483648
    %v795 = vxor.u32 %v765, 2147483648
    %v796 = vxor.u32 %v778, 2147483648
    %v797 = vmul.f32 %v794, 1.442695
    %v798 = vpow.pop %v797
    %v799 = vmul.f32 %v795, 1.442695
    %v800 = vpow.pop %v799
    %v801 = vmul.f32 %v796, 1.442695
    %v802 = vpow.pop %v801
    %v803 = vadd.f32 %v798, 1.0
    %v804 = vadd.f32 %v800, 1.0
    %v805 = vadd.f32 %v802, 1.0
    %v806 = vrcp.pop %v803
    %v807 = vmul.f32 %v803, %v806
    %v808 = vsub.f32 1.0, %v807
    %v809 = vmul.f32 %v806, %v808
    %v810 = vadd.f32 %v806, %v809
    %vm811 = vweird.f32 %v803
    %vm812 = vweird.f32 %v806
    %vm813 = vmor %vm811, %vm812
    %v814 = vsel %vm813, %v806, %v810
    %v815 = vand.u32 2147483647, %v803
    %vm816 = vcmp.eq.f32.partialorder %v815, 8.507059e+37
    %v817 = vand.u32 %v803, 2147483648
    %v818 = vor.u32 1.1754944e-38, %v817
    %v819 = vsel %vm816, %v818, %v814
    %v820 = vmul.f32 1.0, %v819
    %v821 = vrcp.pop %v804
    %v822 = vmul.f32 %v804, %v821
    %v823 = vsub.f32 1.0, %v822
    %v824 = vmul.f32 %v821, %v823
    %v825 = vadd.f32 %v821, %v824
    %vm826 = vweird.f32 %v804
    %vm827 = vweird.f32 %v821
    %vm828 = vmor %vm826, %vm827
    %v829 = vsel %vm828, %v821, %v825
    %v830 = vand.u32 2147483647, %v804
    %vm831 = vcmp.eq.f32.partialorder %v830, 8.507059e+37
    %v832 = vand.u32 %v804, 2147483648
    %v833 = vor.u32 1.1754944e-38, %v832
    %v834 = vsel %vm831, %v833, %v829
    %v835 = vmul.f32 1.0, %v834
    %v836 = vrcp.pop %v805
    %v837 = vmul.f32 %v805, %v836
    %v838 = vsub.f32 1.0, %v837
    %v839 = vmul.f32 %v836, %v838
    %v840 = vadd.f32 %v836, %v839
    %vm841 = vweird.f32 %v805
    %vm842 = vweird.f32 %v836
    %vm843 = vmor %vm841, %vm842
    %v844 = vsel %vm843, %v836, %v840
    %v845 = vand.u32 2147483647, %v805
    %vm846 = vcmp.eq.f32.partialorder %v845, 8.507059e+37
    %v847 = vand.u32 %v805, 2147483648
    %v848 = vor.u32 1.1754944e-38, %v847
    %v849 = vsel %vm846, %v848, %v844
    %v850 = vmul.f32 1.0, %v849
    %v851 = vtanh.pop %v791
    %v852 = vmul.f32 %v835, %v274
    %v853 = vmul.f32 %v820, %v851
    %v854 = vadd.f32 %v852, %v853
    %v855 = vtanh.pop %v854
    %v856 = vmul.f32 %v850, %v855
    %v857 = vstv %s576
    %vm858 = vcmp.lt.s32.totalorder %v857, %v202
    %v859 = vsel %vm858, 1, 0
    %860 = vset.pattern.permute.xlu0 0
    %861 = vperm.xlu0 %860, %v859
    %v862 = vpop.permute.xlu0 %861
    %vm863 = vcmp.eq.s32.totalorder %v862, 1
    %v864 = vsel %vm863, %v856, %v271
    %v865 = vsel %vm863, %v854, %v274
    %v866 = vsel %vm863, %v856, 0.0
    %vm867 = vcmp.eq.f32.partialorder %v866, 0.0
    %v868 = vsel %vm867, -1e+09, %v866
    %v869 = vmax.f32 %v277, %v868
    %s870 = sadd.s32 %s268, 1
    %s871 = scalar_lea.vmem %s1, 16
    %v872 = vld [vmem:[%s871] sm:$0xff]
    %v873 = vld [vmem:[%s871 + $0x8] sm:$0xff]
    %v874 = vpack.c.bf16 %v567, %v567
    %v875 = vunpack.c.l.bf16 %v872
    %v876 = vunpack.c.h.bf16 %v872
    %v877 = vunpack.c.l.bf16 %v873
    %v878 = vunpack.c.h.bf16 %v873
    %879 = vmatpush.bf16.msra.mxu0 %v409
    %880 = vmatpush.bf16.msra.mxu0 %v405
    %881 = vmatpush.bf16.msra.mxu0 %v401
    %882 = vmatpush.bf16.msra.mxu0 %v397
    %883 = vmatpush.bf16.msra.mxu0 %v393
    %884 = vmatpush.bf16.msra.mxu0 %v389
    %885 = vmatpush.bf16.msra.mxu0 %v385
    %886 = vmatpush.bf16.msra.mxu0 %v381
    %887 = vmatmul.bf16.gmra.mxu0 %v874
    %v888 = vpop.f32.mrf.mxu0
    %v889 = vadd.f32 %v875, %v888
    %v890 = vpop.f32.mrf.mxu0
    %891 = vdwg.mxu0
    %892 = vmatpush.bf16.msra.mxu0 %v410
    %893 = vmatpush.bf16.msra.mxu0 %v406
    %894 = vmatpush.bf16.msra.mxu0 %v402
    %895 = vmatpush.bf16.msra.mxu0 %v398
    %896 = vmatpush.bf16.msra.mxu0 %v394
    %897 = vmatpush.bf16.msra.mxu0 %v390
    %898 = vmatpush.bf16.msra.mxu0 %v386
    %899 = vmatpush.bf16.msra.mxu0 %v382
    %900 = vmatmul.bf16.gmra.mxu0 %v874
    %v901 = vpop.f32.mrf.mxu0
    %v902 = vadd.f32 %v876, %v901
    %v903 = vpop.f32.mrf.mxu0
    %904 = vdwg.mxu0
    %905 = vmatpush.bf16.msra.mxu0 %v411
    %906 = vmatpush.bf16.msra.mxu0 %v407
    %907 = vmatpush.bf16.msra.mxu0 %v403
    %908 = vmatpush.bf16.msra.mxu0 %v399
    %909 = vmatpush.bf16.msra.mxu0 %v395
    %910 = vmatpush.bf16.msra.mxu0 %v391
    %911 = vmatpush.bf16.msra.mxu0 %v387
    %912 = vmatpush.bf16.msra.mxu0 %v383
    %913 = vmatmul.bf16.gmra.mxu0 %v874
    %v914 = vpop.f32.mrf.mxu0
    %v915 = vadd.f32 %v877, %v914
    %v916 = vpop.f32.mrf.mxu0
    %917 = vdwg.mxu0
    %918 = vmatpush.bf16.msra.mxu0 %v412
    %919 = vmatpush.bf16.msra.mxu0 %v408
    %920 = vmatpush.bf16.msra.mxu0 %v404
    %921 = vmatpush.bf16.msra.mxu0 %v400
    %922 = vmatpush.bf16.msra.mxu0 %v396
    %923 = vmatpush.bf16.msra.mxu0 %v392
    %924 = vmatpush.bf16.msra.mxu0 %v388
    %925 = vmatpush.bf16.msra.mxu0 %v384
    %926 = vmatmul.bf16.gmra.mxu0 %v874
    %v927 = vpop.f32.mrf.mxu0
    %v928 = vadd.f32 %v878, %v927
    %v929 = vpop.f32.mrf.mxu0
    %930 = vdwg.mxu0
    %v931 = vxor.u32 %v889, 2147483648
    %v932 = vxor.u32 %v902, 2147483648
    %v933 = vxor.u32 %v915, 2147483648
    %v934 = vmul.f32 %v931, 1.442695
    %v935 = vpow.pop %v934
    %v936 = vmul.f32 %v932, 1.442695
    %v937 = vpow.pop %v936
    %v938 = vmul.f32 %v933, 1.442695
    %v939 = vpow.pop %v938
    %v940 = vadd.f32 %v935, 1.0
    %v941 = vadd.f32 %v937, 1.0
    %v942 = vadd.f32 %v939, 1.0
    %v943 = vrcp.pop %v940
    %v944 = vmul.f32 %v940, %v943
    %v945 = vsub.f32 1.0, %v944
    %v946 = vmul.f32 %v943, %v945
    %v947 = vadd.f32 %v943, %v946
    %vm948 = vweird.f32 %v940
    %vm949 = vweird.f32 %v943
    %vm950 = vmor %vm948, %vm949
    %v951 = vsel %vm950, %v943, %v947
    %v952 = vand.u32 2147483647, %v940
    %vm953 = vcmp.eq.f32.partialorder %v952, 8.507059e+37
    %v954 = vand.u32 %v940, 2147483648
    %v955 = vor.u32 1.1754944e-38, %v954
    %v956 = vsel %vm953, %v955, %v951
    %v957 = vmul.f32 1.0, %v956
    %v958 = vrcp.pop %v941
    %v959 = vmul.f32 %v941, %v958
    %v960 = vsub.f32 1.0, %v959
    %v961 = vmul.f32 %v958, %v960
    %v962 = vadd.f32 %v958, %v961
    %vm963 = vweird.f32 %v941
    %vm964 = vweird.f32 %v958
    %vm965 = vmor %vm963, %vm964
    %v966 = vsel %vm965, %v958, %v962
    %v967 = vand.u32 2147483647, %v941
    %vm968 = vcmp.eq.f32.partialorder %v967, 8.507059e+37
    %v969 = vand.u32 %v941, 2147483648
    %v970 = vor.u32 1.1754944e-38, %v969
    %v971 = vsel %vm968, %v970, %v966
    %v972 = vmul.f32 1.0, %v971
    %v973 = vrcp.pop %v942
    %v974 = vmul.f32 %v942, %v973
    %v975 = vsub.f32 1.0, %v974
    %v976 = vmul.f32 %v973, %v975
    %v977 = vadd.f32 %v973, %v976
    %vm978 = vweird.f32 %v942
    %vm979 = vweird.f32 %v973
    %vm980 = vmor %vm978, %vm979
    %v981 = vsel %vm980, %v973, %v977
    %v982 = vand.u32 2147483647, %v942
    %vm983 = vcmp.eq.f32.partialorder %v982, 8.507059e+37
    %v984 = vand.u32 %v942, 2147483648
    %v985 = vor.u32 1.1754944e-38, %v984
    %v986 = vsel %vm983, %v985, %v981
    %v987 = vmul.f32 1.0, %v986
    %v988 = vtanh.pop %v928
    %v989 = vmul.f32 %v972, %v568
    %v990 = vmul.f32 %v957, %v988
    %v991 = vadd.f32 %v989, %v990
    %v992 = vtanh.pop %v991
    %v993 = vmul.f32 %v987, %v992
    %v994 = vstv %s870
    %vm995 = vcmp.lt.s32.totalorder %v994, %v202
    %v996 = vsel %vm995, 1, 0
    %997 = vset.pattern.permute.xlu0 0
    %998 = vperm.xlu0 %997, %v996
    %v999 = vpop.permute.xlu0 %998
    %vm1000 = vcmp.eq.s32.totalorder %v999, 1
    %v1001 = vsel %vm1000, %v993, %v567
    %v1002 = vsel %vm1000, %v991, %v568
    %v1003 = vsel %vm1000, %v993, 0.0
    %vm1004 = vcmp.eq.f32.partialorder %v1003, 0.0
    %v1005 = vsel %vm1004, -1e+09, %v1003
    %v1006 = vmax.f32 %v572, %v1005
    %s1007 = scalar_lea.vmem %s40, 96
    %v1008 = vld [vmem:[%s1007] sm:$0xff]
    %v1009 = vld [vmem:[%s1007 + $0x8] sm:$0xff]
    %s1010 = ssub.s32 6, %s268
    %v1011 = vpack.c.bf16 %v864, %v864
    %v1012 = vunpack.c.l.bf16 %v1008
    %v1013 = vunpack.c.h.bf16 %v1008
    %v1014 = vunpack.c.l.bf16 %v1009
    %v1015 = vunpack.c.h.bf16 %v1009
    %1016 = vmatpush.bf16.msra.mxu0 %v706
    %1017 = vmatpush.bf16.msra.mxu0 %v702
    %1018 = vmatpush.bf16.msra.mxu0 %v698
    %1019 = vmatpush.bf16.msra.mxu0 %v694
    %1020 = vmatpush.bf16.msra.mxu0 %v690
    %1021 = vmatpush.bf16.msra.mxu0 %v686
    %1022 = vmatpush.bf16.msra.mxu0 %v682
    %1023 = vmatpush.bf16.msra.mxu0 %v678
    %1024 = vmatmul.bf16.gmra.mxu0 %v1011
    %v1025 = vpop.f32.mrf.mxu0
    %v1026 = vadd.f32 %v1012, %v1025
    %v1027 = vpop.f32.mrf.mxu0
    %1028 = vdwg.mxu0
    %1029 = vmatpush.bf16.msra.mxu0 %v707
    %1030 = vmatpush.bf16.msra.mxu0 %v703
    %1031 = vmatpush.bf16.msra.mxu0 %v699
    %1032 = vmatpush.bf16.msra.mxu0 %v695
    %1033 = vmatpush.bf16.msra.mxu0 %v691
    %1034 = vmatpush.bf16.msra.mxu0 %v687
    %1035 = vmatpush.bf16.msra.mxu0 %v683
    %1036 = vmatpush.bf16.msra.mxu0 %v679
    %1037 = vmatmul.bf16.gmra.mxu0 %v1011
    %v1038 = vpop.f32.mrf.mxu0
    %v1039 = vadd.f32 %v1013, %v1038
    %v1040 = vpop.f32.mrf.mxu0
    %1041 = vdwg.mxu0
    %1042 = vmatpush.bf16.msra.mxu0 %v708
    %1043 = vmatpush.bf16.msra.mxu0 %v704
    %1044 = vmatpush.bf16.msra.mxu0 %v700
    %1045 = vmatpush.bf16.msra.mxu0 %v696
    %1046 = vmatpush.bf16.msra.mxu0 %v692
    %1047 = vmatpush.bf16.msra.mxu0 %v688
    %1048 = vmatpush.bf16.msra.mxu0 %v684
    %1049 = vmatpush.bf16.msra.mxu0 %v680
    %1050 = vmatmul.bf16.gmra.mxu0 %v1011
    %v1051 = vpop.f32.mrf.mxu0
    %v1052 = vadd.f32 %v1014, %v1051
    %v1053 = vpop.f32.mrf.mxu0
    %1054 = vdwg.mxu0
    %1055 = vmatpush.bf16.msra.mxu0 %v709
    %1056 = vmatpush.bf16.msra.mxu0 %v705
    %1057 = vmatpush.bf16.msra.mxu0 %v701
    %1058 = vmatpush.bf16.msra.mxu0 %v697
    %1059 = vmatpush.bf16.msra.mxu0 %v693
    %1060 = vmatpush.bf16.msra.mxu0 %v689
    %1061 = vmatpush.bf16.msra.mxu0 %v685
    %1062 = vmatpush.bf16.msra.mxu0 %v681
    %1063 = vmatmul.bf16.gmra.mxu0 %v1011
    %v1064 = vpop.f32.mrf.mxu0
    %v1065 = vadd.f32 %v1015, %v1064
    %v1066 = vpop.f32.mrf.mxu0
    %1067 = vdwg.mxu0
    %v1068 = vxor.u32 %v1026, 2147483648
    %v1069 = vxor.u32 %v1039, 2147483648
    %v1070 = vxor.u32 %v1052, 2147483648
    %v1071 = vmul.f32 %v1068, 1.442695
    %v1072 = vpow.pop %v1071
    %v1073 = vmul.f32 %v1069, 1.442695
    %v1074 = vpow.pop %v1073
    %v1075 = vmul.f32 %v1070, 1.442695
    %v1076 = vpow.pop %v1075
    %v1077 = vadd.f32 %v1072, 1.0
    %v1078 = vadd.f32 %v1074, 1.0
    %v1079 = vadd.f32 %v1076, 1.0
    %v1080 = vrcp.pop %v1077
    %v1081 = vmul.f32 %v1077, %v1080
    %v1082 = vsub.f32 1.0, %v1081
    %v1083 = vmul.f32 %v1080, %v1082
    %v1084 = vadd.f32 %v1080, %v1083
    %vm1085 = vweird.f32 %v1077
    %vm1086 = vweird.f32 %v1080
    %vm1087 = vmor %vm1085, %vm1086
    %v1088 = vsel %vm1087, %v1080, %v1084
    %v1089 = vand.u32 2147483647, %v1077
    %vm1090 = vcmp.eq.f32.partialorder %v1089, 8.507059e+37
    %v1091 = vand.u32 %v1077, 2147483648
    %v1092 = vor.u32 1.1754944e-38, %v1091
    %v1093 = vsel %vm1090, %v1092, %v1088
    %v1094 = vmul.f32 1.0, %v1093
    %v1095 = vrcp.pop %v1078
    %v1096 = vmul.f32 %v1078, %v1095
    %v1097 = vsub.f32 1.0, %v1096
    %v1098 = vmul.f32 %v1095, %v1097
    %v1099 = vadd.f32 %v1095, %v1098
    %vm1100 = vweird.f32 %v1078
    %vm1101 = vweird.f32 %v1095
    %vm1102 = vmor %vm1100, %vm1101
    %v1103 = vsel %vm1102, %v1095, %v1099
    %v1104 = vand.u32 2147483647, %v1078
    %vm1105 = vcmp.eq.f32.partialorder %v1104, 8.507059e+37
    %v1106 = vand.u32 %v1078, 2147483648
    %v1107 = vor.u32 1.1754944e-38, %v1106
    %v1108 = vsel %vm1105, %v1107, %v1103
    %v1109 = vmul.f32 1.0, %v1108
    %v1110 = vrcp.pop %v1079
    %v1111 = vmul.f32 %v1079, %v1110
    %v1112 = vsub.f32 1.0, %v1111
    %v1113 = vmul.f32 %v1110, %v1112
    %v1114 = vadd.f32 %v1110, %v1113
    %vm1115 = vweird.f32 %v1079
    %vm1116 = vweird.f32 %v1110
    %vm1117 = vmor %vm1115, %vm1116
    %v1118 = vsel %vm1117, %v1110, %v1114
    %v1119 = vand.u32 2147483647, %v1079
    %vm1120 = vcmp.eq.f32.partialorder %v1119, 8.507059e+37
    %v1121 = vand.u32 %v1079, 2147483648
    %v1122 = vor.u32 1.1754944e-38, %v1121
    %v1123 = vsel %vm1120, %v1122, %v1118
    %v1124 = vmul.f32 1.0, %v1123
    %v1125 = vtanh.pop %v1065
    %v1126 = vmul.f32 %v1109, %v865
    %v1127 = vmul.f32 %v1094, %v1125
    %v1128 = vadd.f32 %v1126, %v1127
    %v1129 = vtanh.pop %v1128
    %v1130 = vmul.f32 %v1124, %v1129
    %v1131 = vstv %s1010
    %vm1132 = vcmp.lt.s32.totalorder %v1131, %v202
    %v1133 = vsel %vm1132, 1, 0
    %1134 = vset.pattern.permute.xlu0 0
    %1135 = vperm.xlu0 %1134, %v1133
    %v1136 = vpop.permute.xlu0 %1135
    %vm1137 = vcmp.eq.s32.totalorder %v1136, 1
    %v1138 = vsel %vm1137, %v1130, %v864
    %v1139 = vsel %vm1137, %v1128, %v865
    %v1140 = vsel %vm1137, %v1130, 0.0
    %vm1141 = vcmp.eq.f32.partialorder %v1140, 0.0
    %v1142 = vsel %vm1141, -1e+09, %v1140
    %v1143 = vmax.f32 %v869, %v1142
    %s1144 = sadd.s32 %s268, 2
    %s1145 = scalar_lea.vmem %s1, 32
    %v1146 = vld [vmem:[%s1145] sm:$0xff]
    %v1147 = vld [vmem:[%s1145 + $0x8] sm:$0xff]
    %v1148 = vpack.c.bf16 %v1001, %v1001
    %v1149 = vunpack.c.l.bf16 %v1146
    %v1150 = vunpack.c.h.bf16 %v1146
    %v1151 = vunpack.c.l.bf16 %v1147
    %v1152 = vunpack.c.h.bf16 %v1147
    %1153 = vmatpush.bf16.msra.mxu0 %v409
    %1154 = vmatpush.bf16.msra.mxu0 %v405
    %1155 = vmatpush.bf16.msra.mxu0 %v401
    %1156 = vmatpush.bf16.msra.mxu0 %v397
    %1157 = vmatpush.bf16.msra.mxu0 %v393
    %1158 = vmatpush.bf16.msra.mxu0 %v389
    %1159 = vmatpush.bf16.msra.mxu0 %v385
    %1160 = vmatpush.bf16.msra.mxu0 %v381
    %1161 = vmatmul.bf16.gmra.mxu0 %v1148
    %v1162 = vpop.f32.mrf.mxu0
    %v1163 = vadd.f32 %v1149, %v1162
    %v1164 = vpop.f32.mrf.mxu0
    %1165 = vdwg.mxu0
    %1166 = vmatpush.bf16.msra.mxu0 %v410
    %1167 = vmatpush.bf16.msra.mxu0 %v406
    %1168 = vmatpush.bf16.msra.mxu0 %v402
    %1169 = vmatpush.bf16.msra.mxu0 %v398
    %1170 = vmatpush.bf16.msra.mxu0 %v394
    %1171 = vmatpush.bf16.msra.mxu0 %v390
    %1172 = vmatpush.bf16.msra.mxu0 %v386
    %1173 = vmatpush.bf16.msra.mxu0 %v382
    %1174 = vmatmul.bf16.gmra.mxu0 %v1148
    %v1175 = vpop.f32.mrf.mxu0
    %v1176 = vadd.f32 %v1150, %v1175
    %v1177 = vpop.f32.mrf.mxu0
    %1178 = vdwg.mxu0
    %1179 = vmatpush.bf16.msra.mxu0 %v411
    %1180 = vmatpush.bf16.msra.mxu0 %v407
    %1181 = vmatpush.bf16.msra.mxu0 %v403
    %1182 = vmatpush.bf16.msra.mxu0 %v399
    %1183 = vmatpush.bf16.msra.mxu0 %v395
    %1184 = vmatpush.bf16.msra.mxu0 %v391
    %1185 = vmatpush.bf16.msra.mxu0 %v387
    %1186 = vmatpush.bf16.msra.mxu0 %v383
    %1187 = vmatmul.bf16.gmra.mxu0 %v1148
    %v1188 = vpop.f32.mrf.mxu0
    %v1189 = vadd.f32 %v1151, %v1188
    %v1190 = vpop.f32.mrf.mxu0
    %1191 = vdwg.mxu0
    %1192 = vmatpush.bf16.msra.mxu0 %v412
    %1193 = vmatpush.bf16.msra.mxu0 %v408
    %1194 = vmatpush.bf16.msra.mxu0 %v404
    %1195 = vmatpush.bf16.msra.mxu0 %v400
    %1196 = vmatpush.bf16.msra.mxu0 %v396
    %1197 = vmatpush.bf16.msra.mxu0 %v392
    %1198 = vmatpush.bf16.msra.mxu0 %v388
    %1199 = vmatpush.bf16.msra.mxu0 %v384
    %1200 = vmatmul.bf16.gmra.mxu0 %v1148
    %v1201 = vpop.f32.mrf.mxu0
    %v1202 = vadd.f32 %v1152, %v1201
    %v1203 = vpop.f32.mrf.mxu0
    %1204 = vdwg.mxu0
    %v1205 = vxor.u32 %v1163, 2147483648
    %v1206 = vxor.u32 %v1176, 2147483648
    %v1207 = vxor.u32 %v1189, 2147483648
    %v1208 = vmul.f32 %v1205, 1.442695
    %v1209 = vpow.pop %v1208
    %v1210 = vmul.f32 %v1206, 1.442695
    %v1211 = vpow.pop %v1210
    %v1212 = vmul.f32 %v1207, 1.442695
    %v1213 = vpow.pop %v1212
    %v1214 = vadd.f32 %v1209, 1.0
    %v1215 = vadd.f32 %v1211, 1.0
    %v1216 = vadd.f32 %v1213, 1.0
    %v1217 = vrcp.pop %v1214
    %v1218 = vmul.f32 %v1214, %v1217
    %v1219 = vsub.f32 1.0, %v1218
    %v1220 = vmul.f32 %v1217, %v1219
    %v1221 = vadd.f32 %v1217, %v1220
    %vm1222 = vweird.f32 %v1214
    %vm1223 = vweird.f32 %v1217
    %vm1224 = vmor %vm1222, %vm1223
    %v1225 = vsel %vm1224, %v1217, %v1221
    %v1226 = vand.u32 2147483647, %v1214
    %vm1227 = vcmp.eq.f32.partialorder %v1226, 8.507059e+37
    %v1228 = vand.u32 %v1214, 2147483648
    %v1229 = vor.u32 1.1754944e-38, %v1228
    %v1230 = vsel %vm1227, %v1229, %v1225
    %v1231 = vmul.f32 1.0, %v1230
    %v1232 = vrcp.pop %v1215
    %v1233 = vmul.f32 %v1215, %v1232
    %v1234 = vsub.f32 1.0, %v1233
    %v1235 = vmul.f32 %v1232, %v1234
    %v1236 = vadd.f32 %v1232, %v1235
    %vm1237 = vweird.f32 %v1215
    %vm1238 = vweird.f32 %v1232
    %vm1239 = vmor %vm1237, %vm1238
    %v1240 = vsel %vm1239, %v1232, %v1236
    %v1241 = vand.u32 2147483647, %v1215
    %vm1242 = vcmp.eq.f32.partialorder %v1241, 8.507059e+37
    %v1243 = vand.u32 %v1215, 2147483648
    %v1244 = vor.u32 1.1754944e-38, %v1243
    %v1245 = vsel %vm1242, %v1244, %v1240
    %v1246 = vmul.f32 1.0, %v1245
    %v1247 = vrcp.pop %v1216
    %v1248 = vmul.f32 %v1216, %v1247
    %v1249 = vsub.f32 1.0, %v1248
    %v1250 = vmul.f32 %v1247, %v1249
    %v1251 = vadd.f32 %v1247, %v1250
    %vm1252 = vweird.f32 %v1216
    %vm1253 = vweird.f32 %v1247
    %vm1254 = vmor %vm1252, %vm1253
    %v1255 = vsel %vm1254, %v1247, %v1251
    %v1256 = vand.u32 2147483647, %v1216
    %vm1257 = vcmp.eq.f32.partialorder %v1256, 8.507059e+37
    %v1258 = vand.u32 %v1216, 2147483648
    %v1259 = vor.u32 1.1754944e-38, %v1258
    %v1260 = vsel %vm1257, %v1259, %v1255
    %v1261 = vmul.f32 1.0, %v1260
    %v1262 = vtanh.pop %v1202
    %v1263 = vmul.f32 %v1246, %v1002
    %v1264 = vmul.f32 %v1231, %v1262
    %v1265 = vadd.f32 %v1263, %v1264
    %v1266 = vtanh.pop %v1265
    %v1267 = vmul.f32 %v1261, %v1266
    %v1268 = vstv %s1144
    %vm1269 = vcmp.lt.s32.totalorder %v1268, %v202
    %v1270 = vsel %vm1269, 1, 0
    %1271 = vset.pattern.permute.xlu0 0
    %1272 = vperm.xlu0 %1271, %v1270
    %v1273 = vpop.permute.xlu0 %1272
    %vm1274 = vcmp.eq.s32.totalorder %v1273, 1
    %v1275 = vsel %vm1274, %v1267, %v1001
    %v1276 = vsel %vm1274, %v1265, %v1002
    %v1277 = vsel %vm1274, %v1267, 0.0
    %vm1278 = vcmp.eq.f32.partialorder %v1277, 0.0
    %v1279 = vsel %vm1278, -1e+09, %v1277
    %v1280 = vmax.f32 %v1006, %v1279
    %s1281 = scalar_lea.vmem %s40, 80
    %v1282 = vld [vmem:[%s1281] sm:$0xff]
    %v1283 = vld [vmem:[%s1281 + $0x8] sm:$0xff]
    %s1284 = ssub.s32 5, %s268
    %v1285 = vpack.c.bf16 %v1138, %v1138
    %v1286 = vunpack.c.l.bf16 %v1282
    %v1287 = vunpack.c.h.bf16 %v1282
    %v1288 = vunpack.c.l.bf16 %v1283
    %v1289 = vunpack.c.h.bf16 %v1283
    %1290 = vmatpush.bf16.msra.mxu0 %v706
    %1291 = vmatpush.bf16.msra.mxu0 %v702
    %1292 = vmatpush.bf16.msra.mxu0 %v698
    %1293 = vmatpush.bf16.msra.mxu0 %v694
    %1294 = vmatpush.bf16.msra.mxu0 %v690
    %1295 = vmatpush.bf16.msra.mxu0 %v686
    %1296 = vmatpush.bf16.msra.mxu0 %v682
    %1297 = vmatpush.bf16.msra.mxu0 %v678
    %1298 = vmatmul.bf16.gmra.mxu0 %v1285
    %v1299 = vpop.f32.mrf.mxu0
    %v1300 = vadd.f32 %v1286, %v1299
    %v1301 = vpop.f32.mrf.mxu0
    %1302 = vdwg.mxu0
    %1303 = vmatpush.bf16.msra.mxu0 %v707
    %1304 = vmatpush.bf16.msra.mxu0 %v703
    %1305 = vmatpush.bf16.msra.mxu0 %v699
    %1306 = vmatpush.bf16.msra.mxu0 %v695
    %1307 = vmatpush.bf16.msra.mxu0 %v691
    %1308 = vmatpush.bf16.msra.mxu0 %v687
    %1309 = vmatpush.bf16.msra.mxu0 %v683
    %1310 = vmatpush.bf16.msra.mxu0 %v679
    %1311 = vmatmul.bf16.gmra.mxu0 %v1285
    %v1312 = vpop.f32.mrf.mxu0
    %v1313 = vadd.f32 %v1287, %v1312
    %v1314 = vpop.f32.mrf.mxu0
    %1315 = vdwg.mxu0
    %1316 = vmatpush.bf16.msra.mxu0 %v708
    %1317 = vmatpush.bf16.msra.mxu0 %v704
    %1318 = vmatpush.bf16.msra.mxu0 %v700
    %1319 = vmatpush.bf16.msra.mxu0 %v696
    %1320 = vmatpush.bf16.msra.mxu0 %v692
    %1321 = vmatpush.bf16.msra.mxu0 %v688
    %1322 = vmatpush.bf16.msra.mxu0 %v684
    %1323 = vmatpush.bf16.msra.mxu0 %v680
    %1324 = vmatmul.bf16.gmra.mxu0 %v1285
    %v1325 = vpop.f32.mrf.mxu0
    %v1326 = vadd.f32 %v1288, %v1325
    %v1327 = vpop.f32.mrf.mxu0
    %1328 = vdwg.mxu0
    %1329 = vmatpush.bf16.msra.mxu0 %v709
    %1330 = vmatpush.bf16.msra.mxu0 %v705
    %1331 = vmatpush.bf16.msra.mxu0 %v701
    %1332 = vmatpush.bf16.msra.mxu0 %v697
    %1333 = vmatpush.bf16.msra.mxu0 %v693
    %1334 = vmatpush.bf16.msra.mxu0 %v689
    %1335 = vmatpush.bf16.msra.mxu0 %v685
    %1336 = vmatpush.bf16.msra.mxu0 %v681
    %1337 = vmatmul.bf16.gmra.mxu0 %v1285
    %v1338 = vpop.f32.mrf.mxu0
    %v1339 = vadd.f32 %v1289, %v1338
    %v1340 = vpop.f32.mrf.mxu0
    %1341 = vdwg.mxu0
    %v1342 = vxor.u32 %v1300, 2147483648
    %v1343 = vxor.u32 %v1313, 2147483648
    %v1344 = vxor.u32 %v1326, 2147483648
    %v1345 = vmul.f32 %v1342, 1.442695
    %v1346 = vpow.pop %v1345
    %v1347 = vmul.f32 %v1343, 1.442695
    %v1348 = vpow.pop %v1347
    %v1349 = vmul.f32 %v1344, 1.442695
    %v1350 = vpow.pop %v1349
    %v1351 = vadd.f32 %v1346, 1.0
    %v1352 = vadd.f32 %v1348, 1.0
    %v1353 = vadd.f32 %v1350, 1.0
    %v1354 = vrcp.pop %v1351
    %v1355 = vmul.f32 %v1351, %v1354
    %v1356 = vsub.f32 1.0, %v1355
    %v1357 = vmul.f32 %v1354, %v1356
    %v1358 = vadd.f32 %v1354, %v1357
    %vm1359 = vweird.f32 %v1351
    %vm1360 = vweird.f32 %v1354
    %vm1361 = vmor %vm1359, %vm1360
    %v1362 = vsel %vm1361, %v1354, %v1358
    %v1363 = vand.u32 2147483647, %v1351
    %vm1364 = vcmp.eq.f32.partialorder %v1363, 8.507059e+37
    %v1365 = vand.u32 %v1351, 2147483648
    %v1366 = vor.u32 1.1754944e-38, %v1365
    %v1367 = vsel %vm1364, %v1366, %v1362
    %v1368 = vmul.f32 1.0, %v1367
    %v1369 = vrcp.pop %v1352
    %v1370 = vmul.f32 %v1352, %v1369
    %v1371 = vsub.f32 1.0, %v1370
    %v1372 = vmul.f32 %v1369, %v1371
    %v1373 = vadd.f32 %v1369, %v1372
    %vm1374 = vweird.f32 %v1352
    %vm1375 = vweird.f32 %v1369
    %vm1376 = vmor %vm1374, %vm1375
    %v1377 = vsel %vm1376, %v1369, %v1373
    %v1378 = vand.u32 2147483647, %v1352
    %vm1379 = vcmp.eq.f32.partialorder %v1378, 8.507059e+37
    %v1380 = vand.u32 %v1352, 2147483648
    %v1381 = vor.u32 1.1754944e-38, %v1380
    %v1382 = vsel %vm1379, %v1381, %v1377
    %v1383 = vmul.f32 1.0, %v1382
    %v1384 = vrcp.pop %v1353
    %v1385 = vmul.f32 %v1353, %v1384
    %v1386 = vsub.f32 1.0, %v1385
    %v1387 = vmul.f32 %v1384, %v1386
    %v1388 = vadd.f32 %v1384, %v1387
    %vm1389 = vweird.f32 %v1353
    %vm1390 = vweird.f32 %v1384
    %vm1391 = vmor %vm1389, %vm1390
    %v1392 = vsel %vm1391, %v1384, %v1388
    %v1393 = vand.u32 2147483647, %v1353
    %vm1394 = vcmp.eq.f32.partialorder %v1393, 8.507059e+37
    %v1395 = vand.u32 %v1353, 2147483648
    %v1396 = vor.u32 1.1754944e-38, %v1395
    %v1397 = vsel %vm1394, %v1396, %v1392
    %v1398 = vmul.f32 1.0, %v1397
    %v1399 = vtanh.pop %v1339
    %v1400 = vmul.f32 %v1383, %v1139
    %v1401 = vmul.f32 %v1368, %v1399
    %v1402 = vadd.f32 %v1400, %v1401
    %v1403 = vtanh.pop %v1402
    %v1404 = vmul.f32 %v1398, %v1403
    %v1405 = vstv %s1284
    %vm1406 = vcmp.lt.s32.totalorder %v1405, %v202
    %v1407 = vsel %vm1406, 1, 0
    %1408 = vset.pattern.permute.xlu0 0
    %1409 = vperm.xlu0 %1408, %v1407
    %v1410 = vpop.permute.xlu0 %1409
    %vm1411 = vcmp.eq.s32.totalorder %v1410, 1
    %v1412 = vsel %vm1411, %v1404, %v1138
    %v1413 = vsel %vm1411, %v1402, %v1139
    %v1414 = vsel %vm1411, %v1404, 0.0
    %vm1415 = vcmp.eq.f32.partialorder %v1414, 0.0
    %v1416 = vsel %vm1415, -1e+09, %v1414
    %v1417 = vmax.f32 %v1143, %v1416
    %s1418 = sadd.s32 %s268, 3
    %s1419 = scalar_lea.vmem %s1, 48
    %v1420 = vld [vmem:[%s1419] sm:$0xff]
    %v1421 = vld [vmem:[%s1419 + $0x8] sm:$0xff]
    %v1422 = vpack.c.bf16 %v1275, %v1275
    %v1423 = vunpack.c.l.bf16 %v1420
    %v1424 = vunpack.c.h.bf16 %v1420
    %v1425 = vunpack.c.l.bf16 %v1421
    %v1426 = vunpack.c.h.bf16 %v1421
    %1427 = vmatpush.bf16.msra.mxu0 %v409
    %1428 = vmatpush.bf16.msra.mxu0 %v405
    %1429 = vmatpush.bf16.msra.mxu0 %v401
    %1430 = vmatpush.bf16.msra.mxu0 %v397
    %1431 = vmatpush.bf16.msra.mxu0 %v393
    %1432 = vmatpush.bf16.msra.mxu0 %v389
    %1433 = vmatpush.bf16.msra.mxu0 %v385
    %1434 = vmatpush.bf16.msra.mxu0 %v381
    %1435 = vmatmul.bf16.gmra.mxu0 %v1422
    %v1436 = vpop.f32.mrf.mxu0
    %v1437 = vadd.f32 %v1423, %v1436
    %v1438 = vpop.f32.mrf.mxu0
    %1439 = vdwg.mxu0
    %1440 = vmatpush.bf16.msra.mxu0 %v410
    %1441 = vmatpush.bf16.msra.mxu0 %v406
    %1442 = vmatpush.bf16.msra.mxu0 %v402
    %1443 = vmatpush.bf16.msra.mxu0 %v398
    %1444 = vmatpush.bf16.msra.mxu0 %v394
    %1445 = vmatpush.bf16.msra.mxu0 %v390
    %1446 = vmatpush.bf16.msra.mxu0 %v386
    %1447 = vmatpush.bf16.msra.mxu0 %v382
    %1448 = vmatmul.bf16.gmra.mxu0 %v1422
    %v1449 = vpop.f32.mrf.mxu0
    %v1450 = vadd.f32 %v1424, %v1449
    %v1451 = vpop.f32.mrf.mxu0
    %1452 = vdwg.mxu0
    %1453 = vmatpush.bf16.msra.mxu0 %v411
    %1454 = vmatpush.bf16.msra.mxu0 %v407
    %1455 = vmatpush.bf16.msra.mxu0 %v403
    %1456 = vmatpush.bf16.msra.mxu0 %v399
    %1457 = vmatpush.bf16.msra.mxu0 %v395
    %1458 = vmatpush.bf16.msra.mxu0 %v391
    %1459 = vmatpush.bf16.msra.mxu0 %v387
    %1460 = vmatpush.bf16.msra.mxu0 %v383
    %1461 = vmatmul.bf16.gmra.mxu0 %v1422
    %v1462 = vpop.f32.mrf.mxu0
    %v1463 = vadd.f32 %v1425, %v1462
    %v1464 = vpop.f32.mrf.mxu0
    %1465 = vdwg.mxu0
    %1466 = vmatpush.bf16.msra.mxu0 %v412
    %1467 = vmatpush.bf16.msra.mxu0 %v408
    %1468 = vmatpush.bf16.msra.mxu0 %v404
    %1469 = vmatpush.bf16.msra.mxu0 %v400
    %1470 = vmatpush.bf16.msra.mxu0 %v396
    %1471 = vmatpush.bf16.msra.mxu0 %v392
    %1472 = vmatpush.bf16.msra.mxu0 %v388
    %1473 = vmatpush.bf16.msra.mxu0 %v384
    %1474 = vmatmul.bf16.gmra.mxu0 %v1422
    %v1475 = vpop.f32.mrf.mxu0
    %v1476 = vadd.f32 %v1426, %v1475
    %v1477 = vpop.f32.mrf.mxu0
    %1478 = vdwg.mxu0
    %v1479 = vxor.u32 %v1437, 2147483648
    %v1480 = vxor.u32 %v1450, 2147483648
    %v1481 = vxor.u32 %v1463, 2147483648
    %v1482 = vmul.f32 %v1479, 1.442695
    %v1483 = vpow.pop %v1482
    %v1484 = vmul.f32 %v1480, 1.442695
    %v1485 = vpow.pop %v1484
    %v1486 = vmul.f32 %v1481, 1.442695
    %v1487 = vpow.pop %v1486
    %v1488 = vadd.f32 %v1483, 1.0
    %v1489 = vadd.f32 %v1485, 1.0
    %v1490 = vadd.f32 %v1487, 1.0
    %v1491 = vrcp.pop %v1488
    %v1492 = vmul.f32 %v1488, %v1491
    %v1493 = vsub.f32 1.0, %v1492
    %v1494 = vmul.f32 %v1491, %v1493
    %v1495 = vadd.f32 %v1491, %v1494
    %vm1496 = vweird.f32 %v1488
    %vm1497 = vweird.f32 %v1491
    %vm1498 = vmor %vm1496, %vm1497
    %v1499 = vsel %vm1498, %v1491, %v1495
    %v1500 = vand.u32 2147483647, %v1488
    %vm1501 = vcmp.eq.f32.partialorder %v1500, 8.507059e+37
    %v1502 = vand.u32 %v1488, 2147483648
    %v1503 = vor.u32 1.1754944e-38, %v1502
    %v1504 = vsel %vm1501, %v1503, %v1499
    %v1505 = vmul.f32 1.0, %v1504
    %v1506 = vrcp.pop %v1489
    %v1507 = vmul.f32 %v1489, %v1506
    %v1508 = vsub.f32 1.0, %v1507
    %v1509 = vmul.f32 %v1506, %v1508
    %v1510 = vadd.f32 %v1506, %v1509
    %vm1511 = vweird.f32 %v1489
    %vm1512 = vweird.f32 %v1506
    %vm1513 = vmor %vm1511, %vm1512
    %v1514 = vsel %vm1513, %v1506, %v1510
    %v1515 = vand.u32 2147483647, %v1489
    %vm1516 = vcmp.eq.f32.partialorder %v1515, 8.507059e+37
    %v1517 = vand.u32 %v1489, 2147483648
    %v1518 = vor.u32 1.1754944e-38, %v1517
    %v1519 = vsel %vm1516, %v1518, %v1514
    %v1520 = vmul.f32 1.0, %v1519
    %v1521 = vrcp.pop %v1490
    %v1522 = vmul.f32 %v1490, %v1521
    %v1523 = vsub.f32 1.0, %v1522
    %v1524 = vmul.f32 %v1521, %v1523
    %v1525 = vadd.f32 %v1521, %v1524
    %vm1526 = vweird.f32 %v1490
    %vm1527 = vweird.f32 %v1521
    %vm1528 = vmor %vm1526, %vm1527
    %v1529 = vsel %vm1528, %v1521, %v1525
    %v1530 = vand.u32 2147483647, %v1490
    %vm1531 = vcmp.eq.f32.partialorder %v1530, 8.507059e+37
    %v1532 = vand.u32 %v1490, 2147483648
    %v1533 = vor.u32 1.1754944e-38, %v1532
    %v1534 = vsel %vm1531, %v1533, %v1529
    %v1535 = vmul.f32 1.0, %v1534
    %v1536 = vtanh.pop %v1476
    %v1537 = vmul.f32 %v1520, %v1276
    %v1538 = vmul.f32 %v1505, %v1536
    %v1539 = vadd.f32 %v1537, %v1538
    %v1540 = vtanh.pop %v1539
    %v1541 = vmul.f32 %v1535, %v1540
    %v1542 = vstv %s1418
    %vm1543 = vcmp.lt.s32.totalorder %v1542, %v202
    %v1544 = vsel %vm1543, 1, 0
    %1545 = vset.pattern.permute.xlu0 0
    %1546 = vperm.xlu0 %1545, %v1544
    %v1547 = vpop.permute.xlu0 %1546
    %vm1548 = vcmp.eq.s32.totalorder %v1547, 1
    %v1549 = vsel %vm1548, %v1541, %v1275
    %v1550 = vsel %vm1548, %v1539, %v1276
    %v1551 = vsel %vm1548, %v1541, 0.0
    %vm1552 = vcmp.eq.f32.partialorder %v1551, 0.0
    %v1553 = vsel %vm1552, -1e+09, %v1551
    %v1554 = vmax.f32 %v1280, %v1553
    %s1555 = scalar_lea.vmem %s40, 64
    %v1556 = vld [vmem:[%s1555] sm:$0xff]
    %v1557 = vld [vmem:[%s1555 + $0x8] sm:$0xff]
    %s1558 = ssub.s32 4, %s268
    %v1559 = vpack.c.bf16 %v1412, %v1412
    %v1560 = vunpack.c.l.bf16 %v1556
    %v1561 = vunpack.c.h.bf16 %v1556
    %v1562 = vunpack.c.l.bf16 %v1557
    %v1563 = vunpack.c.h.bf16 %v1557
    %1564 = vmatpush.bf16.msra.mxu0 %v706
    %1565 = vmatpush.bf16.msra.mxu0 %v702
    %1566 = vmatpush.bf16.msra.mxu0 %v698
    %1567 = vmatpush.bf16.msra.mxu0 %v694
    %1568 = vmatpush.bf16.msra.mxu0 %v690
    %1569 = vmatpush.bf16.msra.mxu0 %v686
    %1570 = vmatpush.bf16.msra.mxu0 %v682
    %1571 = vmatpush.bf16.msra.mxu0 %v678
    %1572 = vmatmul.bf16.gmra.mxu0 %v1559
    %v1573 = vpop.f32.mrf.mxu0
    %v1574 = vadd.f32 %v1560, %v1573
    %v1575 = vpop.f32.mrf.mxu0
    %1576 = vdwg.mxu0
    %1577 = vmatpush.bf16.msra.mxu0 %v707
    %1578 = vmatpush.bf16.msra.mxu0 %v703
    %1579 = vmatpush.bf16.msra.mxu0 %v699
    %1580 = vmatpush.bf16.msra.mxu0 %v695
    %1581 = vmatpush.bf16.msra.mxu0 %v691
    %1582 = vmatpush.bf16.msra.mxu0 %v687
    %1583 = vmatpush.bf16.msra.mxu0 %v683
    %1584 = vmatpush.bf16.msra.mxu0 %v679
    %1585 = vmatmul.bf16.gmra.mxu0 %v1559
    %v1586 = vpop.f32.mrf.mxu0
    %v1587 = vadd.f32 %v1561, %v1586
    %v1588 = vpop.f32.mrf.mxu0
    %1589 = vdwg.mxu0
    %1590 = vmatpush.bf16.msra.mxu0 %v708
    %1591 = vmatpush.bf16.msra.mxu0 %v704
    %1592 = vmatpush.bf16.msra.mxu0 %v700
    %1593 = vmatpush.bf16.msra.mxu0 %v696
    %1594 = vmatpush.bf16.msra.mxu0 %v692
    %1595 = vmatpush.bf16.msra.mxu0 %v688
    %1596 = vmatpush.bf16.msra.mxu0 %v684
    %1597 = vmatpush.bf16.msra.mxu0 %v680
    %1598 = vmatmul.bf16.gmra.mxu0 %v1559
    %v1599 = vpop.f32.mrf.mxu0
    %v1600 = vadd.f32 %v1562, %v1599
    %v1601 = vpop.f32.mrf.mxu0
    %1602 = vdwg.mxu0
    %1603 = vmatpush.bf16.msra.mxu0 %v709
    %1604 = vmatpush.bf16.msra.mxu0 %v705
    %1605 = vmatpush.bf16.msra.mxu0 %v701
    %1606 = vmatpush.bf16.msra.mxu0 %v697
    %1607 = vmatpush.bf16.msra.mxu0 %v693
    %1608 = vmatpush.bf16.msra.mxu0 %v689
    %1609 = vmatpush.bf16.msra.mxu0 %v685
    %1610 = vmatpush.bf16.msra.mxu0 %v681
    %1611 = vmatmul.bf16.gmra.mxu0 %v1559
    %v1612 = vpop.f32.mrf.mxu0
    %v1613 = vadd.f32 %v1563, %v1612
    %v1614 = vpop.f32.mrf.mxu0
    %1615 = vdwg.mxu0
    %v1616 = vxor.u32 %v1574, 2147483648
    %v1617 = vxor.u32 %v1587, 2147483648
    %v1618 = vxor.u32 %v1600, 2147483648
    %v1619 = vmul.f32 %v1616, 1.442695
    %v1620 = vpow.pop %v1619
    %v1621 = vmul.f32 %v1617, 1.442695
    %v1622 = vpow.pop %v1621
    %v1623 = vmul.f32 %v1618, 1.442695
    %v1624 = vpow.pop %v1623
    %v1625 = vadd.f32 %v1620, 1.0
    %v1626 = vadd.f32 %v1622, 1.0
    %v1627 = vadd.f32 %v1624, 1.0
    %v1628 = vrcp.pop %v1625
    %v1629 = vmul.f32 %v1625, %v1628
    %v1630 = vsub.f32 1.0, %v1629
    %v1631 = vmul.f32 %v1628, %v1630
    %v1632 = vadd.f32 %v1628, %v1631
    %vm1633 = vweird.f32 %v1625
    %vm1634 = vweird.f32 %v1628
    %vm1635 = vmor %vm1633, %vm1634
    %v1636 = vsel %vm1635, %v1628, %v1632
    %v1637 = vand.u32 2147483647, %v1625
    %vm1638 = vcmp.eq.f32.partialorder %v1637, 8.507059e+37
    %v1639 = vand.u32 %v1625, 2147483648
    %v1640 = vor.u32 1.1754944e-38, %v1639
    %v1641 = vsel %vm1638, %v1640, %v1636
    %v1642 = vmul.f32 1.0, %v1641
    %v1643 = vrcp.pop %v1626
    %v1644 = vmul.f32 %v1626, %v1643
    %v1645 = vsub.f32 1.0, %v1644
    %v1646 = vmul.f32 %v1643, %v1645
    %v1647 = vadd.f32 %v1643, %v1646
    %vm1648 = vweird.f32 %v1626
    %vm1649 = vweird.f32 %v1643
    %vm1650 = vmor %vm1648, %vm1649
    %v1651 = vsel %vm1650, %v1643, %v1647
    %v1652 = vand.u32 2147483647, %v1626
    %vm1653 = vcmp.eq.f32.partialorder %v1652, 8.507059e+37
    %v1654 = vand.u32 %v1626, 2147483648
    %v1655 = vor.u32 1.1754944e-38, %v1654
    %v1656 = vsel %vm1653, %v1655, %v1651
    %v1657 = vmul.f32 1.0, %v1656
    %v1658 = vrcp.pop %v1627
    %v1659 = vmul.f32 %v1627, %v1658
    %v1660 = vsub.f32 1.0, %v1659
    %v1661 = vmul.f32 %v1658, %v1660
    %v1662 = vadd.f32 %v1658, %v1661
    %vm1663 = vweird.f32 %v1627
    %vm1664 = vweird.f32 %v1658
    %vm1665 = vmor %vm1663, %vm1664
    %v1666 = vsel %vm1665, %v1658, %v1662
    %v1667 = vand.u32 2147483647, %v1627
    %vm1668 = vcmp.eq.f32.partialorder %v1667, 8.507059e+37
    %v1669 = vand.u32 %v1627, 2147483648
    %v1670 = vor.u32 1.1754944e-38, %v1669
    %v1671 = vsel %vm1668, %v1670, %v1666
    %v1672 = vmul.f32 1.0, %v1671
    %v1673 = vtanh.pop %v1613
    %v1674 = vmul.f32 %v1657, %v1413
    %v1675 = vmul.f32 %v1642, %v1673
    %v1676 = vadd.f32 %v1674, %v1675
    %v1677 = vtanh.pop %v1676
    %v1678 = vmul.f32 %v1672, %v1677
    %v1679 = vstv %s1558
    %vm1680 = vcmp.lt.s32.totalorder %v1679, %v202
    %v1681 = vsel %vm1680, 1, 0
    %1682 = vset.pattern.permute.xlu0 0
    %1683 = vperm.xlu0 %1682, %v1681
    %v1684 = vpop.permute.xlu0 %1683
    %vm1685 = vcmp.eq.s32.totalorder %v1684, 1
    %v1686 = vsel %vm1685, %v1678, %v1412
    %v1687 = vsel %vm1685, %v1676, %v1413
    %v1688 = vsel %vm1685, %v1678, 0.0
    %vm1689 = vcmp.eq.f32.partialorder %v1688, 0.0
    %v1690 = vsel %vm1689, -1e+09, %v1688
    %v1691 = vmax.f32 %v1417, %v1690
    %s1692 = sadd.s32 %s268, 4
    %s1693 = scalar_lea.vmem %s1, 64
    %v1694 = vld [vmem:[%s1693] sm:$0xff]
    %v1695 = vld [vmem:[%s1693 + $0x8] sm:$0xff]
    %v1696 = vpack.c.bf16 %v1549, %v1549
    %v1697 = vunpack.c.l.bf16 %v1694
    %v1698 = vunpack.c.h.bf16 %v1694
    %v1699 = vunpack.c.l.bf16 %v1695
    %v1700 = vunpack.c.h.bf16 %v1695
    %1701 = vmatpush.bf16.msra.mxu0 %v409
    %1702 = vmatpush.bf16.msra.mxu0 %v405
    %1703 = vmatpush.bf16.msra.mxu0 %v401
    %1704 = vmatpush.bf16.msra.mxu0 %v397
    %1705 = vmatpush.bf16.msra.mxu0 %v393
    %1706 = vmatpush.bf16.msra.mxu0 %v389
    %1707 = vmatpush.bf16.msra.mxu0 %v385
    %1708 = vmatpush.bf16.msra.mxu0 %v381
    %1709 = vmatmul.bf16.gmra.mxu0 %v1696
    %v1710 = vpop.f32.mrf.mxu0
    %v1711 = vadd.f32 %v1697, %v1710
    %v1712 = vpop.f32.mrf.mxu0
    %1713 = vdwg.mxu0
    %1714 = vmatpush.bf16.msra.mxu0 %v410
    %1715 = vmatpush.bf16.msra.mxu0 %v406
    %1716 = vmatpush.bf16.msra.mxu0 %v402
    %1717 = vmatpush.bf16.msra.mxu0 %v398
    %1718 = vmatpush.bf16.msra.mxu0 %v394
    %1719 = vmatpush.bf16.msra.mxu0 %v390
    %1720 = vmatpush.bf16.msra.mxu0 %v386
    %1721 = vmatpush.bf16.msra.mxu0 %v382
    %1722 = vmatmul.bf16.gmra.mxu0 %v1696
    %v1723 = vpop.f32.mrf.mxu0
    %v1724 = vadd.f32 %v1698, %v1723
    %v1725 = vpop.f32.mrf.mxu0
    %1726 = vdwg.mxu0
    %1727 = vmatpush.bf16.msra.mxu0 %v411
    %1728 = vmatpush.bf16.msra.mxu0 %v407
    %1729 = vmatpush.bf16.msra.mxu0 %v403
    %1730 = vmatpush.bf16.msra.mxu0 %v399
    %1731 = vmatpush.bf16.msra.mxu0 %v395
    %1732 = vmatpush.bf16.msra.mxu0 %v391
    %1733 = vmatpush.bf16.msra.mxu0 %v387
    %1734 = vmatpush.bf16.msra.mxu0 %v383
    %1735 = vmatmul.bf16.gmra.mxu0 %v1696
    %v1736 = vpop.f32.mrf.mxu0
    %v1737 = vadd.f32 %v1699, %v1736
    %v1738 = vpop.f32.mrf.mxu0
    %1739 = vdwg.mxu0
    %1740 = vmatpush.bf16.msra.mxu0 %v412
    %1741 = vmatpush.bf16.msra.mxu0 %v408
    %1742 = vmatpush.bf16.msra.mxu0 %v404
    %1743 = vmatpush.bf16.msra.mxu0 %v400
    %1744 = vmatpush.bf16.msra.mxu0 %v396
    %1745 = vmatpush.bf16.msra.mxu0 %v392
    %1746 = vmatpush.bf16.msra.mxu0 %v388
    %1747 = vmatpush.bf16.msra.mxu0 %v384
    %1748 = vmatmul.bf16.gmra.mxu0 %v1696
    %v1749 = vpop.f32.mrf.mxu0
    %v1750 = vadd.f32 %v1700, %v1749
    %v1751 = vpop.f32.mrf.mxu0
    %1752 = vdwg.mxu0
    %v1753 = vxor.u32 %v1711, 2147483648
    %v1754 = vxor.u32 %v1724, 2147483648
    %v1755 = vxor.u32 %v1737, 2147483648
    %v1756 = vmul.f32 %v1753, 1.442695
    %v1757 = vpow.pop %v1756
    %v1758 = vmul.f32 %v1754, 1.442695
    %v1759 = vpow.pop %v1758
    %v1760 = vmul.f32 %v1755, 1.442695
    %v1761 = vpow.pop %v1760
    %v1762 = vadd.f32 %v1757, 1.0
    %v1763 = vadd.f32 %v1759, 1.0
    %v1764 = vadd.f32 %v1761, 1.0
    %v1765 = vrcp.pop %v1762
    %v1766 = vmul.f32 %v1762, %v1765
    %v1767 = vsub.f32 1.0, %v1766
    %v1768 = vmul.f32 %v1765, %v1767
    %v1769 = vadd.f32 %v1765, %v1768
    %vm1770 = vweird.f32 %v1762
    %vm1771 = vweird.f32 %v1765
    %vm1772 = vmor %vm1770, %vm1771
    %v1773 = vsel %vm1772, %v1765, %v1769
    %v1774 = vand.u32 2147483647, %v1762
    %vm1775 = vcmp.eq.f32.partialorder %v1774, 8.507059e+37
    %v1776 = vand.u32 %v1762, 2147483648
    %v1777 = vor.u32 1.1754944e-38, %v1776
    %v1778 = vsel %vm1775, %v1777, %v1773
    %v1779 = vmul.f32 1.0, %v1778
    %v1780 = vrcp.pop %v1763
    %v1781 = vmul.f32 %v1763, %v1780
    %v1782 = vsub.f32 1.0, %v1781
    %v1783 = vmul.f32 %v1780, %v1782
    %v1784 = vadd.f32 %v1780, %v1783
    %vm1785 = vweird.f32 %v1763
    %vm1786 = vweird.f32 %v1780
    %vm1787 = vmor %vm1785, %vm1786
    %v1788 = vsel %vm1787, %v1780, %v1784
    %v1789 = vand.u32 2147483647, %v1763
    %vm1790 = vcmp.eq.f32.partialorder %v1789, 8.507059e+37
    %v1791 = vand.u32 %v1763, 2147483648
    %v1792 = vor.u32 1.1754944e-38, %v1791
    %v1793 = vsel %vm1790, %v1792, %v1788
    %v1794 = vmul.f32 1.0, %v1793
    %v1795 = vrcp.pop %v1764
    %v1796 = vmul.f32 %v1764, %v1795
    %v1797 = vsub.f32 1.0, %v1796
    %v1798 = vmul.f32 %v1795, %v1797
    %v1799 = vadd.f32 %v1795, %v1798
    %vm1800 = vweird.f32 %v1764
    %vm1801 = vweird.f32 %v1795
    %vm1802 = vmor %vm1800, %vm1801
    %v1803 = vsel %vm1802, %v1795, %v1799
    %v1804 = vand.u32 2147483647, %v1764
    %vm1805 = vcmp.eq.f32.partialorder %v1804, 8.507059e+37
    %v1806 = vand.u32 %v1764, 2147483648
    %v1807 = vor.u32 1.1754944e-38, %v1806
    %v1808 = vsel %vm1805, %v1807, %v1803
    %v1809 = vmul.f32 1.0, %v1808
    %v1810 = vtanh.pop %v1750
    %v1811 = vmul.f32 %v1794, %v1550
    %v1812 = vmul.f32 %v1779, %v1810
    %v1813 = vadd.f32 %v1811, %v1812
    %v1814 = vtanh.pop %v1813
    %v1815 = vmul.f32 %v1809, %v1814
    %v1816 = vstv %s1692
    %vm1817 = vcmp.lt.s32.totalorder %v1816, %v202
    %v1818 = vsel %vm1817, 1, 0
    %1819 = vset.pattern.permute.xlu0 0
    %1820 = vperm.xlu0 %1819, %v1818
    %v1821 = vpop.permute.xlu0 %1820
    %vm1822 = vcmp.eq.s32.totalorder %v1821, 1
    %v1823 = vsel %vm1822, %v1815, %v1549
    %v1824 = vsel %vm1822, %v1813, %v1550
    %v1825 = vsel %vm1822, %v1815, 0.0
    %vm1826 = vcmp.eq.f32.partialorder %v1825, 0.0
    %v1827 = vsel %vm1826, -1e+09, %v1825
    %v1828 = vmax.f32 %v1554, %v1827
    %s1829 = scalar_lea.vmem %s40, 48
    %v1830 = vld [vmem:[%s1829] sm:$0xff]
    %v1831 = vld [vmem:[%s1829 + $0x8] sm:$0xff]
    %s1832 = ssub.s32 3, %s268
    %v1833 = vpack.c.bf16 %v1686, %v1686
    %v1834 = vunpack.c.l.bf16 %v1830
    %v1835 = vunpack.c.h.bf16 %v1830
    %v1836 = vunpack.c.l.bf16 %v1831
    %v1837 = vunpack.c.h.bf16 %v1831
    %1838 = vmatpush.bf16.msra.mxu0 %v706
    %1839 = vmatpush.bf16.msra.mxu0 %v702
    %1840 = vmatpush.bf16.msra.mxu0 %v698
    %1841 = vmatpush.bf16.msra.mxu0 %v694
    %1842 = vmatpush.bf16.msra.mxu0 %v690
    %1843 = vmatpush.bf16.msra.mxu0 %v686
    %1844 = vmatpush.bf16.msra.mxu0 %v682
    %1845 = vmatpush.bf16.msra.mxu0 %v678
    %1846 = vmatmul.bf16.gmra.mxu0 %v1833
    %v1847 = vpop.f32.mrf.mxu0
    %v1848 = vadd.f32 %v1834, %v1847
    %v1849 = vpop.f32.mrf.mxu0
    %1850 = vdwg.mxu0
    %1851 = vmatpush.bf16.msra.mxu0 %v707
    %1852 = vmatpush.bf16.msra.mxu0 %v703
    %1853 = vmatpush.bf16.msra.mxu0 %v699
    %1854 = vmatpush.bf16.msra.mxu0 %v695
    %1855 = vmatpush.bf16.msra.mxu0 %v691
    %1856 = vmatpush.bf16.msra.mxu0 %v687
    %1857 = vmatpush.bf16.msra.mxu0 %v683
    %1858 = vmatpush.bf16.msra.mxu0 %v679
    %1859 = vmatmul.bf16.gmra.mxu0 %v1833
    %v1860 = vpop.f32.mrf.mxu0
    %v1861 = vadd.f32 %v1835, %v1860
    %v1862 = vpop.f32.mrf.mxu0
    %1863 = vdwg.mxu0
    %1864 = vmatpush.bf16.msra.mxu0 %v708
    %1865 = vmatpush.bf16.msra.mxu0 %v704
    %1866 = vmatpush.bf16.msra.mxu0 %v700
    %1867 = vmatpush.bf16.msra.mxu0 %v696
    %1868 = vmatpush.bf16.msra.mxu0 %v692
    %1869 = vmatpush.bf16.msra.mxu0 %v688
    %1870 = vmatpush.bf16.msra.mxu0 %v684
    %1871 = vmatpush.bf16.msra.mxu0 %v680
    %1872 = vmatmul.bf16.gmra.mxu0 %v1833
    %v1873 = vpop.f32.mrf.mxu0
    %v1874 = vadd.f32 %v1836, %v1873
    %v1875 = vpop.f32.mrf.mxu0
    %1876 = vdwg.mxu0
    %1877 = vmatpush.bf16.msra.mxu0 %v709
    %1878 = vmatpush.bf16.msra.mxu0 %v705
    %1879 = vmatpush.bf16.msra.mxu0 %v701
    %1880 = vmatpush.bf16.msra.mxu0 %v697
    %1881 = vmatpush.bf16.msra.mxu0 %v693
    %1882 = vmatpush.bf16.msra.mxu0 %v689
    %1883 = vmatpush.bf16.msra.mxu0 %v685
    %1884 = vmatpush.bf16.msra.mxu0 %v681
    %1885 = vmatmul.bf16.gmra.mxu0 %v1833
    %v1886 = vpop.f32.mrf.mxu0
    %v1887 = vadd.f32 %v1837, %v1886
    %v1888 = vpop.f32.mrf.mxu0
    %1889 = vdwg.mxu0
    %v1890 = vxor.u32 %v1848, 2147483648
    %v1891 = vxor.u32 %v1861, 2147483648
    %v1892 = vxor.u32 %v1874, 2147483648
    %v1893 = vmul.f32 %v1890, 1.442695
    %v1894 = vpow.pop %v1893
    %v1895 = vmul.f32 %v1891, 1.442695
    %v1896 = vpow.pop %v1895
    %v1897 = vmul.f32 %v1892, 1.442695
    %v1898 = vpow.pop %v1897
    %v1899 = vadd.f32 %v1894, 1.0
    %v1900 = vadd.f32 %v1896, 1.0
    %v1901 = vadd.f32 %v1898, 1.0
    %v1902 = vrcp.pop %v1899
    %v1903 = vmul.f32 %v1899, %v1902
    %v1904 = vsub.f32 1.0, %v1903
    %v1905 = vmul.f32 %v1902, %v1904
    %v1906 = vadd.f32 %v1902, %v1905
    %vm1907 = vweird.f32 %v1899
    %vm1908 = vweird.f32 %v1902
    %vm1909 = vmor %vm1907, %vm1908
    %v1910 = vsel %vm1909, %v1902, %v1906
    %v1911 = vand.u32 2147483647, %v1899
    %vm1912 = vcmp.eq.f32.partialorder %v1911, 8.507059e+37
    %v1913 = vand.u32 %v1899, 2147483648
    %v1914 = vor.u32 1.1754944e-38, %v1913
    %v1915 = vsel %vm1912, %v1914, %v1910
    %v1916 = vmul.f32 1.0, %v1915
    %v1917 = vrcp.pop %v1900
    %v1918 = vmul.f32 %v1900, %v1917
    %v1919 = vsub.f32 1.0, %v1918
    %v1920 = vmul.f32 %v1917, %v1919
    %v1921 = vadd.f32 %v1917, %v1920
    %vm1922 = vweird.f32 %v1900
    %vm1923 = vweird.f32 %v1917
    %vm1924 = vmor %vm1922, %vm1923
    %v1925 = vsel %vm1924, %v1917, %v1921
    %v1926 = vand.u32 2147483647, %v1900
    %vm1927 = vcmp.eq.f32.partialorder %v1926, 8.507059e+37
    %v1928 = vand.u32 %v1900, 2147483648
    %v1929 = vor.u32 1.1754944e-38, %v1928
    %v1930 = vsel %vm1927, %v1929, %v1925
    %v1931 = vmul.f32 1.0, %v1930
    %v1932 = vrcp.pop %v1901
    %v1933 = vmul.f32 %v1901, %v1932
    %v1934 = vsub.f32 1.0, %v1933
    %v1935 = vmul.f32 %v1932, %v1934
    %v1936 = vadd.f32 %v1932, %v1935
    %vm1937 = vweird.f32 %v1901
    %vm1938 = vweird.f32 %v1932
    %vm1939 = vmor %vm1937, %vm1938
    %v1940 = vsel %vm1939, %v1932, %v1936
    %v1941 = vand.u32 2147483647, %v1901
    %vm1942 = vcmp.eq.f32.partialorder %v1941, 8.507059e+37
    %v1943 = vand.u32 %v1901, 2147483648
    %v1944 = vor.u32 1.1754944e-38, %v1943
    %v1945 = vsel %vm1942, %v1944, %v1940
    %v1946 = vmul.f32 1.0, %v1945
    %v1947 = vtanh.pop %v1887
    %v1948 = vmul.f32 %v1931, %v1687
    %v1949 = vmul.f32 %v1916, %v1947
    %v1950 = vadd.f32 %v1948, %v1949
    %v1951 = vtanh.pop %v1950
    %v1952 = vmul.f32 %v1946, %v1951
    %v1953 = vstv %s1832
    %vm1954 = vcmp.lt.s32.totalorder %v1953, %v202
    %v1955 = vsel %vm1954, 1, 0
    %1956 = vset.pattern.permute.xlu0 0
    %1957 = vperm.xlu0 %1956, %v1955
    %v1958 = vpop.permute.xlu0 %1957
    %vm1959 = vcmp.eq.s32.totalorder %v1958, 1
    %v1960 = vsel %vm1959, %v1952, %v1686
    %v1961 = vsel %vm1959, %v1950, %v1687
    %v1962 = vsel %vm1959, %v1952, 0.0
    %vm1963 = vcmp.eq.f32.partialorder %v1962, 0.0
    %v1964 = vsel %vm1963, -1e+09, %v1962
    %v1965 = vmax.f32 %v1691, %v1964
    %s1966 = sadd.s32 %s268, 5
    %s1967 = scalar_lea.vmem %s1, 80
    %v1968 = vld [vmem:[%s1967] sm:$0xff]
    %v1969 = vld [vmem:[%s1967 + $0x8] sm:$0xff]
    %v1970 = vpack.c.bf16 %v1823, %v1823
    %v1971 = vunpack.c.l.bf16 %v1968
    %v1972 = vunpack.c.h.bf16 %v1968
    %v1973 = vunpack.c.l.bf16 %v1969
    %v1974 = vunpack.c.h.bf16 %v1969
    %1975 = vmatpush.bf16.msra.mxu0 %v409
    %1976 = vmatpush.bf16.msra.mxu0 %v405
    %1977 = vmatpush.bf16.msra.mxu0 %v401
    %1978 = vmatpush.bf16.msra.mxu0 %v397
    %1979 = vmatpush.bf16.msra.mxu0 %v393
    %1980 = vmatpush.bf16.msra.mxu0 %v389
    %1981 = vmatpush.bf16.msra.mxu0 %v385
    %1982 = vmatpush.bf16.msra.mxu0 %v381
    %1983 = vmatmul.bf16.gmra.mxu0 %v1970
    %v1984 = vpop.f32.mrf.mxu0
    %v1985 = vadd.f32 %v1971, %v1984
    %v1986 = vpop.f32.mrf.mxu0
    %1987 = vdwg.mxu0
    %1988 = vmatpush.bf16.msra.mxu0 %v410
    %1989 = vmatpush.bf16.msra.mxu0 %v406
    %1990 = vmatpush.bf16.msra.mxu0 %v402
    %1991 = vmatpush.bf16.msra.mxu0 %v398
    %1992 = vmatpush.bf16.msra.mxu0 %v394
    %1993 = vmatpush.bf16.msra.mxu0 %v390
    %1994 = vmatpush.bf16.msra.mxu0 %v386
    %1995 = vmatpush.bf16.msra.mxu0 %v382
    %1996 = vmatmul.bf16.gmra.mxu0 %v1970
    %v1997 = vpop.f32.mrf.mxu0
    %v1998 = vadd.f32 %v1972, %v1997
    %v1999 = vpop.f32.mrf.mxu0
    %2000 = vdwg.mxu0
    %2001 = vmatpush.bf16.msra.mxu0 %v411
    %2002 = vmatpush.bf16.msra.mxu0 %v407
    %2003 = vmatpush.bf16.msra.mxu0 %v403
    %2004 = vmatpush.bf16.msra.mxu0 %v399
    %2005 = vmatpush.bf16.msra.mxu0 %v395
    %2006 = vmatpush.bf16.msra.mxu0 %v391
    %2007 = vmatpush.bf16.msra.mxu0 %v387
    %2008 = vmatpush.bf16.msra.mxu0 %v383
    %2009 = vmatmul.bf16.gmra.mxu0 %v1970
    %v2010 = vpop.f32.mrf.mxu0
    %v2011 = vadd.f32 %v1973, %v2010
    %v2012 = vpop.f32.mrf.mxu0
    %2013 = vdwg.mxu0
    %2014 = vmatpush.bf16.msra.mxu0 %v412
    %2015 = vmatpush.bf16.msra.mxu0 %v408
    %2016 = vmatpush.bf16.msra.mxu0 %v404
    %2017 = vmatpush.bf16.msra.mxu0 %v400
    %2018 = vmatpush.bf16.msra.mxu0 %v396
    %2019 = vmatpush.bf16.msra.mxu0 %v392
    %2020 = vmatpush.bf16.msra.mxu0 %v388
    %2021 = vmatpush.bf16.msra.mxu0 %v384
    %2022 = vmatmul.bf16.gmra.mxu0 %v1970
    %v2023 = vpop.f32.mrf.mxu0
    %v2024 = vadd.f32 %v1974, %v2023
    %v2025 = vpop.f32.mrf.mxu0
    %2026 = vdwg.mxu0
    %v2027 = vxor.u32 %v1985, 2147483648
    %v2028 = vxor.u32 %v1998, 2147483648
    %v2029 = vxor.u32 %v2011, 2147483648
    %v2030 = vmul.f32 %v2027, 1.442695
    %v2031 = vpow.pop %v2030
    %v2032 = vmul.f32 %v2028, 1.442695
    %v2033 = vpow.pop %v2032
    %v2034 = vmul.f32 %v2029, 1.442695
    %v2035 = vpow.pop %v2034
    %v2036 = vadd.f32 %v2031, 1.0
    %v2037 = vadd.f32 %v2033, 1.0
    %v2038 = vadd.f32 %v2035, 1.0
    %v2039 = vrcp.pop %v2036
    %v2040 = vmul.f32 %v2036, %v2039
    %v2041 = vsub.f32 1.0, %v2040
    %v2042 = vmul.f32 %v2039, %v2041
    %v2043 = vadd.f32 %v2039, %v2042
    %vm2044 = vweird.f32 %v2036
    %vm2045 = vweird.f32 %v2039
    %vm2046 = vmor %vm2044, %vm2045
    %v2047 = vsel %vm2046, %v2039, %v2043
    %v2048 = vand.u32 2147483647, %v2036
    %vm2049 = vcmp.eq.f32.partialorder %v2048, 8.507059e+37
    %v2050 = vand.u32 %v2036, 2147483648
    %v2051 = vor.u32 1.1754944e-38, %v2050
    %v2052 = vsel %vm2049, %v2051, %v2047
    %v2053 = vmul.f32 1.0, %v2052
    %v2054 = vrcp.pop %v2037
    %v2055 = vmul.f32 %v2037, %v2054
    %v2056 = vsub.f32 1.0, %v2055
    %v2057 = vmul.f32 %v2054, %v2056
    %v2058 = vadd.f32 %v2054, %v2057
    %vm2059 = vweird.f32 %v2037
    %vm2060 = vweird.f32 %v2054
    %vm2061 = vmor %vm2059, %vm2060
    %v2062 = vsel %vm2061, %v2054, %v2058
    %v2063 = vand.u32 2147483647, %v2037
    %vm2064 = vcmp.eq.f32.partialorder %v2063, 8.507059e+37
    %v2065 = vand.u32 %v2037, 2147483648
    %v2066 = vor.u32 1.1754944e-38, %v2065
    %v2067 = vsel %vm2064, %v2066, %v2062
    %v2068 = vmul.f32 1.0, %v2067
    %v2069 = vrcp.pop %v2038
    %v2070 = vmul.f32 %v2038, %v2069
    %v2071 = vsub.f32 1.0, %v2070
    %v2072 = vmul.f32 %v2069, %v2071
    %v2073 = vadd.f32 %v2069, %v2072
    %vm2074 = vweird.f32 %v2038
    %vm2075 = vweird.f32 %v2069
    %vm2076 = vmor %vm2074, %vm2075
    %v2077 = vsel %vm2076, %v2069, %v2073
    %v2078 = vand.u32 2147483647, %v2038
    %vm2079 = vcmp.eq.f32.partialorder %v2078, 8.507059e+37
    %v2080 = vand.u32 %v2038, 2147483648
    %v2081 = vor.u32 1.1754944e-38, %v2080
    %v2082 = vsel %vm2079, %v2081, %v2077
    %v2083 = vmul.f32 1.0, %v2082
    %v2084 = vtanh.pop %v2024
    %v2085 = vmul.f32 %v2068, %v1824
    %v2086 = vmul.f32 %v2053, %v2084
    %v2087 = vadd.f32 %v2085, %v2086
    %v2088 = vtanh.pop %v2087
    %v2089 = vmul.f32 %v2083, %v2088
    %v2090 = vstv %s1966
    %vm2091 = vcmp.lt.s32.totalorder %v2090, %v202
    %v2092 = vsel %vm2091, 1, 0
    %2093 = vset.pattern.permute.xlu0 0
    %2094 = vperm.xlu0 %2093, %v2092
    %v2095 = vpop.permute.xlu0 %2094
    %vm2096 = vcmp.eq.s32.totalorder %v2095, 1
    %v2097 = vsel %vm2096, %v2089, %v1823
    %v2098 = vsel %vm2096, %v2087, %v1824
    %v2099 = vsel %vm2096, %v2089, 0.0
    %vm2100 = vcmp.eq.f32.partialorder %v2099, 0.0
    %v2101 = vsel %vm2100, -1e+09, %v2099
    %v2102 = vmax.f32 %v1828, %v2101
    %s2103 = scalar_lea.vmem %s40, 32
    %v2104 = vld [vmem:[%s2103] sm:$0xff]
    %v2105 = vld [vmem:[%s2103 + $0x8] sm:$0xff]
    %s2106 = ssub.s32 2, %s268
    %v2107 = vpack.c.bf16 %v1960, %v1960
    %v2108 = vunpack.c.l.bf16 %v2104
    %v2109 = vunpack.c.h.bf16 %v2104
    %v2110 = vunpack.c.l.bf16 %v2105
    %v2111 = vunpack.c.h.bf16 %v2105
    %2112 = vmatpush.bf16.msra.mxu0 %v706
    %2113 = vmatpush.bf16.msra.mxu0 %v702
    %2114 = vmatpush.bf16.msra.mxu0 %v698
    %2115 = vmatpush.bf16.msra.mxu0 %v694
    %2116 = vmatpush.bf16.msra.mxu0 %v690
    %2117 = vmatpush.bf16.msra.mxu0 %v686
    %2118 = vmatpush.bf16.msra.mxu0 %v682
    %2119 = vmatpush.bf16.msra.mxu0 %v678
    %2120 = vmatmul.bf16.gmra.mxu0 %v2107
    %v2121 = vpop.f32.mrf.mxu0
    %v2122 = vadd.f32 %v2108, %v2121
    %v2123 = vpop.f32.mrf.mxu0
    %2124 = vdwg.mxu0
    %2125 = vmatpush.bf16.msra.mxu0 %v707
    %2126 = vmatpush.bf16.msra.mxu0 %v703
    %2127 = vmatpush.bf16.msra.mxu0 %v699
    %2128 = vmatpush.bf16.msra.mxu0 %v695
    %2129 = vmatpush.bf16.msra.mxu0 %v691
    %2130 = vmatpush.bf16.msra.mxu0 %v687
    %2131 = vmatpush.bf16.msra.mxu0 %v683
    %2132 = vmatpush.bf16.msra.mxu0 %v679
    %2133 = vmatmul.bf16.gmra.mxu0 %v2107
    %v2134 = vpop.f32.mrf.mxu0
    %v2135 = vadd.f32 %v2109, %v2134
    %v2136 = vpop.f32.mrf.mxu0
    %2137 = vdwg.mxu0
    %2138 = vmatpush.bf16.msra.mxu0 %v708
    %2139 = vmatpush.bf16.msra.mxu0 %v704
    %2140 = vmatpush.bf16.msra.mxu0 %v700
    %2141 = vmatpush.bf16.msra.mxu0 %v696
    %2142 = vmatpush.bf16.msra.mxu0 %v692
    %2143 = vmatpush.bf16.msra.mxu0 %v688
    %2144 = vmatpush.bf16.msra.mxu0 %v684
    %2145 = vmatpush.bf16.msra.mxu0 %v680
    %2146 = vmatmul.bf16.gmra.mxu0 %v2107
    %v2147 = vpop.f32.mrf.mxu0
    %v2148 = vadd.f32 %v2110, %v2147
    %v2149 = vpop.f32.mrf.mxu0
    %2150 = vdwg.mxu0
    %2151 = vmatpush.bf16.msra.mxu0 %v709
    %2152 = vmatpush.bf16.msra.mxu0 %v705
    %2153 = vmatpush.bf16.msra.mxu0 %v701
    %2154 = vmatpush.bf16.msra.mxu0 %v697
    %2155 = vmatpush.bf16.msra.mxu0 %v693
    %2156 = vmatpush.bf16.msra.mxu0 %v689
    %2157 = vmatpush.bf16.msra.mxu0 %v685
    %2158 = vmatpush.bf16.msra.mxu0 %v681
    %2159 = vmatmul.bf16.gmra.mxu0 %v2107
    %v2160 = vpop.f32.mrf.mxu0
    %v2161 = vadd.f32 %v2111, %v2160
    %v2162 = vpop.f32.mrf.mxu0
    %2163 = vdwg.mxu0
    %v2164 = vxor.u32 %v2122, 2147483648
    %v2165 = vxor.u32 %v2135, 2147483648
    %v2166 = vxor.u32 %v2148, 2147483648
    %v2167 = vmul.f32 %v2164, 1.442695
    %v2168 = vpow.pop %v2167
    %v2169 = vmul.f32 %v2165, 1.442695
    %v2170 = vpow.pop %v2169
    %v2171 = vmul.f32 %v2166, 1.442695
    %v2172 = vpow.pop %v2171
    %v2173 = vadd.f32 %v2168, 1.0
    %v2174 = vadd.f32 %v2170, 1.0
    %v2175 = vadd.f32 %v2172, 1.0
    %v2176 = vrcp.pop %v2173
    %v2177 = vmul.f32 %v2173, %v2176
    %v2178 = vsub.f32 1.0, %v2177
    %v2179 = vmul.f32 %v2176, %v2178
    %v2180 = vadd.f32 %v2176, %v2179
    %vm2181 = vweird.f32 %v2173
    %vm2182 = vweird.f32 %v2176
    %vm2183 = vmor %vm2181, %vm2182
    %v2184 = vsel %vm2183, %v2176, %v2180
    %v2185 = vand.u32 2147483647, %v2173
    %vm2186 = vcmp.eq.f32.partialorder %v2185, 8.507059e+37
    %v2187 = vand.u32 %v2173, 2147483648
    %v2188 = vor.u32 1.1754944e-38, %v2187
    %v2189 = vsel %vm2186, %v2188, %v2184
    %v2190 = vmul.f32 1.0, %v2189
    %v2191 = vrcp.pop %v2174
    %v2192 = vmul.f32 %v2174, %v2191
    %v2193 = vsub.f32 1.0, %v2192
    %v2194 = vmul.f32 %v2191, %v2193
    %v2195 = vadd.f32 %v2191, %v2194
    %vm2196 = vweird.f32 %v2174
    %vm2197 = vweird.f32 %v2191
    %vm2198 = vmor %vm2196, %vm2197
    %v2199 = vsel %vm2198, %v2191, %v2195
    %v2200 = vand.u32 2147483647, %v2174
    %vm2201 = vcmp.eq.f32.partialorder %v2200, 8.507059e+37
    %v2202 = vand.u32 %v2174, 2147483648
    %v2203 = vor.u32 1.1754944e-38, %v2202
    %v2204 = vsel %vm2201, %v2203, %v2199
    %v2205 = vmul.f32 1.0, %v2204
    %v2206 = vrcp.pop %v2175
    %v2207 = vmul.f32 %v2175, %v2206
    %v2208 = vsub.f32 1.0, %v2207
    %v2209 = vmul.f32 %v2206, %v2208
    %v2210 = vadd.f32 %v2206, %v2209
    %vm2211 = vweird.f32 %v2175
    %vm2212 = vweird.f32 %v2206
    %vm2213 = vmor %vm2211, %vm2212
    %v2214 = vsel %vm2213, %v2206, %v2210
    %v2215 = vand.u32 2147483647, %v2175
    %vm2216 = vcmp.eq.f32.partialorder %v2215, 8.507059e+37
    %v2217 = vand.u32 %v2175, 2147483648
    %v2218 = vor.u32 1.1754944e-38, %v2217
    %v2219 = vsel %vm2216, %v2218, %v2214
    %v2220 = vmul.f32 1.0, %v2219
    %v2221 = vtanh.pop %v2161
    %v2222 = vmul.f32 %v2205, %v1961
    %v2223 = vmul.f32 %v2190, %v2221
    %v2224 = vadd.f32 %v2222, %v2223
    %v2225 = vtanh.pop %v2224
    %v2226 = vmul.f32 %v2220, %v2225
    %v2227 = vstv %s2106
    %vm2228 = vcmp.lt.s32.totalorder %v2227, %v202
    %v2229 = vsel %vm2228, 1, 0
    %2230 = vset.pattern.permute.xlu0 0
    %2231 = vperm.xlu0 %2230, %v2229
    %v2232 = vpop.permute.xlu0 %2231
    %vm2233 = vcmp.eq.s32.totalorder %v2232, 1
    %v2234 = vsel %vm2233, %v2226, %v1960
    %v2235 = vsel %vm2233, %v2224, %v1961
    %v2236 = vsel %vm2233, %v2226, 0.0
    %vm2237 = vcmp.eq.f32.partialorder %v2236, 0.0
    %v2238 = vsel %vm2237, -1e+09, %v2236
    %v2239 = vmax.f32 %v1965, %v2238
    %s2240 = sadd.s32 %s268, 6
    %s2241 = scalar_lea.vmem %s1, 96
    %v2242 = vld [vmem:[%s2241] sm:$0xff]
    %v2243 = vld [vmem:[%s2241 + $0x8] sm:$0xff]
    %v2244 = vpack.c.bf16 %v2097, %v2097
    %v2245 = vunpack.c.l.bf16 %v2242
    %v2246 = vunpack.c.h.bf16 %v2242
    %v2247 = vunpack.c.l.bf16 %v2243
    %v2248 = vunpack.c.h.bf16 %v2243
    %2249 = vmatpush.bf16.msra.mxu0 %v409
    %2250 = vmatpush.bf16.msra.mxu0 %v405
    %2251 = vmatpush.bf16.msra.mxu0 %v401
    %2252 = vmatpush.bf16.msra.mxu0 %v397
    %2253 = vmatpush.bf16.msra.mxu0 %v393
    %2254 = vmatpush.bf16.msra.mxu0 %v389
    %2255 = vmatpush.bf16.msra.mxu0 %v385
    %2256 = vmatpush.bf16.msra.mxu0 %v381
    %2257 = vmatmul.bf16.gmra.mxu0 %v2244
    %v2258 = vpop.f32.mrf.mxu0
    %v2259 = vadd.f32 %v2245, %v2258
    %v2260 = vpop.f32.mrf.mxu0
    %2261 = vdwg.mxu0
    %2262 = vmatpush.bf16.msra.mxu0 %v410
    %2263 = vmatpush.bf16.msra.mxu0 %v406
    %2264 = vmatpush.bf16.msra.mxu0 %v402
    %2265 = vmatpush.bf16.msra.mxu0 %v398
    %2266 = vmatpush.bf16.msra.mxu0 %v394
    %2267 = vmatpush.bf16.msra.mxu0 %v390
    %2268 = vmatpush.bf16.msra.mxu0 %v386
    %2269 = vmatpush.bf16.msra.mxu0 %v382
    %2270 = vmatmul.bf16.gmra.mxu0 %v2244
    %v2271 = vpop.f32.mrf.mxu0
    %v2272 = vadd.f32 %v2246, %v2271
    %v2273 = vpop.f32.mrf.mxu0
    %2274 = vdwg.mxu0
    %2275 = vmatpush.bf16.msra.mxu0 %v411
    %2276 = vmatpush.bf16.msra.mxu0 %v407
    %2277 = vmatpush.bf16.msra.mxu0 %v403
    %2278 = vmatpush.bf16.msra.mxu0 %v399
    %2279 = vmatpush.bf16.msra.mxu0 %v395
    %2280 = vmatpush.bf16.msra.mxu0 %v391
    %2281 = vmatpush.bf16.msra.mxu0 %v387
    %2282 = vmatpush.bf16.msra.mxu0 %v383
    %2283 = vmatmul.bf16.gmra.mxu0 %v2244
    %v2284 = vpop.f32.mrf.mxu0
    %v2285 = vadd.f32 %v2247, %v2284
    %v2286 = vpop.f32.mrf.mxu0
    %2287 = vdwg.mxu0
    %2288 = vmatpush.bf16.msra.mxu0 %v412
    %2289 = vmatpush.bf16.msra.mxu0 %v408
    %2290 = vmatpush.bf16.msra.mxu0 %v404
    %2291 = vmatpush.bf16.msra.mxu0 %v400
    %2292 = vmatpush.bf16.msra.mxu0 %v396
    %2293 = vmatpush.bf16.msra.mxu0 %v392
    %2294 = vmatpush.bf16.msra.mxu0 %v388
    %2295 = vmatpush.bf16.msra.mxu0 %v384
    %2296 = vmatmul.bf16.gmra.mxu0 %v2244
    %v2297 = vpop.f32.mrf.mxu0
    %v2298 = vadd.f32 %v2248, %v2297
    %v2299 = vpop.f32.mrf.mxu0
    %2300 = vdwg.mxu0
    %v2301 = vxor.u32 %v2259, 2147483648
    %v2302 = vxor.u32 %v2272, 2147483648
    %v2303 = vxor.u32 %v2285, 2147483648
    %v2304 = vmul.f32 %v2301, 1.442695
    %v2305 = vpow.pop %v2304
    %v2306 = vmul.f32 %v2302, 1.442695
    %v2307 = vpow.pop %v2306
    %v2308 = vmul.f32 %v2303, 1.442695
    %v2309 = vpow.pop %v2308
    %v2310 = vadd.f32 %v2305, 1.0
    %v2311 = vadd.f32 %v2307, 1.0
    %v2312 = vadd.f32 %v2309, 1.0
    %v2313 = vrcp.pop %v2310
    %v2314 = vmul.f32 %v2310, %v2313
    %v2315 = vsub.f32 1.0, %v2314
    %v2316 = vmul.f32 %v2313, %v2315
    %v2317 = vadd.f32 %v2313, %v2316
    %vm2318 = vweird.f32 %v2310
    %vm2319 = vweird.f32 %v2313
    %vm2320 = vmor %vm2318, %vm2319
    %v2321 = vsel %vm2320, %v2313, %v2317
    %v2322 = vand.u32 2147483647, %v2310
    %vm2323 = vcmp.eq.f32.partialorder %v2322, 8.507059e+37
    %v2324 = vand.u32 %v2310, 2147483648
    %v2325 = vor.u32 1.1754944e-38, %v2324
    %v2326 = vsel %vm2323, %v2325, %v2321
    %v2327 = vmul.f32 1.0, %v2326
    %v2328 = vrcp.pop %v2311
    %v2329 = vmul.f32 %v2311, %v2328
    %v2330 = vsub.f32 1.0, %v2329
    %v2331 = vmul.f32 %v2328, %v2330
    %v2332 = vadd.f32 %v2328, %v2331
    %vm2333 = vweird.f32 %v2311
    %vm2334 = vweird.f32 %v2328
    %vm2335 = vmor %vm2333, %vm2334
    %v2336 = vsel %vm2335, %v2328, %v2332
    %v2337 = vand.u32 2147483647, %v2311
    %vm2338 = vcmp.eq.f32.partialorder %v2337, 8.507059e+37
    %v2339 = vand.u32 %v2311, 2147483648
    %v2340 = vor.u32 1.1754944e-38, %v2339
    %v2341 = vsel %vm2338, %v2340, %v2336
    %v2342 = vmul.f32 1.0, %v2341
    %v2343 = vrcp.pop %v2312
    %v2344 = vmul.f32 %v2312, %v2343
    %v2345 = vsub.f32 1.0, %v2344
    %v2346 = vmul.f32 %v2343, %v2345
    %v2347 = vadd.f32 %v2343, %v2346
    %vm2348 = vweird.f32 %v2312
    %vm2349 = vweird.f32 %v2343
    %vm2350 = vmor %vm2348, %vm2349
    %v2351 = vsel %vm2350, %v2343, %v2347
    %v2352 = vand.u32 2147483647, %v2312
    %vm2353 = vcmp.eq.f32.partialorder %v2352, 8.507059e+37
    %v2354 = vand.u32 %v2312, 2147483648
    %v2355 = vor.u32 1.1754944e-38, %v2354
    %v2356 = vsel %vm2353, %v2355, %v2351
    %v2357 = vmul.f32 1.0, %v2356
    %v2358 = vtanh.pop %v2298
    %v2359 = vmul.f32 %v2342, %v2098
    %v2360 = vmul.f32 %v2327, %v2358
    %v2361 = vadd.f32 %v2359, %v2360
    %v2362 = vtanh.pop %v2361
    %v2363 = vmul.f32 %v2357, %v2362
    %v2364 = vstv %s2240
    %vm2365 = vcmp.lt.s32.totalorder %v2364, %v202
    %v2366 = vsel %vm2365, 1, 0
    %2367 = vset.pattern.permute.xlu0 0
    %2368 = vperm.xlu0 %2367, %v2366
    %v2369 = vpop.permute.xlu0 %2368
    %vm2370 = vcmp.eq.s32.totalorder %v2369, 1
    %v2371 = vsel %vm2370, %v2363, %v2097
    %v2372 = vsel %vm2370, %v2361, %v2098
    %v2373 = vsel %vm2370, %v2363, 0.0
    %vm2374 = vcmp.eq.f32.partialorder %v2373, 0.0
    %v2375 = vsel %vm2374, -1e+09, %v2373
    %v2376 = vmax.f32 %v2102, %v2375
    %s2377 = scalar_lea.vmem %s40, 16
    %v2378 = vld [vmem:[%s2377] sm:$0xff]
    %v2379 = vld [vmem:[%s2377 + $0x8] sm:$0xff]
    %s2380 = ssub.s32 1, %s268
    %v2381 = vpack.c.bf16 %v2234, %v2234
    %v2382 = vunpack.c.l.bf16 %v2378
    %v2383 = vunpack.c.h.bf16 %v2378
    %v2384 = vunpack.c.l.bf16 %v2379
    %v2385 = vunpack.c.h.bf16 %v2379
    %2386 = vmatpush.bf16.msra.mxu0 %v706
    %2387 = vmatpush.bf16.msra.mxu0 %v702
    %2388 = vmatpush.bf16.msra.mxu0 %v698
    %2389 = vmatpush.bf16.msra.mxu0 %v694
    %2390 = vmatpush.bf16.msra.mxu0 %v690
    %2391 = vmatpush.bf16.msra.mxu0 %v686
    %2392 = vmatpush.bf16.msra.mxu0 %v682
    %2393 = vmatpush.bf16.msra.mxu0 %v678
    %2394 = vmatmul.bf16.gmra.mxu0 %v2381
    %v2395 = vpop.f32.mrf.mxu0
    %v2396 = vadd.f32 %v2382, %v2395
    %v2397 = vpop.f32.mrf.mxu0
    %2398 = vdwg.mxu0
    %2399 = vmatpush.bf16.msra.mxu0 %v707
    %2400 = vmatpush.bf16.msra.mxu0 %v703
    %2401 = vmatpush.bf16.msra.mxu0 %v699
    %2402 = vmatpush.bf16.msra.mxu0 %v695
    %2403 = vmatpush.bf16.msra.mxu0 %v691
    %2404 = vmatpush.bf16.msra.mxu0 %v687
    %2405 = vmatpush.bf16.msra.mxu0 %v683
    %2406 = vmatpush.bf16.msra.mxu0 %v679
    %2407 = vmatmul.bf16.gmra.mxu0 %v2381
    %v2408 = vpop.f32.mrf.mxu0
    %v2409 = vadd.f32 %v2383, %v2408
    %v2410 = vpop.f32.mrf.mxu0
    %2411 = vdwg.mxu0
    %2412 = vmatpush.bf16.msra.mxu0 %v708
    %2413 = vmatpush.bf16.msra.mxu0 %v704
    %2414 = vmatpush.bf16.msra.mxu0 %v700
    %2415 = vmatpush.bf16.msra.mxu0 %v696
    %2416 = vmatpush.bf16.msra.mxu0 %v692
    %2417 = vmatpush.bf16.msra.mxu0 %v688
    %2418 = vmatpush.bf16.msra.mxu0 %v684
    %2419 = vmatpush.bf16.msra.mxu0 %v680
    %2420 = vmatmul.bf16.gmra.mxu0 %v2381
    %v2421 = vpop.f32.mrf.mxu0
    %v2422 = vadd.f32 %v2384, %v2421
    %v2423 = vpop.f32.mrf.mxu0
    %2424 = vdwg.mxu0
    %2425 = vmatpush.bf16.msra.mxu0 %v709
    %2426 = vmatpush.bf16.msra.mxu0 %v705
    %2427 = vmatpush.bf16.msra.mxu0 %v701
    %2428 = vmatpush.bf16.msra.mxu0 %v697
    %2429 = vmatpush.bf16.msra.mxu0 %v693
    %2430 = vmatpush.bf16.msra.mxu0 %v689
    %2431 = vmatpush.bf16.msra.mxu0 %v685
    %2432 = vmatpush.bf16.msra.mxu0 %v681
    %2433 = vmatmul.bf16.gmra.mxu0 %v2381
    %v2434 = vpop.f32.mrf.mxu0
    %v2435 = vadd.f32 %v2385, %v2434
    %v2436 = vpop.f32.mrf.mxu0
    %2437 = vdwg.mxu0
    %v2438 = vxor.u32 %v2396, 2147483648
    %v2439 = vxor.u32 %v2409, 2147483648
    %v2440 = vxor.u32 %v2422, 2147483648
    %v2441 = vmul.f32 %v2438, 1.442695
    %v2442 = vpow.pop %v2441
    %v2443 = vmul.f32 %v2439, 1.442695
    %v2444 = vpow.pop %v2443
    %v2445 = vmul.f32 %v2440, 1.442695
    %v2446 = vpow.pop %v2445
    %v2447 = vadd.f32 %v2442, 1.0
    %v2448 = vadd.f32 %v2444, 1.0
    %v2449 = vadd.f32 %v2446, 1.0
    %v2450 = vrcp.pop %v2447
    %v2451 = vmul.f32 %v2447, %v2450
    %v2452 = vsub.f32 1.0, %v2451
    %v2453 = vmul.f32 %v2450, %v2452
    %v2454 = vadd.f32 %v2450, %v2453
    %vm2455 = vweird.f32 %v2447
    %vm2456 = vweird.f32 %v2450
    %vm2457 = vmor %vm2455, %vm2456
    %v2458 = vsel %vm2457, %v2450, %v2454
    %v2459 = vand.u32 2147483647, %v2447
    %vm2460 = vcmp.eq.f32.partialorder %v2459, 8.507059e+37
    %v2461 = vand.u32 %v2447, 2147483648
    %v2462 = vor.u32 1.1754944e-38, %v2461
    %v2463 = vsel %vm2460, %v2462, %v2458
    %v2464 = vmul.f32 1.0, %v2463
    %v2465 = vrcp.pop %v2448
    %v2466 = vmul.f32 %v2448, %v2465
    %v2467 = vsub.f32 1.0, %v2466
    %v2468 = vmul.f32 %v2465, %v2467
    %v2469 = vadd.f32 %v2465, %v2468
    %vm2470 = vweird.f32 %v2448
    %vm2471 = vweird.f32 %v2465
    %vm2472 = vmor %vm2470, %vm2471
    %v2473 = vsel %vm2472, %v2465, %v2469
    %v2474 = vand.u32 2147483647, %v2448
    %vm2475 = vcmp.eq.f32.partialorder %v2474, 8.507059e+37
    %v2476 = vand.u32 %v2448, 2147483648
    %v2477 = vor.u32 1.1754944e-38, %v2476
    %v2478 = vsel %vm2475, %v2477, %v2473
    %v2479 = vmul.f32 1.0, %v2478
    %v2480 = vrcp.pop %v2449
    %v2481 = vmul.f32 %v2449, %v2480
    %v2482 = vsub.f32 1.0, %v2481
    %v2483 = vmul.f32 %v2480, %v2482
    %v2484 = vadd.f32 %v2480, %v2483
    %vm2485 = vweird.f32 %v2449
    %vm2486 = vweird.f32 %v2480
    %vm2487 = vmor %vm2485, %vm2486
    %v2488 = vsel %vm2487, %v2480, %v2484
    %v2489 = vand.u32 2147483647, %v2449
    %vm2490 = vcmp.eq.f32.partialorder %v2489, 8.507059e+37
    %v2491 = vand.u32 %v2449, 2147483648
    %v2492 = vor.u32 1.1754944e-38, %v2491
    %v2493 = vsel %vm2490, %v2492, %v2488
    %v2494 = vmul.f32 1.0, %v2493
    %v2495 = vtanh.pop %v2435
    %v2496 = vmul.f32 %v2479, %v2235
    %v2497 = vmul.f32 %v2464, %v2495
    %v2498 = vadd.f32 %v2496, %v2497
    %v2499 = vtanh.pop %v2498
    %v2500 = vmul.f32 %v2494, %v2499
    %v2501 = vstv %s2380
    %vm2502 = vcmp.lt.s32.totalorder %v2501, %v202
    %v2503 = vsel %vm2502, 1, 0
    %2504 = vset.pattern.permute.xlu0 0
    %2505 = vperm.xlu0 %2504, %v2503
    %v2506 = vpop.permute.xlu0 %2505
    %vm2507 = vcmp.eq.s32.totalorder %v2506, 1
    %v2508 = vsel %vm2507, %v2500, %v2234
    %v2509 = vsel %vm2507, %v2498, %v2235
    %v2510 = vsel %vm2507, %v2500, 0.0
    %vm2511 = vcmp.eq.f32.partialorder %v2510, 0.0
    %v2512 = vsel %vm2511, -1e+09, %v2510
    %v2513 = vmax.f32 %v2239, %v2512
    %s2514 = sadd.s32 %s268, 7
    %s2515 = scalar_lea.vmem %s1, 112
    %v2516 = vld [vmem:[%s2515] sm:$0xff]
    %v2517 = vld [vmem:[%s2515 + $0x8] sm:$0xff]
    %v2518 = vpack.c.bf16 %v2371, %v2371
    %v2519 = vunpack.c.l.bf16 %v2516
    %v2520 = vunpack.c.h.bf16 %v2516
    %v2521 = vunpack.c.l.bf16 %v2517
    %v2522 = vunpack.c.h.bf16 %v2517
    %2523 = vmatpush.bf16.msra.mxu0 %v409
    %2524 = vmatpush.bf16.msra.mxu0 %v405
    %2525 = vmatpush.bf16.msra.mxu0 %v401
    %2526 = vmatpush.bf16.msra.mxu0 %v397
    %2527 = vmatpush.bf16.msra.mxu0 %v393
    %2528 = vmatpush.bf16.msra.mxu0 %v389
    %2529 = vmatpush.bf16.msra.mxu0 %v385
    %2530 = vmatpush.bf16.msra.mxu0 %v381
    %2531 = vmatmul.bf16.gmra.mxu0 %v2518
    %v2532 = vpop.f32.mrf.mxu0
    %v2533 = vadd.f32 %v2519, %v2532
    %v2534 = vpop.f32.mrf.mxu0
    %2535 = vdwg.mxu0
    %2536 = vmatpush.bf16.msra.mxu0 %v410
    %2537 = vmatpush.bf16.msra.mxu0 %v406
    %2538 = vmatpush.bf16.msra.mxu0 %v402
    %2539 = vmatpush.bf16.msra.mxu0 %v398
    %2540 = vmatpush.bf16.msra.mxu0 %v394
    %2541 = vmatpush.bf16.msra.mxu0 %v390
    %2542 = vmatpush.bf16.msra.mxu0 %v386
    %2543 = vmatpush.bf16.msra.mxu0 %v382
    %2544 = vmatmul.bf16.gmra.mxu0 %v2518
    %v2545 = vpop.f32.mrf.mxu0
    %v2546 = vadd.f32 %v2520, %v2545
    %v2547 = vpop.f32.mrf.mxu0
    %2548 = vdwg.mxu0
    %2549 = vmatpush.bf16.msra.mxu0 %v411
    %2550 = vmatpush.bf16.msra.mxu0 %v407
    %2551 = vmatpush.bf16.msra.mxu0 %v403
    %2552 = vmatpush.bf16.msra.mxu0 %v399
    %2553 = vmatpush.bf16.msra.mxu0 %v395
    %2554 = vmatpush.bf16.msra.mxu0 %v391
    %2555 = vmatpush.bf16.msra.mxu0 %v387
    %2556 = vmatpush.bf16.msra.mxu0 %v383
    %2557 = vmatmul.bf16.gmra.mxu0 %v2518
    %v2558 = vpop.f32.mrf.mxu0
    %v2559 = vadd.f32 %v2521, %v2558
    %v2560 = vpop.f32.mrf.mxu0
    %2561 = vdwg.mxu0
    %2562 = vmatpush.bf16.msra.mxu0 %v412
    %2563 = vmatpush.bf16.msra.mxu0 %v408
    %2564 = vmatpush.bf16.msra.mxu0 %v404
    %2565 = vmatpush.bf16.msra.mxu0 %v400
    %2566 = vmatpush.bf16.msra.mxu0 %v396
    %2567 = vmatpush.bf16.msra.mxu0 %v392
    %2568 = vmatpush.bf16.msra.mxu0 %v388
    %2569 = vmatpush.bf16.msra.mxu0 %v384
    %2570 = vmatmul.bf16.gmra.mxu0 %v2518
    %v2571 = vpop.f32.mrf.mxu0
    %v2572 = vadd.f32 %v2522, %v2571
    %v2573 = vpop.f32.mrf.mxu0
    %2574 = vdwg.mxu0
    %v2575 = vxor.u32 %v2533, 2147483648
    %v2576 = vxor.u32 %v2546, 2147483648
    %v2577 = vxor.u32 %v2559, 2147483648
    %v2578 = vmul.f32 %v2575, 1.442695
    %v2579 = vpow.pop %v2578
    %v2580 = vmul.f32 %v2576, 1.442695
    %v2581 = vpow.pop %v2580
    %v2582 = vmul.f32 %v2577, 1.442695
    %v2583 = vpow.pop %v2582
    %v2584 = vadd.f32 %v2579, 1.0
    %v2585 = vadd.f32 %v2581, 1.0
    %v2586 = vadd.f32 %v2583, 1.0
    %v2587 = vrcp.pop %v2584
    %v2588 = vmul.f32 %v2584, %v2587
    %v2589 = vsub.f32 1.0, %v2588
    %v2590 = vmul.f32 %v2587, %v2589
    %v2591 = vadd.f32 %v2587, %v2590
    %vm2592 = vweird.f32 %v2584
    %vm2593 = vweird.f32 %v2587
    %vm2594 = vmor %vm2592, %vm2593
    %v2595 = vsel %vm2594, %v2587, %v2591
    %v2596 = vand.u32 2147483647, %v2584
    %vm2597 = vcmp.eq.f32.partialorder %v2596, 8.507059e+37
    %v2598 = vand.u32 %v2584, 2147483648
    %v2599 = vor.u32 1.1754944e-38, %v2598
    %v2600 = vsel %vm2597, %v2599, %v2595
    %v2601 = vmul.f32 1.0, %v2600
    %v2602 = vrcp.pop %v2585
    %v2603 = vmul.f32 %v2585, %v2602
    %v2604 = vsub.f32 1.0, %v2603
    %v2605 = vmul.f32 %v2602, %v2604
    %v2606 = vadd.f32 %v2602, %v2605
    %vm2607 = vweird.f32 %v2585
    %vm2608 = vweird.f32 %v2602
    %vm2609 = vmor %vm2607, %vm2608
    %v2610 = vsel %vm2609, %v2602, %v2606
    %v2611 = vand.u32 2147483647, %v2585
    %vm2612 = vcmp.eq.f32.partialorder %v2611, 8.507059e+37
    %v2613 = vand.u32 %v2585, 2147483648
    %v2614 = vor.u32 1.1754944e-38, %v2613
    %v2615 = vsel %vm2612, %v2614, %v2610
    %v2616 = vmul.f32 1.0, %v2615
    %v2617 = vrcp.pop %v2586
    %v2618 = vmul.f32 %v2586, %v2617
    %v2619 = vsub.f32 1.0, %v2618
    %v2620 = vmul.f32 %v2617, %v2619
    %v2621 = vadd.f32 %v2617, %v2620
    %vm2622 = vweird.f32 %v2586
    %vm2623 = vweird.f32 %v2617
    %vm2624 = vmor %vm2622, %vm2623
    %v2625 = vsel %vm2624, %v2617, %v2621
    %v2626 = vand.u32 2147483647, %v2586
    %vm2627 = vcmp.eq.f32.partialorder %v2626, 8.507059e+37
    %v2628 = vand.u32 %v2586, 2147483648
    %v2629 = vor.u32 1.1754944e-38, %v2628
    %v2630 = vsel %vm2627, %v2629, %v2625
    %v2631 = vmul.f32 1.0, %v2630
    %v2632 = vtanh.pop %v2572
    %v2633 = vmul.f32 %v2616, %v2372
    %v2634 = vmul.f32 %v2601, %v2632
    %v2635 = vadd.f32 %v2633, %v2634
    %v2636 = vtanh.pop %v2635
    %v2637 = vmul.f32 %v2631, %v2636
    %v2638 = vstv %s2514
    %vm2639 = vcmp.lt.s32.totalorder %v2638, %v202
    %v2640 = vsel %vm2639, 1, 0
    %2641 = vset.pattern.permute.xlu0 0
    %2642 = vperm.xlu0 %2641, %v2640
    %v2643 = vpop.permute.xlu0 %2642
    %vm2644 = vcmp.eq.s32.totalorder %v2643, 1
    %v2645 = vsel %vm2644, %v2637, %v2371
    %v2646 = vsel %vm2644, %v2635, %v2372
    %v2647 = vsel %vm2644, %v2637, 0.0
    %vm2648 = vcmp.eq.f32.partialorder %v2647, 0.0
    %v2649 = vsel %vm2648, -1e+09, %v2647
    %v2650 = vmax.f32 %v2376, %v2649
    %v2651 = vld [vmem:[%s40] sm:$0xff]
    %v2652 = vld [vmem:[%s40 + $0x8] sm:$0xff]
    %s2653 = ssub.s32 0, %s268
    %v2654 = vpack.c.bf16 %v2508, %v2508
    %v2655 = vunpack.c.l.bf16 %v2651
    %v2656 = vunpack.c.h.bf16 %v2651
    %v2657 = vunpack.c.l.bf16 %v2652
    %v2658 = vunpack.c.h.bf16 %v2652
    %2659 = vmatpush.bf16.msra.mxu0 %v706
    %2660 = vmatpush.bf16.msra.mxu0 %v702
    %2661 = vmatpush.bf16.msra.mxu0 %v698
    %2662 = vmatpush.bf16.msra.mxu0 %v694
    %2663 = vmatpush.bf16.msra.mxu0 %v690
    %2664 = vmatpush.bf16.msra.mxu0 %v686
    %2665 = vmatpush.bf16.msra.mxu0 %v682
    %2666 = vmatpush.bf16.msra.mxu0 %v678
    %2667 = vmatmul.bf16.gmra.mxu0 %v2654
    %v2668 = vpop.f32.mrf.mxu0
    %v2669 = vadd.f32 %v2655, %v2668
    %v2670 = vpop.f32.mrf.mxu0
    %2671 = vdwg.mxu0
    %2672 = vmatpush.bf16.msra.mxu0 %v707
    %2673 = vmatpush.bf16.msra.mxu0 %v703
    %2674 = vmatpush.bf16.msra.mxu0 %v699
    %2675 = vmatpush.bf16.msra.mxu0 %v695
    %2676 = vmatpush.bf16.msra.mxu0 %v691
    %2677 = vmatpush.bf16.msra.mxu0 %v687
    %2678 = vmatpush.bf16.msra.mxu0 %v683
    %2679 = vmatpush.bf16.msra.mxu0 %v679
    %2680 = vmatmul.bf16.gmra.mxu0 %v2654
    %v2681 = vpop.f32.mrf.mxu0
    %v2682 = vadd.f32 %v2656, %v2681
    %v2683 = vpop.f32.mrf.mxu0
    %2684 = vdwg.mxu0
    %2685 = vmatpush.bf16.msra.mxu0 %v708
    %2686 = vmatpush.bf16.msra.mxu0 %v704
    %2687 = vmatpush.bf16.msra.mxu0 %v700
    %2688 = vmatpush.bf16.msra.mxu0 %v696
    %2689 = vmatpush.bf16.msra.mxu0 %v692
    %2690 = vmatpush.bf16.msra.mxu0 %v688
    %2691 = vmatpush.bf16.msra.mxu0 %v684
    %2692 = vmatpush.bf16.msra.mxu0 %v680
    %2693 = vmatmul.bf16.gmra.mxu0 %v2654
    %v2694 = vpop.f32.mrf.mxu0
    %v2695 = vadd.f32 %v2657, %v2694
    %v2696 = vpop.f32.mrf.mxu0
    %2697 = vdwg.mxu0
    %2698 = vmatpush.bf16.msra.mxu0 %v709
    %2699 = vmatpush.bf16.msra.mxu0 %v705
    %2700 = vmatpush.bf16.msra.mxu0 %v701
    %2701 = vmatpush.bf16.msra.mxu0 %v697
    %2702 = vmatpush.bf16.msra.mxu0 %v693
    %2703 = vmatpush.bf16.msra.mxu0 %v689
    %2704 = vmatpush.bf16.msra.mxu0 %v685
    %2705 = vmatpush.bf16.msra.mxu0 %v681
    %2706 = vmatmul.bf16.gmra.mxu0 %v2654
    %v2707 = vpop.f32.mrf.mxu0
    %v2708 = vadd.f32 %v2658, %v2707
    %v2709 = vpop.f32.mrf.mxu0
    %2710 = vdwg.mxu0
    %v2711 = vxor.u32 %v2669, 2147483648
    %v2712 = vxor.u32 %v2682, 2147483648
    %v2713 = vxor.u32 %v2695, 2147483648
    %v2714 = vmul.f32 %v2711, 1.442695
    %v2715 = vpow.pop %v2714
    %v2716 = vmul.f32 %v2712, 1.442695
    %v2717 = vpow.pop %v2716
    %v2718 = vmul.f32 %v2713, 1.442695
    %v2719 = vpow.pop %v2718
    %v2720 = vadd.f32 %v2715, 1.0
    %v2721 = vadd.f32 %v2717, 1.0
    %v2722 = vadd.f32 %v2719, 1.0
    %v2723 = vrcp.pop %v2720
    %v2724 = vmul.f32 %v2720, %v2723
    %v2725 = vsub.f32 1.0, %v2724
    %v2726 = vmul.f32 %v2723, %v2725
    %v2727 = vadd.f32 %v2723, %v2726
    %vm2728 = vweird.f32 %v2720
    %vm2729 = vweird.f32 %v2723
    %vm2730 = vmor %vm2728, %vm2729
    %v2731 = vsel %vm2730, %v2723, %v2727
    %v2732 = vand.u32 2147483647, %v2720
    %vm2733 = vcmp.eq.f32.partialorder %v2732, 8.507059e+37
    %v2734 = vand.u32 %v2720, 2147483648
    %v2735 = vor.u32 1.1754944e-38, %v2734
    %v2736 = vsel %vm2733, %v2735, %v2731
    %v2737 = vmul.f32 1.0, %v2736
    %v2738 = vrcp.pop %v2721
    %v2739 = vmul.f32 %v2721, %v2738
    %v2740 = vsub.f32 1.0, %v2739
    %v2741 = vmul.f32 %v2738, %v2740
    %v2742 = vadd.f32 %v2738, %v2741
    %vm2743 = vweird.f32 %v2721
    %vm2744 = vweird.f32 %v2738
    %vm2745 = vmor %vm2743, %vm2744
    %v2746 = vsel %vm2745, %v2738, %v2742
    %v2747 = vand.u32 2147483647, %v2721
    %vm2748 = vcmp.eq.f32.partialorder %v2747, 8.507059e+37
    %v2749 = vand.u32 %v2721, 2147483648
    %v2750 = vor.u32 1.1754944e-38, %v2749
    %v2751 = vsel %vm2748, %v2750, %v2746
    %v2752 = vmul.f32 1.0, %v2751
    %v2753 = vrcp.pop %v2722
    %v2754 = vmul.f32 %v2722, %v2753
    %v2755 = vsub.f32 1.0, %v2754
    %v2756 = vmul.f32 %v2753, %v2755
    %v2757 = vadd.f32 %v2753, %v2756
    %vm2758 = vweird.f32 %v2722
    %vm2759 = vweird.f32 %v2753
    %vm2760 = vmor %vm2758, %vm2759
    %v2761 = vsel %vm2760, %v2753, %v2757
    %v2762 = vand.u32 2147483647, %v2722
    %vm2763 = vcmp.eq.f32.partialorder %v2762, 8.507059e+37
    %v2764 = vand.u32 %v2722, 2147483648
    %v2765 = vor.u32 1.1754944e-38, %v2764
    %v2766 = vsel %vm2763, %v2765, %v2761
    %v2767 = vmul.f32 1.0, %v2766
    %v2768 = vtanh.pop %v2708
    %v2769 = vmul.f32 %v2752, %v2509
    %v2770 = vmul.f32 %v2737, %v2768
    %v2771 = vadd.f32 %v2769, %v2770
    %v2772 = vtanh.pop %v2771
    %v2773 = vmul.f32 %v2767, %v2772
    %v2774 = vstv %s2653
    %vm2775 = vcmp.lt.s32.totalorder %v2774, %v202
    %v2776 = vsel %vm2775, 1, 0
    %2777 = vset.pattern.permute.xlu0 0
    %2778 = vperm.xlu0 %2777, %v2776
    %v2779 = vpop.permute.xlu0 %2778
    %vm2780 = vcmp.eq.s32.totalorder %v2779, 1
    %v2781 = vsel %vm2780, %v2773, %v2508
    %v2782 = vsel %vm2780, %v2771, %v2509
    %v2783 = vsel %vm2780, %v2773, 0.0
    %vm2784 = vcmp.eq.f32.partialorder %v2783, 0.0
    %v2785 = vsel %vm2784, -1e+09, %v2783
    %v2786 = vmax.f32 %v2513, %v2785
    %2787 = vst [vmem:[#allocation4] sm:$0xff] %v2645
    %2788 = vst [vmem:[#allocation5] sm:$0xff] %v2646
    %2789 = vst [vmem:[#allocation6] sm:$0xff] %v2650
    %2790 = vst [vmem:[%s270] sm:$0xff] %v2781
    %2791 = vst [vmem:[%s273] sm:$0xff] %v2782
    %2792 = vst [vmem:[%s276] sm:$0xff] %v2786
    // Predicated region
    $region37: #{base_lstm_encoder.1} parent=1 // pred_check
      %p2793 = pneg %p43
    $region38: #{base_lstm_encoder.1} parent=1 // pred_check_branch
      %2795 = sbr.rel (%p2793) target = $region40
    $region39: #{base_lstm_encoder.1} parent=1 // pred_region
      %2796 = vst [vmem:[#allocation7] sm:$0xff] %v2645
      %2797 = vst [vmem:[%s5] sm:$0xff] %v2650
      %s2798 = scalar_lea.vmem [#allocation7], 8
      %2799 = vst [vmem:[%s2798] sm:$0xff] %v2781
      %s2800 = scalar_lea.vmem %s5, 8
      %2801 = vst [vmem:[%s2800] sm:$0xff] %v2786
    $region40: #{base_lstm_encoder.1} parent=1 // pred_fallthru
      _
    // Predicated region
    $region41: #{base_lstm_encoder.1} parent=1 // pred_check
      _
    $region42: #{base_lstm_encoder.1} parent=1 // pred_check_branch
      %2803 = sbr.rel (0) target = $region44
    $region43: #{base_lstm_encoder.1} parent=1 // pred_region
      %2805 = vsyncadd [#allocation8], 0
      %s2806 = sshll.u32 [#allocation7], 4
      %s2807 = int_to_ptr.vmem [resolvable:$true] %s2806
      %s2808 = sshll.u32 %s4, 4
      %s2809 = int_to_ptr.hbm [resolvable:$true] %s2808
      %2814 = dma.vmem_to_hbm [thread:$0]  %s2807, 256, %s2809, [#allocation8], 128, 128, 8
    $region44: #{base_lstm_encoder.1} parent=1 // pred_fallthru
      _
    // Predicated region
    $region45: #{base_lstm_encoder.1} parent=1 // pred_check
      _
    $region46: #{base_lstm_encoder.1} parent=1 // pred_check_branch
      %2816 = sbr.rel (0) target = $region48
    $region47: #{base_lstm_encoder.1} parent=1 // pred_region
      _
    $region48: #{base_lstm_encoder.1} parent=1 // pred_fallthru
      _
    // Predicated region
    $region49: #{base_lstm_encoder.1} parent=1 // pred_check
      _
    $region50: #{base_lstm_encoder.1} parent=1 // pred_check_branch
      %2818 = sbr.rel (0) target = $region52
    $region51: #{base_lstm_encoder.1} parent=1 // pred_region
      %2820 = dma.done [#allocation8], 256
    $region52: #{base_lstm_encoder.1} parent=1 // pred_fallthru
      _
    // Predicated region
    $region53: #{base_lstm_encoder.1} parent=1 // pred_check
      _
    $region54: #{base_lstm_encoder.1} parent=1 // pred_check_branch
      %2822 = sbr.rel (0) target = $region56
    $region55: #{base_lstm_encoder.1} parent=1 // pred_region
      _
    $region56: #{base_lstm_encoder.1} parent=1 // pred_fallthru
      _
    %2823 = vsyncpa [#allocation8], 1
  %2824 = vsyncmov [#allocation3]
  %s2825 = vpop.sfrf %2824
  %p2826 = scmp.eq.s32.totalorder %s2825, 0
  %p2827 = pneg %p2826
  %2829 = shalt.err (%p2827)

</llo_original>
